<compile_context>
chip_gen: v6e
topology: v6e:2x2x1
jax: 0.10.0
libtpu: 0.0.40
codegen_flags: <defaults>
</compile_context>

<pallas_src>
import functools

import jax
import jax.numpy as jnp
from jax import lax
from jax.experimental import pallas as pl
from jax.experimental.pallas import tpu as pltpu


# ----------------------------------------------------------------------------
# Packed-small-parameter layouts (row offsets inside the stacked f32 packs)
# ----------------------------------------------------------------------------

def _build_layout(entries):
    layout, off = {}, 0
    for name, n in entries:
        layout[name] = (off, n)
        off += n
    return layout, off


def _small_f_entries(km):
    # every per-layer parameter of lane-width F, as rows of one [NF, F] f32 array
    return (("ff1_ln_w", 1), ("ff1_ln_b", 1), ("ff1_b2", 1),
            ("att_ln_w", 1), ("att_ln_b", 1),
            ("att_bq", 1), ("att_bk", 1), ("att_bv", 1), ("att_bout", 1),
            ("cg_ln_w", 1), ("cg_ln_b", 1), ("cg_bout", 1),
            ("mg_conv_w_a", km), ("mg_conv_w_b", km),
            ("mg_conv_b_a", 1), ("mg_conv_b_b", 1), ("mg_blin", 1),
            ("ff2_ln_w", 1), ("ff2_ln_b", 1), ("ff2_b2", 1),
            ("final_ln_w", 1), ("final_ln_b", 1))


def _small_c_entries(kc):
    # every per-layer parameter of lane-width C = cgmlp_hidden // 2
    return (("cg_bff_a", 1), ("cg_bff_b", 1),
            ("cg_csgu_ln_w", 1), ("cg_csgu_ln_b", 1),
            ("cg_conv_w", kc), ("cg_conv_b", 1))


_SMALL_H_ENTRIES = (("ff1_b1", 1), ("ff2_b1", 1))   # lane-width HFF

_BIG_WEIGHT_NAMES = ("w_ff1_1", "w_ff1_2", "w_qkv", "w_att_out",
                     "w_cg_ff", "w_cg_out", "w_mg", "w_ff2_1", "w_ff2_2")


def _pick(packed, layout, name):
    off, n = layout[name]
    return packed[off] if n == 1 else packed[off:off + n]


# ----------------------------------------------------------------------------
# In-kernel math helpers (operate on loaded values, not refs)
# ----------------------------------------------------------------------------

def _mxu(a, b):
    """MXU matmul with bf16 operands and f32 accumulation."""
    return jnp.dot(a.astype(jnp.bfloat16), b.astype(jnp.bfloat16),
                   preferred_element_type=jnp.float32)


def _mxu_nt(a, b):
    """a @ b.T on the MXU (contraction over the last dim of both operands)."""
    return lax.dot_general(a.astype(jnp.bfloat16), b.astype(jnp.bfloat16),
                           (((1,), (1,)), ((), ())),
                           preferred_element_type=jnp.float32)


def _layer_norm(x, w, b, eps=1e-5):
    m = jnp.mean(x, axis=-1, keepdims=True)
    v = jnp.mean((x - m) ** 2, axis=-1, keepdims=True)
    return (x - m) * lax.rsqrt(v + eps) * w + b


def _silu(x):
    return x * jax.nn.sigmoid(x)


def _gelu(x):
    # tanh approximation (see TODO at top of file)
    c = 0.7978845608028654  # sqrt(2/pi)
    return 0.5 * x * (1.0 + jnp.tanh(c * (x + 0.044715 * x * x * x)))


def _depthwise_conv1d_same(x, w, b, kernel_size, edge_valid):
    """Depthwise 'same' conv over time via pltpu.roll sublane shifts.

    x: [T, C], w: [K, C], b: [C], edge_valid: hoisted {shift d -> [T,1] bool}.
    Equivalent to torch.nn.Conv1d(C, C, K, padding=(K-1)//2, groups=C) in NCT layout,
    assuming odd K.  Rolls hit the XLU, FMAs the VPU; no MXU use.
    """
    t = x.shape[0]
    pad = (kernel_size - 1) // 2
    acc = jnp.zeros_like(x) + b
    for kk in range(kernel_size):
        d = kk - pad
        if d == 0:
            shifted = x
        else:
            # rolled[i] = x[(i + d) % t]  (jnp.roll semantics with shift = -d)
            rolled = pltpu.roll(x, shift=(-d) % t, axis=0)
            shifted = jnp.where(edge_valid[d], rolled, 0.0)     # zero padding at ends
        acc = acc + shifted * w[kk]
    return acc


# ----------------------------------------------------------------------------
# Fused whole-encoder kernel: grid = (batch, layer), x carried in VMEM over layers
# ----------------------------------------------------------------------------

def _encoder_kernel(x_ref, mask_ref, sf_ref, sc_ref, sh_ref,
                    w_ff1_1, w_ff1_2, w_qkv, w_att_out,
                    w_cg_ff, w_cg_out, w_mg, w_ff2_1, w_ff2_2,
                    o_ref, x_vmem,
                    *, num_heads, cg_kernel, mg_kernel,
                    f_layout, c_layout, h_layout, exp_dtype):
    l = pl.program_id(1)

    @pl.when(l == 0)
    def _():
        x_vmem[...] = x_ref[...]            # load the residual stream once per batch elem

    x = x_vmem[...]                          # [T, F] f32
    t, f = x.shape
    dh = f // num_heads

    sf = sf_ref[...]                         # [NF, F]  packed small params (width F)
    sc = sc_ref[...]                         # [NC, C]  packed small params (width C)
    sh = sh_ref[...]                         # [2, HFF] packed small params (width HFF)
    pf = lambda n: _pick(sf, f_layout, n)
    pc = lambda n: _pick(sc, c_layout, n)
    ph = lambda n: _pick(sh, h_layout, n)

    # hoisted edge masks shared by the cgMLP conv and both merger conv halves
    row_ids = lax.broadcasted_iota(jnp.int32, (t, 1), 0)
    max_pad = max((cg_kernel - 1) // 2, (mg_kernel - 1) // 2)
    edge_valid = {d: jnp.logical_and(row_ids + d >= 0, row_ids + d < t)
                  for d in range(-max_pad, max_pad + 1) if d != 0}

    # ---- x = 0.5 * ff_1(x) + x ----------------------------------------------
    y = _layer_norm(x, pf("ff1_ln_w"), pf("ff1_ln_b"))
    h = _silu(_mxu(y, w_ff1_1[...]) + ph("ff1_b1"))
    x = 0.5 * (_mxu(h, w_ff1_2[...]) + pf("ff1_b2")) + x

    # ---- x_1 = mhsa(x, sequence_mask) ----------------------------------------
    y = _layer_norm(x, pf("att_ln_w"), pf("att_ln_b"))
    qkv = _mxu(y, w_qkv[...])                         # [T, 3F]; 1/sqrt(dh) folded into q
    q = qkv[:, :f] + pf("att_bq")
    k = qkv[:, f:2 * f] + pf("att_bk")
    v = qkv[:, 2 * f:] + pf("att_bv")
    neg = (1.0 - mask_ref[...]) * (-1e30)             # [1, T] key-padding mask
    ctx_parts = []
    for hh in range(num_heads):                        # TODO(synk): per-head unroll
        lo = hh * dh
        s = _mxu_nt(q[:, lo:lo + dh], k[:, lo:lo + dh]) + neg            # [T, T]
        s = s - jnp.max(s, axis=-1, keepdims=True)
        e = jnp.exp(s.astype(exp_dtype))               # bf16 exp on v6e/v7x, f32 on v5e
        e_f = e.astype(jnp.float32)
        inv = pl.reciprocal(jnp.sum(e_f, axis=-1, keepdims=True), approx=True)
        ctx_parts.append(_mxu(e_f * inv, v[:, lo:lo + dh]))             # [T, dh]
    ctx = jnp.concatenate(ctx_parts, axis=-1)                            # [T, F]
    x1 = _mxu(ctx, w_att_out[...]) + pf("att_bout")    # single K=F out-projection

    # ---- x_2 = cgmlp(x) -------------------------------------------------------
    c = sc.shape[-1]
    y = _layer_norm(x, pf("cg_ln_w"), pf("cg_ln_b"))
    hcg = _mxu(y, w_cg_ff[...])                        # [T, 2C] packed up-projection
    h1 = _gelu(hcg[:, :c] + pc("cg_bff_a"))
    h2 = _gelu(hcg[:, c:] + pc("cg_bff_b"))
    h2 = _layer_norm(h2, pc("cg_csgu_ln_w"), pc("cg_csgu_ln_b"))
    h2 = _depthwise_conv1d_same(h2, pc("cg_conv_w"), pc("cg_conv_b"),
                                cg_kernel, edge_valid)
    x2 = _mxu(h1 * h2, w_cg_out[...]) + pf("cg_bout")

    # ---- x = merger(x_1, x_2) + x ---------------------------------------------
    ya = x1 + _depthwise_conv1d_same(x1, pf("mg_conv_w_a"), pf("mg_conv_b_a"),
                                     mg_kernel, edge_valid)
    yb = x2 + _depthwise_conv1d_same(x2, pf("mg_conv_w_b"), pf("mg_conv_b_b"),
                                     mg_kernel, edge_valid)
    x = _mxu(jnp.concatenate([ya, yb], axis=-1), w_mg[...]) + pf("mg_blin") + x

    # ---- x = 0.5 * ff_2(x) + x ------------------------------------------------
    y = _layer_norm(x, pf("ff2_ln_w"), pf("ff2_ln_b"))
    h = _silu(_mxu(y, w_ff2_1[...]) + ph("ff2_b1"))
    x = 0.5 * (_mxu(h, w_ff2_2[...]) + pf("ff2_b2")) + x

    # ---- final LayerNorm of the block ------------------------------------------
    x = _layer_norm(x, pf("final_ln_w"), pf("final_ln_b"))

    x_vmem[...] = x
    o_ref[...] = x.astype(o_ref.dtype)


# ----------------------------------------------------------------------------
# pallas_call wrapper (whole encoder = one call)
# ----------------------------------------------------------------------------

def ebranchformer_encoder_forward(data, sequence_mask, params, *,
                                  num_heads, cg_kernel, mg_kernel,
                                  exp_dtype=jnp.float32):
    """data: [B, T', F'] f32; sequence_mask: [B, T'] bool (True = inside sequence)."""
    # TODO(synk): frontend stands in for the configurable ModuleFactoryV1 (Linear, by XLA).
    x = jnp.dot(data, params["frontend_w"],
                preferred_element_type=jnp.float32) + params["frontend_b"]
    mask_f = sequence_mask.astype(jnp.float32)[:, None, :]            # [B, 1, T]

    stk = params["stacked"]
    bsz, t, f = x.shape
    num_layers = stk["sf"].shape[0]

    f_layout, _ = _build_layout(_small_f_entries(mg_kernel))
    c_layout, _ = _build_layout(_small_c_entries(cg_kernel))
    h_layout, _ = _build_layout(_SMALL_H_ENTRIES)

    kernel = functools.partial(
        _encoder_kernel, num_heads=num_heads, cg_kernel=cg_kernel,
        mg_kernel=mg_kernel, f_layout=f_layout, c_layout=c_layout,
        h_layout=h_layout, exp_dtype=exp_dtype)

    def _wspec(arr):
        nd = arr.ndim
        return pl.BlockSpec((None,) + arr.shape[1:],
                            lambda b, l, _nd=nd: (l,) + (0,) * (_nd - 1))

    ops = [stk["sf"], stk["sc"], stk["sh"]] + [stk[n] for n in _BIG_WEIGHT_NAMES]
    in_specs = ([pl.BlockSpec((None, t, f), lambda b, l: (b, 0, 0)),      # x (once per b)
                 pl.BlockSpec((None, 1, t), lambda b, l: (b, 0, 0))]      # key-pad mask
                + [_wspec(a) for a in ops])                               # per-layer weights

    out = pl.pallas_call(
        kernel,
        out_shape=jax.ShapeDtypeStruct((bsz, t, f), jnp.float32),
        grid=(bsz, num_layers),
        in_specs=in_specs,
        out_specs=pl.BlockSpec((None, t, f), lambda b, l: (b, 0, 0)),
        scratch_shapes=[pltpu.VMEM((t, f), jnp.float32)],                 # resident x
        input_output_aliases={0: 0},             # output reuses the activation buffer
        compiler_params=pltpu.CompilerParams(
            dimension_semantics=("parallel", "arbitrary"),
            vmem_limit_bytes=64 * 1024 * 1024),
    )(x, mask_f, *ops)
    return out, sequence_mask


# ----------------------------------------------------------------------------
# Deterministic parameter initialization (weights pre-packed / pre-cast on host)
# ----------------------------------------------------------------------------

def _init_linear(key, din, dout, sd=0.05):
    kw, kb = jax.random.split(key)
    return (sd * jax.random.normal(kw, (din, dout), jnp.float32),
            sd * jax.random.normal(kb, (1, dout), jnp.float32))


def _init_ln(dim):
    return jnp.ones((1, dim), jnp.float32), jnp.zeros((1, dim), jnp.float32)


def _init_dwconv(key, channels, ksize, sd=0.05):
    kw, kb = jax.random.split(key)
    return (sd * jax.random.normal(kw, (ksize, channels), jnp.float32),
            sd * jax.random.normal(kb, (1, channels), jnp.float32))


def _pack_rows(entries, tensors, width):
    rows = [tensors[name].reshape(n, width).astype(jnp.float32) for name, n in entries]
    return jnp.concatenate(rows, axis=0)


def _init_block_arrays(key, f, hff, hc, kc, km, num_heads):
    bf16 = jnp.bfloat16
    dh = f // num_heads
    c = hc // 2
    ks = jax.random.split(key, 11)

    ff1_w1, ff1_b1 = _init_linear(ks[0], f, hff)
    ff1_w2, ff1_b2 = _init_linear(ks[1], hff, f)
    wqkv, bqkv = _init_linear(ks[2], f, 3 * f)          # packed MHA in_proj
    wout, bout = _init_linear(ks[3], f, f)              # MHA out_proj (unsplit)
    cg_wff, cg_bff = _init_linear(ks[4], f, hc)         # cgMLP up-proj (packed)
    cg_cw, cg_cb = _init_dwconv(ks[5], c, kc)
    cg_wout, cg_bout = _init_linear(ks[6], c, f)
    mg_cw, mg_cb = _init_dwconv(ks[7], 2 * f, km)       # merger depthwise conv
    mg_w, mg_b = _init_linear(ks[8], 2 * f, f)          # merger linear (packed)
    ff2_w1, ff2_b1 = _init_linear(ks[9], f, hff)
    ff2_w2, ff2_b2 = _init_linear(ks[10], hff, f)

    # Fold the 1/sqrt(dh) attention scale into the q columns of the in-projection.
    # TODO(synk): real PyTorch weights ([out,in]) must be transposed and this folding
    #             re-applied before use.
    scale = 1.0 / float(dh) ** 0.5
    wqkv = wqkv.at[:, :f].multiply(scale)
    bqkv = bqkv.at[:, :f].multiply(scale)

    ff1_lnw, ff1_lnb = _init_ln(f)
    att_lnw, att_lnb = _init_ln(f)
    cg_lnw, cg_lnb = _init_ln(f)
    csgu_lnw, csgu_lnb = _init_ln(c)
    ff2_lnw, ff2_lnb = _init_ln(f)
    fin_lnw, fin_lnb = _init_ln(f)

    tensors_f = {
        "ff1_ln_w": ff1_lnw, "ff1_ln_b": ff1_lnb, "ff1_b2": ff1_b2,
        "att_ln_w": att_lnw, "att_ln_b": att_lnb,
        "att_bq": bqkv[:, :f], "att_bk": bqkv[:, f:2 * f], "att_bv": bqkv[:, 2 * f:],
        "att_bout": bout,
        "cg_ln_w": cg_lnw, "cg_ln_b": cg_lnb, "cg_bout": cg_bout,
        "mg_conv_w_a": mg_cw[:, :f], "mg_conv_w_b": mg_cw[:, f:],
        "mg_conv_b_a": mg_cb[:, :f], "mg_conv_b_b": mg_cb[:, f:],
        "mg_blin": mg_b,
        "ff2_ln_w": ff2_lnw, "ff2_ln_b": ff2_lnb, "ff2_b2": ff2_b2,
        "final_ln_w": fin_lnw, "final_ln_b": fin_lnb,
    }
    tensors_c = {
        "cg_bff_a": cg_bff[:, :c], "cg_bff_b": cg_bff[:, c:],
        "cg_csgu_ln_w": csgu_lnw, "cg_csgu_ln_b": csgu_lnb,
        "cg_conv_w": cg_cw, "cg_conv_b": cg_cb,
    }
    tensors_h = {"ff1_b1": ff1_b1, "ff2_b1": ff2_b1}

    return {
        "sf": _pack_rows(_small_f_entries(km), tensors_f, f),
        "sc": _pack_rows(_small_c_entries(kc), tensors_c, c),
        "sh": _pack_rows(_SMALL_H_ENTRIES, tensors_h, hff),
        "w_ff1_1": ff1_w1.astype(bf16), "w_ff1_2": ff1_w2.astype(bf16),
        "w_qkv": wqkv.astype(bf16), "w_att_out": wout.astype(bf16),
        "w_cg_ff": cg_wff.astype(bf16), "w_cg_out": cg_wout.astype(bf16),
        "w_mg": mg_w.astype(bf16),
        "w_ff2_1": ff2_w1.astype(bf16), "w_ff2_2": ff2_w2.astype(bf16),
    }


def init_params(key, *, f_in, f, hff, hc, kc, km, num_heads, num_layers):
    k_front, k_blocks = jax.random.split(key)
    fw, fb = _init_linear(k_front, f_in, f)
    layers = [_init_block_arrays(jax.random.fold_in(k_blocks, i),
                                 f, hff, hc, kc, km, num_heads)
              for i in range(num_layers)]
    stacked = {k: jnp.stack([lyr[k] for lyr in layers], axis=0) for k in layers[0]}
    return {"frontend_w": fw, "frontend_b": fb, "stacked": stacked}


def _softmax_exp_dtype():
    # bf16 exponent only where the EUP supports bf16 (v6e / v7x); f32 elsewhere (v5e-).
    try:
        kind = jax.devices()[0].device_kind.lower()
    except Exception:
        return jnp.float32
    return jnp.bfloat16 if ("v6" in kind or "v7" in kind) else jnp.float32


# ----------------------------------------------------------------------------
# Main
# ----------------------------------------------------------------------------

if __name__ == "__main__":
    B, T, F_IN, F = 2, 16, 80, 128        # batch, time, input feat, model dim (lane-dense)
    NUM_HEADS = 4                         # head dim 32
    HFF = 256                             # feed-forward hidden dim
    HC = 256                              # cgMLP hidden dim (gated halves of 128)
    KC, KM = 3, 3                         # cgMLP / merger depthwise kernel sizes (odd)
    NUM_LAYERS = 2

    key = jax.random.PRNGKey(0)
    k_data, k_params = jax.random.split(key)

    data = jax.random.normal(k_data, (B, T, F_IN), jnp.float32)
    lengths = jnp.array([T, T - 5], jnp.int32)
    sequence_mask = jnp.arange(T)[None, :] < lengths[:, None]   # [B, T] bool, True = inside

    params = init_params(k_params, f_in=F_IN, f=F, hff=HFF, hc=HC, kc=KC, km=KM,
                         num_heads=NUM_HEADS, num_layers=NUM_LAYERS)

    fwd = jax.jit(functools.partial(
        ebranchformer_encoder_forward, num_heads=NUM_HEADS,
        cg_kernel=KC, mg_kernel=KM, exp_dtype=_softmax_exp_dtype()))
    out, out_mask = fwd(data, sequence_mask, params)

    jax.block_until_ready(out)
    assert out.shape == (B, T, F) and out.dtype == jnp.float32
    assert out_mask.shape == (B, T)
    assert bool(jnp.all(jnp.isfinite(out)))
    print("KERNEL_OK")
</pallas_src>

<mosaic_0001>
module attributes {stable_mosaic.version = 11 : i64} {
  func.func @_encoder_kernel(%arg0: i32, %arg1: i32, %arg2: memref<1x16x128xf32, #tpu.memory_space<vmem>>, %arg3: memref<1x1x16xf32, #tpu.memory_space<vmem>>, %arg4: memref<1x26x128xf32, #tpu.memory_space<vmem>>, %arg5: memref<1x8x128xf32, #tpu.memory_space<vmem>>, %arg6: memref<1x2x256xf32, #tpu.memory_space<vmem>>, %arg7: memref<1x128x256xbf16, #tpu.memory_space<vmem>>, %arg8: memref<1x256x128xbf16, #tpu.memory_space<vmem>>, %arg9: memref<1x128x384xbf16, #tpu.memory_space<vmem>>, %arg10: memref<1x128x128xbf16, #tpu.memory_space<vmem>>, %arg11: memref<1x128x256xbf16, #tpu.memory_space<vmem>>, %arg12: memref<1x128x128xbf16, #tpu.memory_space<vmem>>, %arg13: memref<1x256x128xbf16, #tpu.memory_space<vmem>>, %arg14: memref<1x128x256xbf16, #tpu.memory_space<vmem>>, %arg15: memref<1x256x128xbf16, #tpu.memory_space<vmem>>, %arg16: memref<1x16x128xf32, #tpu.memory_space<vmem>>, %arg17: memref<16x128xf32, #tpu.memory_space<vmem>>) attributes {dimension_semantics = [#tpu.dimension_semantics<parallel>, #tpu.dimension_semantics<arbitrary>], iteration_bounds = array<i64: 2, 2>, scalar_prefetch = 0 : i64, scratch_operands = 1 : i64, tpu.core_type = #tpu.core_type<tc>, window_params = [{transform_indices = @transform_0, window_bounds = array<i64: 1, 16, 128>}, {transform_indices = @transform_1, window_bounds = array<i64: 1, 1, 16>}, {transform_indices = @transform_2, window_bounds = array<i64: 1, 26, 128>}, {transform_indices = @transform_3, window_bounds = array<i64: 1, 8, 128>}, {transform_indices = @transform_4, window_bounds = array<i64: 1, 2, 256>}, {transform_indices = @transform_5, window_bounds = array<i64: 1, 128, 256>}, {transform_indices = @transform_6, window_bounds = array<i64: 1, 256, 128>}, {transform_indices = @transform_7, window_bounds = array<i64: 1, 128, 384>}, {transform_indices = @transform_8, window_bounds = array<i64: 1, 128, 128>}, {transform_indices = @transform_9, window_bounds = array<i64: 1, 128, 256>}, {transform_indices = @transform_10, window_bounds = array<i64: 1, 128, 128>}, {transform_indices = @transform_11, window_bounds = array<i64: 1, 256, 128>}, {transform_indices = @transform_12, window_bounds = array<i64: 1, 128, 256>}, {transform_indices = @transform_13, window_bounds = array<i64: 1, 256, 128>}, {transform_indices = @transform_14, window_bounds = array<i64: 1, 16, 128>}]} {
    %c0_i32 = arith.constant 0 : i32
    %0 = arith.cmpi eq, %arg1, %c0_i32 : i32
    %1 = arith.extui %0 : i1 to i32
    %c0_i32_0 = arith.constant 0 : i32
    %2 = arith.cmpi ne, %1, %c0_i32_0 : i32
    scf.if %2 {
      %c0_133 = arith.constant 0 : index
      %c0_134 = arith.constant 0 : index
      %c0_135 = arith.constant 0 : index
      %547 = vector.load %arg2[%c0_133, %c0_134, %c0_135] : memref<1x16x128xf32, #tpu.memory_space<vmem>>, vector<1x16x128xf32>
      %548 = vector.shape_cast %547 : vector<1x16x128xf32> to vector<16x128xf32>
      %c0_136 = arith.constant 0 : index
      %c0_137 = arith.constant 0 : index
      %549 = vector.load %arg17[%c0_136, %c0_137] : memref<16x128xf32, #tpu.memory_space<vmem>>, vector<16x128xf32>
      tpu.vector_store %arg17[%c0_136, %c0_137], %548 {strides = array<i32>} : memref<16x128xf32, #tpu.memory_space<vmem>>, vector<16x128xf32>,
    } else {
    }
    %c0 = arith.constant 0 : index
    %c0_1 = arith.constant 0 : index
    %3 = vector.load %arg17[%c0, %c0_1] : memref<16x128xf32, #tpu.memory_space<vmem>>, vector<16x128xf32>
    %c0_2 = arith.constant 0 : index
    %c0_3 = arith.constant 0 : index
    %c0_4 = arith.constant 0 : index
    %4 = vector.load %arg4[%c0_2, %c0_3, %c0_4] : memref<1x26x128xf32, #tpu.memory_space<vmem>>, vector<1x26x128xf32>
    %5 = vector.shape_cast %4 : vector<1x26x128xf32> to vector<26x128xf32>
    %c0_5 = arith.constant 0 : index
    %c0_6 = arith.constant 0 : index
    %c0_7 = arith.constant 0 : index
    %6 = vector.load %arg5[%c0_5, %c0_6, %c0_7] : memref<1x8x128xf32, #tpu.memory_space<vmem>>, vector<1x8x128xf32>
    %7 = vector.shape_cast %6 : vector<1x8x128xf32> to vector<8x128xf32>
    %c0_8 = arith.constant 0 : index
    %c0_9 = arith.constant 0 : index
    %c0_10 = arith.constant 0 : index
    %8 = vector.load %arg6[%c0_8, %c0_9, %c0_10] : memref<1x2x256xf32, #tpu.memory_space<vmem>>, vector<1x2x256xf32>
    %9 = vector.shape_cast %8 : vector<1x2x256xf32> to vector<2x256xf32>
    %10 = tpu.iota {dimensions = array<i32: 0>} : vector<16x1xi32>
    %c-1_i32 = arith.constant -1 : i32
    %11 = vector.broadcast %c-1_i32 : i32 to vector<16x1xi32>
    %12 = arith.addi %10, %11 : vector<16x1xi32>
    %c0_i32_11 = arith.constant 0 : i32
    %13 = vector.broadcast %c0_i32_11 : i32 to vector<16x1xi32>
    %14 = arith.cmpi sge, %12, %13 : vector<16x1xi32>
    %c-1_i32_12 = arith.constant -1 : i32
    %15 = vector.broadcast %c-1_i32_12 : i32 to vector<16x1xi32>
    %16 = arith.addi %10, %15 : vector<16x1xi32>
    %c16_i32 = arith.constant 16 : i32
    %17 = vector.broadcast %c16_i32 : i32 to vector<16x1xi32>
    %18 = arith.cmpi slt, %16, %17 : vector<16x1xi32>
    %19 = arith.andi %14, %18 : vector<16x1xi1>
    %c1_i32 = arith.constant 1 : i32
    %20 = vector.broadcast %c1_i32 : i32 to vector<16x1xi32>
    %21 = arith.addi %10, %20 : vector<16x1xi32>
    %c0_i32_13 = arith.constant 0 : i32
    %22 = vector.broadcast %c0_i32_13 : i32 to vector<16x1xi32>
    %23 = arith.cmpi sge, %21, %22 : vector<16x1xi32>
    %c1_i32_14 = arith.constant 1 : i32
    %24 = vector.broadcast %c1_i32_14 : i32 to vector<16x1xi32>
    %25 = arith.addi %10, %24 : vector<16x1xi32>
    %c16_i32_15 = arith.constant 16 : i32
    %26 = vector.broadcast %c16_i32_15 : i32 to vector<16x1xi32>
    %27 = arith.cmpi slt, %25, %26 : vector<16x1xi32>
    %28 = arith.andi %23, %27 : vector<16x1xi1>
    %29 = vector.extract_strided_slice %5 {offsets = [0, 0], sizes = [1, 128], strides = [1, 1]} : vector<26x128xf32> to vector<1x128xf32>
    %30 = vector.shape_cast %29 : vector<1x128xf32> to vector<128xf32>
    %31 = vector.extract_strided_slice %5 {offsets = [1, 0], sizes = [1, 128], strides = [1, 1]} : vector<26x128xf32> to vector<1x128xf32>
    %32 = vector.shape_cast %31 : vector<1x128xf32> to vector<128xf32>
    %cst = arith.constant dense<0.000000e+00> : vector<16xf32>
    %33 = vector.multi_reduction <add>, %3, %cst [1] : vector<16x128xf32> to vector<16xf32>
    %34 = vector.shape_cast %33 : vector<16xf32> to vector<16x1xf32>
    %cst_16 = arith.constant 1.280000e+02 : f32
    %35 = vector.broadcast %cst_16 : f32 to vector<16x1xf32>
    %36 = arith.divf %34, %35 : vector<16x1xf32>
    %37 = vector.broadcast %36 : vector<16x1xf32> to vector<16x128xf32>
    %38 = arith.subf %3, %37 : vector<16x128xf32>
    %39 = arith.mulf %38, %38 : vector<16x128xf32>
    %cst_17 = arith.constant dense<0.000000e+00> : vector<16xf32>
    %40 = vector.multi_reduction <add>, %39, %cst_17 [1] : vector<16x128xf32> to vector<16xf32>
    %41 = vector.shape_cast %40 : vector<16xf32> to vector<16x1xf32>
    %cst_18 = arith.constant 1.280000e+02 : f32
    %42 = vector.broadcast %cst_18 : f32 to vector<16x1xf32>
    %43 = arith.divf %41, %42 : vector<16x1xf32>
    %44 = vector.broadcast %36 : vector<16x1xf32> to vector<16x128xf32>
    %45 = arith.subf %3, %44 : vector<16x128xf32>
    %cst_19 = arith.constant 9.99999974E-6 : f32
    %46 = vector.broadcast %cst_19 : f32 to vector<16x1xf32>
    %47 = arith.addf %43, %46 : vector<16x1xf32>
    %48 = math.rsqrt %47 : vector<16x1xf32>
    %49 = vector.broadcast %48 : vector<16x1xf32> to vector<16x128xf32>
    %50 = arith.mulf %45, %49 : vector<16x128xf32>
    %51 = vector.shape_cast %30 : vector<128xf32> to vector<1x128xf32>
    %52 = vector.broadcast %51 : vector<1x128xf32> to vector<16x128xf32>
    %53 = arith.mulf %50, %52 : vector<16x128xf32>
    %54 = vector.shape_cast %32 : vector<128xf32> to vector<1x128xf32>
    %55 = vector.broadcast %54 : vector<1x128xf32> to vector<16x128xf32>
    %56 = arith.addf %53, %55 : vector<16x128xf32>
    %c0_20 = arith.constant 0 : index
    %c0_21 = arith.constant 0 : index
    %c0_22 = arith.constant 0 : index
    %57 = vector.load %arg7[%c0_20, %c0_21, %c0_22] : memref<1x128x256xbf16, #tpu.memory_space<vmem>>, vector<1x128x256xbf16>
    %58 = vector.shape_cast %57 : vector<1x128x256xbf16> to vector<128x256xbf16>
    %59 = arith.truncf %56 : vector<16x128xf32> to vector<16x128xbf16>
    %cst_23 = arith.constant dense<0.000000e+00> : vector<16x256xf32>
    %60 = tpu.matmul %59, %58, %cst_23 {dimension_numbers = #tpu.dot_dimension_numbers<[1], [0], [0], [1], [0, 0, 1, 1], [], []>} : vector<16x128xbf16>, vector<128x256xbf16>, vector<16x256xf32> -> vector<16x256xf32>
    %61 = vector.extract_strided_slice %9 {offsets = [0, 0], sizes = [1, 256], strides = [1, 1]} : vector<2x256xf32> to vector<1x256xf32>
    %62 = vector.shape_cast %61 : vector<1x256xf32> to vector<256xf32>
    %63 = vector.shape_cast %62 : vector<256xf32> to vector<1x256xf32>
    %64 = vector.broadcast %63 : vector<1x256xf32> to vector<16x256xf32>
    %65 = arith.addf %60, %64 : vector<16x256xf32>
    %66 = arith.negf %65 : vector<16x256xf32>
    %67 = math.exp %66 : vector<16x256xf32>
    %cst_24 = arith.constant 1.000000e+00 : f32
    %68 = vector.broadcast %cst_24 : f32 to vector<16x256xf32>
    %69 = arith.addf %68, %67 : vector<16x256xf32>
    %70 = arith.divf %68, %69 : vector<16x256xf32>
    %71 = arith.mulf %65, %70 : vector<16x256xf32>
    %c0_25 = arith.constant 0 : index
    %c0_26 = arith.constant 0 : index
    %c0_27 = arith.constant 0 : index
    %72 = vector.load %arg8[%c0_25, %c0_26, %c0_27] : memref<1x256x128xbf16, #tpu.memory_space<vmem>>, vector<1x256x128xbf16>
    %73 = vector.shape_cast %72 : vector<1x256x128xbf16> to vector<256x128xbf16>
    %74 = arith.truncf %71 : vector<16x256xf32> to vector<16x256xbf16>
    %cst_28 = arith.constant dense<0.000000e+00> : vector<16x128xf32>
    %75 = tpu.matmul %74, %73, %cst_28 {dimension_numbers = #tpu.dot_dimension_numbers<[1], [0], [0], [1], [0, 0, 1, 1], [], []>} : vector<16x256xbf16>, vector<256x128xbf16>, vector<16x128xf32> -> vector<16x128xf32>
    %76 = vector.extract_strided_slice %5 {offsets = [2, 0], sizes = [1, 128], strides = [1, 1]} : vector<26x128xf32> to vector<1x128xf32>
    %77 = vector.shape_cast %76 : vector<1x128xf32> to vector<128xf32>
    %78 = vector.shape_cast %77 : vector<128xf32> to vector<1x128xf32>
    %79 = vector.broadcast %78 : vector<1x128xf32> to vector<16x128xf32>
    %80 = arith.addf %75, %79 : vector<16x128xf32>
    %cst_29 = arith.constant 5.000000e-01 : f32
    %81 = vector.broadcast %cst_29 : f32 to vector<16x128xf32>
    %82 = arith.mulf %81, %80 : vector<16x128xf32>
    %83 = arith.addf %82, %3 : vector<16x128xf32>
    %84 = vector.extract_strided_slice %5 {offsets = [3, 0], sizes = [1, 128], strides = [1, 1]} : vector<26x128xf32> to vector<1x128xf32>
    %85 = vector.shape_cast %84 : vector<1x128xf32> to vector<128xf32>
    %86 = vector.extract_strided_slice %5 {offsets = [4, 0], sizes = [1, 128], strides = [1, 1]} : vector<26x128xf32> to vector<1x128xf32>
    %87 = vector.shape_cast %86 : vector<1x128xf32> to vector<128xf32>
    %cst_30 = arith.constant dense<0.000000e+00> : vector<16xf32>
    %88 = vector.multi_reduction <add>, %83, %cst_30 [1] : vector<16x128xf32> to vector<16xf32>
    %89 = vector.shape_cast %88 : vector<16xf32> to vector<16x1xf32>
    %cst_31 = arith.constant 1.280000e+02 : f32
    %90 = vector.broadcast %cst_31 : f32 to vector<16x1xf32>
    %91 = arith.divf %89, %90 : vector<16x1xf32>
    %92 = vector.broadcast %91 : vector<16x1xf32> to vector<16x128xf32>
    %93 = arith.subf %83, %92 : vector<16x128xf32>
    %94 = arith.mulf %93, %93 : vector<16x128xf32>
    %cst_32 = arith.constant dense<0.000000e+00> : vector<16xf32>
    %95 = vector.multi_reduction <add>, %94, %cst_32 [1] : vector<16x128xf32> to vector<16xf32>
    %96 = vector.shape_cast %95 : vector<16xf32> to vector<16x1xf32>
    %cst_33 = arith.constant 1.280000e+02 : f32
    %97 = vector.broadcast %cst_33 : f32 to vector<16x1xf32>
    %98 = arith.divf %96, %97 : vector<16x1xf32>
    %99 = vector.broadcast %91 : vector<16x1xf32> to vector<16x128xf32>
    %100 = arith.subf %83, %99 : vector<16x128xf32>
    %cst_34 = arith.constant 9.99999974E-6 : f32
    %101 = vector.broadcast %cst_34 : f32 to vector<16x1xf32>
    %102 = arith.addf %98, %101 : vector<16x1xf32>
    %103 = math.rsqrt %102 : vector<16x1xf32>
    %104 = vector.broadcast %103 : vector<16x1xf32> to vector<16x128xf32>
    %105 = arith.mulf %100, %104 : vector<16x128xf32>
    %106 = vector.shape_cast %85 : vector<128xf32> to vector<1x128xf32>
    %107 = vector.broadcast %106 : vector<1x128xf32> to vector<16x128xf32>
    %108 = arith.mulf %105, %107 : vector<16x128xf32>
    %109 = vector.shape_cast %87 : vector<128xf32> to vector<1x128xf32>
    %110 = vector.broadcast %109 : vector<1x128xf32> to vector<16x128xf32>
    %111 = arith.addf %108, %110 : vector<16x128xf32>
    %c0_35 = arith.constant 0 : index
    %c0_36 = arith.constant 0 : index
    %c0_37 = arith.constant 0 : index
    %112 = vector.load %arg9[%c0_35, %c0_36, %c0_37] : memref<1x128x384xbf16, #tpu.memory_space<vmem>>, vector<1x128x384xbf16>
    %113 = vector.shape_cast %112 : vector<1x128x384xbf16> to vector<128x384xbf16>
    %114 = arith.truncf %111 : vector<16x128xf32> to vector<16x128xbf16>
    %cst_38 = arith.constant dense<0.000000e+00> : vector<16x384xf32>
    %115 = tpu.matmul %114, %113, %cst_38 {dimension_numbers = #tpu.dot_dimension_numbers<[1], [0], [0], [1], [0, 0, 1, 1], [], []>} : vector<16x128xbf16>, vector<128x384xbf16>, vector<16x384xf32> -> vector<16x384xf32>
    %116 = vector.extract_strided_slice %115 {offsets = [0, 0], sizes = [16, 128], strides = [1, 1]} : vector<16x384xf32> to vector<16x128xf32>
    %117 = vector.extract_strided_slice %5 {offsets = [5, 0], sizes = [1, 128], strides = [1, 1]} : vector<26x128xf32> to vector<1x128xf32>
    %118 = vector.shape_cast %117 : vector<1x128xf32> to vector<128xf32>
    %119 = vector.shape_cast %118 : vector<128xf32> to vector<1x128xf32>
    %120 = vector.broadcast %119 : vector<1x128xf32> to vector<16x128xf32>
    %121 = arith.addf %116, %120 : vector<16x128xf32>
    %122 = vector.extract_strided_slice %115 {offsets = [0, 128], sizes = [16, 128], strides = [1, 1]} : vector<16x384xf32> to vector<16x128xf32>
    %123 = vector.extract_strided_slice %5 {offsets = [6, 0], sizes = [1, 128], strides = [1, 1]} : vector<26x128xf32> to vector<1x128xf32>
    %124 = vector.shape_cast %123 : vector<1x128xf32> to vector<128xf32>
    %125 = vector.shape_cast %124 : vector<128xf32> to vector<1x128xf32>
    %126 = vector.broadcast %125 : vector<1x128xf32> to vector<16x128xf32>
    %127 = arith.addf %122, %126 : vector<16x128xf32>
    %128 = vector.extract_strided_slice %115 {offsets = [0, 256], sizes = [16, 128], strides = [1, 1]} : vector<16x384xf32> to vector<16x128xf32>
    %129 = vector.extract_strided_slice %5 {offsets = [7, 0], sizes = [1, 128], strides = [1, 1]} : vector<26x128xf32> to vector<1x128xf32>
    %130 = vector.shape_cast %129 : vector<1x128xf32> to vector<128xf32>
    %131 = vector.shape_cast %130 : vector<128xf32> to vector<1x128xf32>
    %132 = vector.broadcast %131 : vector<1x128xf32> to vector<16x128xf32>
    %133 = arith.addf %128, %132 : vector<16x128xf32>
    %c0_39 = arith.constant 0 : index
    %c0_40 = arith.constant 0 : index
    %c0_41 = arith.constant 0 : index
    %134 = vector.load %arg3[%c0_39, %c0_40, %c0_41] : memref<1x1x16xf32, #tpu.memory_space<vmem>>, vector<1x1x16xf32>
    %135 = vector.shape_cast %134 : vector<1x1x16xf32> to vector<1x16xf32>
    %cst_42 = arith.constant 1.000000e+00 : f32
    %136 = vector.broadcast %cst_42 : f32 to vector<1x16xf32>
    %137 = arith.subf %136, %135 : vector<1x16xf32>
    %cst_43 = arith.constant -1.000000e+30 : f32
    %138 = vector.broadcast %cst_43 : f32 to vector<1x16xf32>
    %139 = arith.mulf %137, %138 : vector<1x16xf32>
    %140 = vector.extract_strided_slice %121 {offsets = [0, 0], sizes = [16, 32], strides = [1, 1]} : vector<16x128xf32> to vector<16x32xf32>
    %141 = vector.extract_strided_slice %127 {offsets = [0, 0], sizes = [16, 32], strides = [1, 1]} : vector<16x128xf32> to vector<16x32xf32>
    %142 = arith.truncf %140 : vector<16x32xf32> to vector<16x32xbf16>
    %143 = arith.truncf %141 : vector<16x32xf32> to vector<16x32xbf16>
    %cst_44 = arith.constant dense<0.000000e+00> : vector<16x16xf32>
    %144 = tpu.matmul %142, %143, %cst_44 {dimension_numbers = #tpu.dot_dimension_numbers<[1], [1], [0], [0], [0, 0, 1, 0], [], []>} : vector<16x32xbf16>, vector<16x32xbf16>, vector<16x16xf32> -> vector<16x16xf32>
    %145 = vector.broadcast %139 : vector<1x16xf32> to vector<16x16xf32>
    %146 = arith.addf %144, %145 : vector<16x16xf32>
    %cst_45 = arith.constant dense<0xFF800000> : vector<16xf32>
    %147 = vector.multi_reduction <maximumf>, %146, %cst_45 [1] : vector<16x16xf32> to vector<16xf32>
    %148 = vector.shape_cast %147 : vector<16xf32> to vector<16x1xf32>
    %149 = vector.broadcast %148 : vector<16x1xf32> to vector<16x16xf32>
    %150 = arith.subf %146, %149 : vector<16x16xf32>
    %151 = math.exp %150 : vector<16x16xf32>
    %cst_46 = arith.constant dense<0.000000e+00> : vector<16xf32>
    %152 = vector.multi_reduction <add>, %151, %cst_46 [1] : vector<16x16xf32> to vector<16xf32>
    %153 = vector.shape_cast %152 : vector<16xf32> to vector<16x1xf32>
    %154 = tpu.reciprocal %153 {approx = true} : vector<16x1xf32> -> vector<16x1xf32>
    %155 = vector.broadcast %154 : vector<16x1xf32> to vector<16x16xf32>
    %156 = arith.mulf %151, %155 : vector<16x16xf32>
    %157 = vector.extract_strided_slice %133 {offsets = [0, 0], sizes = [16, 32], strides = [1, 1]} : vector<16x128xf32> to vector<16x32xf32>
    %158 = arith.truncf %156 : vector<16x16xf32> to vector<16x16xbf16>
    %159 = arith.truncf %157 : vector<16x32xf32> to vector<16x32xbf16>
    %cst_47 = arith.constant dense<0.000000e+00> : vector<16x32xf32>
    %160 = tpu.matmul %158, %159, %cst_47 {dimension_numbers = #tpu.dot_dimension_numbers<[1], [0], [0], [1], [0, 0, 1, 1], [], []>} : vector<16x16xbf16>, vector<16x32xbf16>, vector<16x32xf32> -> vector<16x32xf32>
    %161 = vector.extract_strided_slice %121 {offsets = [0, 32], sizes = [16, 32], strides = [1, 1]} : vector<16x128xf32> to vector<16x32xf32>
    %162 = vector.extract_strided_slice %127 {offsets = [0, 32], sizes = [16, 32], strides = [1, 1]} : vector<16x128xf32> to vector<16x32xf32>
    %163 = arith.truncf %161 : vector<16x32xf32> to vector<16x32xbf16>
    %164 = arith.truncf %162 : vector<16x32xf32> to vector<16x32xbf16>
    %cst_48 = arith.constant dense<0.000000e+00> : vector<16x16xf32>
    %165 = tpu.matmul %163, %164, %cst_48 {dimension_numbers = #tpu.dot_dimension_numbers<[1], [1], [0], [0], [0, 0, 1, 0], [], []>} : vector<16x32xbf16>, vector<16x32xbf16>, vector<16x16xf32> -> vector<16x16xf32>
    %166 = vector.broadcast %139 : vector<1x16xf32> to vector<16x16xf32>
    %167 = arith.addf %165, %166 : vector<16x16xf32>
    %cst_49 = arith.constant dense<0xFF800000> : vector<16xf32>
    %168 = vector.multi_reduction <maximumf>, %167, %cst_49 [1] : vector<16x16xf32> to vector<16xf32>
    %169 = vector.shape_cast %168 : vector<16xf32> to vector<16x1xf32>
    %170 = vector.broadcast %169 : vector<16x1xf32> to vector<16x16xf32>
    %171 = arith.subf %167, %170 : vector<16x16xf32>
    %172 = math.exp %171 : vector<16x16xf32>
    %cst_50 = arith.constant dense<0.000000e+00> : vector<16xf32>
    %173 = vector.multi_reduction <add>, %172, %cst_50 [1] : vector<16x16xf32> to vector<16xf32>
    %174 = vector.shape_cast %173 : vector<16xf32> to vector<16x1xf32>
    %175 = tpu.reciprocal %174 {approx = true} : vector<16x1xf32> -> vector<16x1xf32>
    %176 = vector.broadcast %175 : vector<16x1xf32> to vector<16x16xf32>
    %177 = arith.mulf %172, %176 : vector<16x16xf32>
    %178 = vector.extract_strided_slice %133 {offsets = [0, 32], sizes = [16, 32], strides = [1, 1]} : vector<16x128xf32> to vector<16x32xf32>
    %179 = arith.truncf %177 : vector<16x16xf32> to vector<16x16xbf16>
    %180 = arith.truncf %178 : vector<16x32xf32> to vector<16x32xbf16>
    %cst_51 = arith.constant dense<0.000000e+00> : vector<16x32xf32>
    %181 = tpu.matmul %179, %180, %cst_51 {dimension_numbers = #tpu.dot_dimension_numbers<[1], [0], [0], [1], [0, 0, 1, 1], [], []>} : vector<16x16xbf16>, vector<16x32xbf16>, vector<16x32xf32> -> vector<16x32xf32>
    %182 = vector.extract_strided_slice %121 {offsets = [0, 64], sizes = [16, 32], strides = [1, 1]} : vector<16x128xf32> to vector<16x32xf32>
    %183 = vector.extract_strided_slice %127 {offsets = [0, 64], sizes = [16, 32], strides = [1, 1]} : vector<16x128xf32> to vector<16x32xf32>
    %184 = arith.truncf %182 : vector<16x32xf32> to vector<16x32xbf16>
    %185 = arith.truncf %183 : vector<16x32xf32> to vector<16x32xbf16>
    %cst_52 = arith.constant dense<0.000000e+00> : vector<16x16xf32>
    %186 = tpu.matmul %184, %185, %cst_52 {dimension_numbers = #tpu.dot_dimension_numbers<[1], [1], [0], [0], [0, 0, 1, 0], [], []>} : vector<16x32xbf16>, vector<16x32xbf16>, vector<16x16xf32> -> vector<16x16xf32>
    %187 = vector.broadcast %139 : vector<1x16xf32> to vector<16x16xf32>
    %188 = arith.addf %186, %187 : vector<16x16xf32>
    %cst_53 = arith.constant dense<0xFF800000> : vector<16xf32>
    %189 = vector.multi_reduction <maximumf>, %188, %cst_53 [1] : vector<16x16xf32> to vector<16xf32>
    %190 = vector.shape_cast %189 : vector<16xf32> to vector<16x1xf32>
    %191 = vector.broadcast %190 : vector<16x1xf32> to vector<16x16xf32>
    %192 = arith.subf %188, %191 : vector<16x16xf32>
    %193 = math.exp %192 : vector<16x16xf32>
    %cst_54 = arith.constant dense<0.000000e+00> : vector<16xf32>
    %194 = vector.multi_reduction <add>, %193, %cst_54 [1] : vector<16x16xf32> to vector<16xf32>
    %195 = vector.shape_cast %194 : vector<16xf32> to vector<16x1xf32>
    %196 = tpu.reciprocal %195 {approx = true} : vector<16x1xf32> -> vector<16x1xf32>
    %197 = vector.broadcast %196 : vector<16x1xf32> to vector<16x16xf32>
    %198 = arith.mulf %193, %197 : vector<16x16xf32>
    %199 = vector.extract_strided_slice %133 {offsets = [0, 64], sizes = [16, 32], strides = [1, 1]} : vector<16x128xf32> to vector<16x32xf32>
    %200 = arith.truncf %198 : vector<16x16xf32> to vector<16x16xbf16>
    %201 = arith.truncf %199 : vector<16x32xf32> to vector<16x32xbf16>
    %cst_55 = arith.constant dense<0.000000e+00> : vector<16x32xf32>
    %202 = tpu.matmul %200, %201, %cst_55 {dimension_numbers = #tpu.dot_dimension_numbers<[1], [0], [0], [1], [0, 0, 1, 1], [], []>} : vector<16x16xbf16>, vector<16x32xbf16>, vector<16x32xf32> -> vector<16x32xf32>
    %203 = vector.extract_strided_slice %121 {offsets = [0, 96], sizes = [16, 32], strides = [1, 1]} : vector<16x128xf32> to vector<16x32xf32>
    %204 = vector.extract_strided_slice %127 {offsets = [0, 96], sizes = [16, 32], strides = [1, 1]} : vector<16x128xf32> to vector<16x32xf32>
    %205 = arith.truncf %203 : vector<16x32xf32> to vector<16x32xbf16>
    %206 = arith.truncf %204 : vector<16x32xf32> to vector<16x32xbf16>
    %cst_56 = arith.constant dense<0.000000e+00> : vector<16x16xf32>
    %207 = tpu.matmul %205, %206, %cst_56 {dimension_numbers = #tpu.dot_dimension_numbers<[1], [1], [0], [0], [0, 0, 1, 0], [], []>} : vector<16x32xbf16>, vector<16x32xbf16>, vector<16x16xf32> -> vector<16x16xf32>
    %208 = vector.broadcast %139 : vector<1x16xf32> to vector<16x16xf32>
    %209 = arith.addf %207, %208 : vector<16x16xf32>
    %cst_57 = arith.constant dense<0xFF800000> : vector<16xf32>
    %210 = vector.multi_reduction <maximumf>, %209, %cst_57 [1] : vector<16x16xf32> to vector<16xf32>
    %211 = vector.shape_cast %210 : vector<16xf32> to vector<16x1xf32>
    %212 = vector.broadcast %211 : vector<16x1xf32> to vector<16x16xf32>
    %213 = arith.subf %209, %212 : vector<16x16xf32>
    %214 = math.exp %213 : vector<16x16xf32>
    %cst_58 = arith.constant dense<0.000000e+00> : vector<16xf32>
    %215 = vector.multi_reduction <add>, %214, %cst_58 [1] : vector<16x16xf32> to vector<16xf32>
    %216 = vector.shape_cast %215 : vector<16xf32> to vector<16x1xf32>
    %217 = tpu.reciprocal %216 {approx = true} : vector<16x1xf32> -> vector<16x1xf32>
    %218 = vector.broadcast %217 : vector<16x1xf32> to vector<16x16xf32>
    %219 = arith.mulf %214, %218 : vector<16x16xf32>
    %220 = vector.extract_strided_slice %133 {offsets = [0, 96], sizes = [16, 32], strides = [1, 1]} : vector<16x128xf32> to vector<16x32xf32>
    %221 = arith.truncf %219 : vector<16x16xf32> to vector<16x16xbf16>
    %222 = arith.truncf %220 : vector<16x32xf32> to vector<16x32xbf16>
    %cst_59 = arith.constant dense<0.000000e+00> : vector<16x32xf32>
    %223 = tpu.matmul %221, %222, %cst_59 {dimension_numbers = #tpu.dot_dimension_numbers<[1], [0], [0], [1], [0, 0, 1, 1], [], []>} : vector<16x16xbf16>, vector<16x32xbf16>, vector<16x32xf32> -> vector<16x32xf32>
    %224 = tpu.concatenate %160, %181, %202, %223 in 1 : vector<16x32xf32>, vector<16x32xf32>, vector<16x32xf32>, vector<16x32xf32> -> vector<16x128xf32>
    %c0_60 = arith.constant 0 : index
    %c0_61 = arith.constant 0 : index
    %c0_62 = arith.constant 0 : index
    %225 = vector.load %arg10[%c0_60, %c0_61, %c0_62] : memref<1x128x128xbf16, #tpu.memory_space<vmem>>, vector<1x128x128xbf16>
    %226 = vector.shape_cast %225 : vector<1x128x128xbf16> to vector<128x128xbf16>
    %227 = arith.truncf %224 : vector<16x128xf32> to vector<16x128xbf16>
    %cst_63 = arith.constant dense<0.000000e+00> : vector<16x128xf32>
    %228 = tpu.matmul %227, %226, %cst_63 {dimension_numbers = #tpu.dot_dimension_numbers<[1], [0], [0], [1], [0, 0, 1, 1], [], []>} : vector<16x128xbf16>, vector<128x128xbf16>, vector<16x128xf32> -> vector<16x128xf32>
    %229 = vector.extract_strided_slice %5 {offsets = [8, 0], sizes = [1, 128], strides = [1, 1]} : vector<26x128xf32> to vector<1x128xf32>
    %230 = vector.shape_cast %229 : vector<1x128xf32> to vector<128xf32>
    %231 = vector.shape_cast %230 : vector<128xf32> to vector<1x128xf32>
    %232 = vector.broadcast %231 : vector<1x128xf32> to vector<16x128xf32>
    %233 = arith.addf %228, %232 : vector<16x128xf32>
    %234 = vector.extract_strided_slice %5 {offsets = [9, 0], sizes = [1, 128], strides = [1, 1]} : vector<26x128xf32> to vector<1x128xf32>
    %235 = vector.shape_cast %234 : vector<1x128xf32> to vector<128xf32>
    %236 = vector.extract_strided_slice %5 {offsets = [10, 0], sizes = [1, 128], strides = [1, 1]} : vector<26x128xf32> to vector<1x128xf32>
    %237 = vector.shape_cast %236 : vector<1x128xf32> to vector<128xf32>
    %cst_64 = arith.constant dense<0.000000e+00> : vector<16xf32>
    %238 = vector.multi_reduction <add>, %83, %cst_64 [1] : vector<16x128xf32> to vector<16xf32>
    %239 = vector.shape_cast %238 : vector<16xf32> to vector<16x1xf32>
    %cst_65 = arith.constant 1.280000e+02 : f32
    %240 = vector.broadcast %cst_65 : f32 to vector<16x1xf32>
    %241 = arith.divf %239, %240 : vector<16x1xf32>
    %242 = vector.broadcast %241 : vector<16x1xf32> to vector<16x128xf32>
    %243 = arith.subf %83, %242 : vector<16x128xf32>
    %244 = arith.mulf %243, %243 : vector<16x128xf32>
    %cst_66 = arith.constant dense<0.000000e+00> : vector<16xf32>
    %245 = vector.multi_reduction <add>, %244, %cst_66 [1] : vector<16x128xf32> to vector<16xf32>
    %246 = vector.shape_cast %245 : vector<16xf32> to vector<16x1xf32>
    %cst_67 = arith.constant 1.280000e+02 : f32
    %247 = vector.broadcast %cst_67 : f32 to vector<16x1xf32>
    %248 = arith.divf %246, %247 : vector<16x1xf32>
    %249 = vector.broadcast %241 : vector<16x1xf32> to vector<16x128xf32>
    %250 = arith.subf %83, %249 : vector<16x128xf32>
    %cst_68 = arith.constant 9.99999974E-6 : f32
    %251 = vector.broadcast %cst_68 : f32 to vector<16x1xf32>
    %252 = arith.addf %248, %251 : vector<16x1xf32>
    %253 = math.rsqrt %252 : vector<16x1xf32>
    %254 = vector.broadcast %253 : vector<16x1xf32> to vector<16x128xf32>
    %255 = arith.mulf %250, %254 : vector<16x128xf32>
    %256 = vector.shape_cast %235 : vector<128xf32> to vector<1x128xf32>
    %257 = vector.broadcast %256 : vector<1x128xf32> to vector<16x128xf32>
    %258 = arith.mulf %255, %257 : vector<16x128xf32>
    %259 = vector.shape_cast %237 : vector<128xf32> to vector<1x128xf32>
    %260 = vector.broadcast %259 : vector<1x128xf32> to vector<16x128xf32>
    %261 = arith.addf %258, %260 : vector<16x128xf32>
    %c0_69 = arith.constant 0 : index
    %c0_70 = arith.constant 0 : index
    %c0_71 = arith.constant 0 : index
    %262 = vector.load %arg11[%c0_69, %c0_70, %c0_71] : memref<1x128x256xbf16, #tpu.memory_space<vmem>>, vector<1x128x256xbf16>
    %263 = vector.shape_cast %262 : vector<1x128x256xbf16> to vector<128x256xbf16>
    %264 = arith.truncf %261 : vector<16x128xf32> to vector<16x128xbf16>
    %cst_72 = arith.constant dense<0.000000e+00> : vector<16x256xf32>
    %265 = tpu.matmul %264, %263, %cst_72 {dimension_numbers = #tpu.dot_dimension_numbers<[1], [0], [0], [1], [0, 0, 1, 1], [], []>} : vector<16x128xbf16>, vector<128x256xbf16>, vector<16x256xf32> -> vector<16x256xf32>
    %266 = vector.extract_strided_slice %265 {offsets = [0, 0], sizes = [16, 128], strides = [1, 1]} : vector<16x256xf32> to vector<16x128xf32>
    %267 = vector.extract_strided_slice %7 {offsets = [0, 0], sizes = [1, 128], strides = [1, 1]} : vector<8x128xf32> to vector<1x128xf32>
    %268 = vector.shape_cast %267 : vector<1x128xf32> to vector<128xf32>
    %269 = vector.shape_cast %268 : vector<128xf32> to vector<1x128xf32>
    %270 = vector.broadcast %269 : vector<1x128xf32> to vector<16x128xf32>
    %271 = arith.addf %266, %270 : vector<16x128xf32>
    %cst_73 = arith.constant 5.000000e-01 : f32
    %272 = vector.broadcast %cst_73 : f32 to vector<16x128xf32>
    %273 = arith.mulf %272, %271 : vector<16x128xf32>
    %cst_74 = arith.constant 4.471500e-02 : f32
    %274 = vector.broadcast %cst_74 : f32 to vector<16x128xf32>
    %275 = arith.mulf %274, %271 : vector<16x128xf32>
    %276 = arith.mulf %275, %271 : vector<16x128xf32>
    %277 = arith.mulf %276, %271 : vector<16x128xf32>
    %278 = arith.addf %271, %277 : vector<16x128xf32>
    %cst_75 = arith.constant 0.797884583 : f32
    %279 = vector.broadcast %cst_75 : f32 to vector<16x128xf32>
    %280 = arith.mulf %279, %278 : vector<16x128xf32>
    %281 = math.tanh %280 : vector<16x128xf32>
    %cst_76 = arith.constant 1.000000e+00 : f32
    %282 = vector.broadcast %cst_76 : f32 to vector<16x128xf32>
    %283 = arith.addf %282, %281 : vector<16x128xf32>
    %284 = arith.mulf %273, %283 : vector<16x128xf32>
    %285 = vector.extract_strided_slice %265 {offsets = [0, 128], sizes = [16, 128], strides = [1, 1]} : vector<16x256xf32> to vector<16x128xf32>
    %286 = vector.extract_strided_slice %7 {offsets = [1, 0], sizes = [1, 128], strides = [1, 1]} : vector<8x128xf32> to vector<1x128xf32>
    %287 = vector.shape_cast %286 : vector<1x128xf32> to vector<128xf32>
    %288 = vector.shape_cast %287 : vector<128xf32> to vector<1x128xf32>
    %289 = vector.broadcast %288 : vector<1x128xf32> to vector<16x128xf32>
    %290 = arith.addf %285, %289 : vector<16x128xf32>
    %cst_77 = arith.constant 5.000000e-01 : f32
    %291 = vector.broadcast %cst_77 : f32 to vector<16x128xf32>
    %292 = arith.mulf %291, %290 : vector<16x128xf32>
    %cst_78 = arith.constant 4.471500e-02 : f32
    %293 = vector.broadcast %cst_78 : f32 to vector<16x128xf32>
    %294 = arith.mulf %293, %290 : vector<16x128xf32>
    %295 = arith.mulf %294, %290 : vector<16x128xf32>
    %296 = arith.mulf %295, %290 : vector<16x128xf32>
    %297 = arith.addf %290, %296 : vector<16x128xf32>
    %cst_79 = arith.constant 0.797884583 : f32
    %298 = vector.broadcast %cst_79 : f32 to vector<16x128xf32>
    %299 = arith.mulf %298, %297 : vector<16x128xf32>
    %300 = math.tanh %299 : vector<16x128xf32>
    %cst_80 = arith.constant 1.000000e+00 : f32
    %301 = vector.broadcast %cst_80 : f32 to vector<16x128xf32>
    %302 = arith.addf %301, %300 : vector<16x128xf32>
    %303 = arith.mulf %292, %302 : vector<16x128xf32>
    %304 = vector.extract_strided_slice %7 {offsets = [2, 0], sizes = [1, 128], strides = [1, 1]} : vector<8x128xf32> to vector<1x128xf32>
    %305 = vector.shape_cast %304 : vector<1x128xf32> to vector<128xf32>
    %306 = vector.extract_strided_slice %7 {offsets = [3, 0], sizes = [1, 128], strides = [1, 1]} : vector<8x128xf32> to vector<1x128xf32>
    %307 = vector.shape_cast %306 : vector<1x128xf32> to vector<128xf32>
    %cst_81 = arith.constant dense<0.000000e+00> : vector<16xf32>
    %308 = vector.multi_reduction <add>, %303, %cst_81 [1] : vector<16x128xf32> to vector<16xf32>
    %309 = vector.shape_cast %308 : vector<16xf32> to vector<16x1xf32>
    %cst_82 = arith.constant 1.280000e+02 : f32
    %310 = vector.broadcast %cst_82 : f32 to vector<16x1xf32>
    %311 = arith.divf %309, %310 : vector<16x1xf32>
    %312 = vector.broadcast %311 : vector<16x1xf32> to vector<16x128xf32>
    %313 = arith.subf %303, %312 : vector<16x128xf32>
    %314 = arith.mulf %313, %313 : vector<16x128xf32>
    %cst_83 = arith.constant dense<0.000000e+00> : vector<16xf32>
    %315 = vector.multi_reduction <add>, %314, %cst_83 [1] : vector<16x128xf32> to vector<16xf32>
    %316 = vector.shape_cast %315 : vector<16xf32> to vector<16x1xf32>
    %cst_84 = arith.constant 1.280000e+02 : f32
    %317 = vector.broadcast %cst_84 : f32 to vector<16x1xf32>
    %318 = arith.divf %316, %317 : vector<16x1xf32>
    %319 = vector.broadcast %311 : vector<16x1xf32> to vector<16x128xf32>
    %320 = arith.subf %303, %319 : vector<16x128xf32>
    %cst_85 = arith.constant 9.99999974E-6 : f32
    %321 = vector.broadcast %cst_85 : f32 to vector<16x1xf32>
    %322 = arith.addf %318, %321 : vector<16x1xf32>
    %323 = math.rsqrt %322 : vector<16x1xf32>
    %324 = vector.broadcast %323 : vector<16x1xf32> to vector<16x128xf32>
    %325 = arith.mulf %320, %324 : vector<16x128xf32>
    %326 = vector.shape_cast %305 : vector<128xf32> to vector<1x128xf32>
    %327 = vector.broadcast %326 : vector<1x128xf32> to vector<16x128xf32>
    %328 = arith.mulf %325, %327 : vector<16x128xf32>
    %329 = vector.shape_cast %307 : vector<128xf32> to vector<1x128xf32>
    %330 = vector.broadcast %329 : vector<1x128xf32> to vector<16x128xf32>
    %331 = arith.addf %328, %330 : vector<16x128xf32>
    %332 = vector.extract_strided_slice %7 {offsets = [4, 0], sizes = [3, 128], strides = [1, 1]} : vector<8x128xf32> to vector<3x128xf32>
    %333 = vector.extract_strided_slice %7 {offsets = [7, 0], sizes = [1, 128], strides = [1, 1]} : vector<8x128xf32> to vector<1x128xf32>
    %334 = vector.shape_cast %333 : vector<1x128xf32> to vector<128xf32>
    %cst_86 = arith.constant 0.000000e+00 : f32
    %335 = vector.broadcast %cst_86 : f32 to vector<16x128xf32>
    %336 = vector.shape_cast %334 : vector<128xf32> to vector<1x128xf32>
    %337 = vector.broadcast %336 : vector<1x128xf32> to vector<16x128xf32>
    %338 = arith.addf %335, %337 : vector<16x128xf32>
    %c1_i32_87 = arith.constant 1 : i32
    %339 = tpu.dynamic_rotate %331 by %c1_i32_87 dim 0 : vector<16x128xf32>, i32 -> vector<16x128xf32>
    %cst_88 = arith.constant 0.000000e+00 : f32
    %340 = vector.shape_cast %19 : vector<16x1xi1> to vector<16x1xi1>
    %341 = vector.broadcast %340 : vector<16x1xi1> to vector<16x128xi1>
    %342 = vector.broadcast %cst_88 : f32 to vector<16x128xf32>
    %343 = arith.select %341, %339, %342 : vector<16x128xi1>, vector<16x128xf32>
    %344 = vector.extract_strided_slice %332 {offsets = [0, 0], sizes = [1, 128], strides = [1, 1]} : vector<3x128xf32> to vector<1x128xf32>
    %345 = vector.shape_cast %344 : vector<1x128xf32> to vector<128xf32>
    %346 = vector.shape_cast %345 : vector<128xf32> to vector<1x128xf32>
    %347 = vector.broadcast %346 : vector<1x128xf32> to vector<16x128xf32>
    %348 = arith.mulf %343, %347 : vector<16x128xf32>
    %349 = arith.addf %338, %348 : vector<16x128xf32>
    %350 = vector.extract_strided_slice %332 {offsets = [1, 0], sizes = [1, 128], strides = [1, 1]} : vector<3x128xf32> to vector<1x128xf32>
    %351 = vector.shape_cast %350 : vector<1x128xf32> to vector<128xf32>
    %352 = vector.shape_cast %351 : vector<128xf32> to vector<1x128xf32>
    %353 = vector.broadcast %352 : vector<1x128xf32> to vector<16x128xf32>
    %354 = arith.mulf %331, %353 : vector<16x128xf32>
    %355 = arith.addf %349, %354 : vector<16x128xf32>
    %c15_i32 = arith.constant 15 : i32
    %356 = tpu.dynamic_rotate %331 by %c15_i32 dim 0 : vector<16x128xf32>, i32 -> vector<16x128xf32>
    %cst_89 = arith.constant 0.000000e+00 : f32
    %357 = vector.shape_cast %28 : vector<16x1xi1> to vector<16x1xi1>
    %358 = vector.broadcast %357 : vector<16x1xi1> to vector<16x128xi1>
    %359 = vector.broadcast %cst_89 : f32 to vector<16x128xf32>
    %360 = arith.select %358, %356, %359 : vector<16x128xi1>, vector<16x128xf32>
    %361 = vector.extract_strided_slice %332 {offsets = [2, 0], sizes = [1, 128], strides = [1, 1]} : vector<3x128xf32> to vector<1x128xf32>
    %362 = vector.shape_cast %361 : vector<1x128xf32> to vector<128xf32>
    %363 = vector.shape_cast %362 : vector<128xf32> to vector<1x128xf32>
    %364 = vector.broadcast %363 : vector<1x128xf32> to vector<16x128xf32>
    %365 = arith.mulf %360, %364 : vector<16x128xf32>
    %366 = arith.addf %355, %365 : vector<16x128xf32>
    %367 = arith.mulf %284, %366 : vector<16x128xf32>
    %c0_90 = arith.constant 0 : index
    %c0_91 = arith.constant 0 : index
    %c0_92 = arith.constant 0 : index
    %368 = vector.load %arg12[%c0_90, %c0_91, %c0_92] : memref<1x128x128xbf16, #tpu.memory_space<vmem>>, vector<1x128x128xbf16>
    %369 = vector.shape_cast %368 : vector<1x128x128xbf16> to vector<128x128xbf16>
    %370 = arith.truncf %367 : vector<16x128xf32> to vector<16x128xbf16>
    %cst_93 = arith.constant dense<0.000000e+00> : vector<16x128xf32>
    %371 = tpu.matmul %370, %369, %cst_93 {dimension_numbers = #tpu.dot_dimension_numbers<[1], [0], [0], [1], [0, 0, 1, 1], [], []>} : vector<16x128xbf16>, vector<128x128xbf16>, vector<16x128xf32> -> vector<16x128xf32>
    %372 = vector.extract_strided_slice %5 {offsets = [11, 0], sizes = [1, 128], strides = [1, 1]} : vector<26x128xf32> to vector<1x128xf32>
    %373 = vector.shape_cast %372 : vector<1x128xf32> to vector<128xf32>
    %374 = vector.shape_cast %373 : vector<128xf32> to vector<1x128xf32>
    %375 = vector.broadcast %374 : vector<1x128xf32> to vector<16x128xf32>
    %376 = arith.addf %371, %375 : vector<16x128xf32>
    %377 = vector.extract_strided_slice %5 {offsets = [12, 0], sizes = [3, 128], strides = [1, 1]} : vector<26x128xf32> to vector<3x128xf32>
    %378 = vector.extract_strided_slice %5 {offsets = [18, 0], sizes = [1, 128], strides = [1, 1]} : vector<26x128xf32> to vector<1x128xf32>
    %379 = vector.shape_cast %378 : vector<1x128xf32> to vector<128xf32>
    %cst_94 = arith.constant 0.000000e+00 : f32
    %380 = vector.broadcast %cst_94 : f32 to vector<16x128xf32>
    %381 = vector.shape_cast %379 : vector<128xf32> to vector<1x128xf32>
    %382 = vector.broadcast %381 : vector<1x128xf32> to vector<16x128xf32>
    %383 = arith.addf %380, %382 : vector<16x128xf32>
    %c1_i32_95 = arith.constant 1 : i32
    %384 = tpu.dynamic_rotate %233 by %c1_i32_95 dim 0 : vector<16x128xf32>, i32 -> vector<16x128xf32>
    %cst_96 = arith.constant 0.000000e+00 : f32
    %385 = vector.shape_cast %19 : vector<16x1xi1> to vector<16x1xi1>
    %386 = vector.broadcast %385 : vector<16x1xi1> to vector<16x128xi1>
    %387 = vector.broadcast %cst_96 : f32 to vector<16x128xf32>
    %388 = arith.select %386, %384, %387 : vector<16x128xi1>, vector<16x128xf32>
    %389 = vector.extract_strided_slice %377 {offsets = [0, 0], sizes = [1, 128], strides = [1, 1]} : vector<3x128xf32> to vector<1x128xf32>
    %390 = vector.shape_cast %389 : vector<1x128xf32> to vector<128xf32>
    %391 = vector.shape_cast %390 : vector<128xf32> to vector<1x128xf32>
    %392 = vector.broadcast %391 : vector<1x128xf32> to vector<16x128xf32>
    %393 = arith.mulf %388, %392 : vector<16x128xf32>
    %394 = arith.addf %383, %393 : vector<16x128xf32>
    %395 = vector.extract_strided_slice %377 {offsets = [1, 0], sizes = [1, 128], strides = [1, 1]} : vector<3x128xf32> to vector<1x128xf32>
    %396 = vector.shape_cast %395 : vector<1x128xf32> to vector<128xf32>
    %397 = vector.shape_cast %396 : vector<128xf32> to vector<1x128xf32>
    %398 = vector.broadcast %397 : vector<1x128xf32> to vector<16x128xf32>
    %399 = arith.mulf %233, %398 : vector<16x128xf32>
    %400 = arith.addf %394, %399 : vector<16x128xf32>
    %c15_i32_97 = arith.constant 15 : i32
    %401 = tpu.dynamic_rotate %233 by %c15_i32_97 dim 0 : vector<16x128xf32>, i32 -> vector<16x128xf32>
    %cst_98 = arith.constant 0.000000e+00 : f32
    %402 = vector.shape_cast %28 : vector<16x1xi1> to vector<16x1xi1>
    %403 = vector.broadcast %402 : vector<16x1xi1> to vector<16x128xi1>
    %404 = vector.broadcast %cst_98 : f32 to vector<16x128xf32>
    %405 = arith.select %403, %401, %404 : vector<16x128xi1>, vector<16x128xf32>
    %406 = vector.extract_strided_slice %377 {offsets = [2, 0], sizes = [1, 128], strides = [1, 1]} : vector<3x128xf32> to vector<1x128xf32>
    %407 = vector.shape_cast %406 : vector<1x128xf32> to vector<128xf32>
    %408 = vector.shape_cast %407 : vector<128xf32> to vector<1x128xf32>
    %409 = vector.broadcast %408 : vector<1x128xf32> to vector<16x128xf32>
    %410 = arith.mulf %405, %409 : vector<16x128xf32>
    %411 = arith.addf %400, %410 : vector<16x128xf32>
    %412 = arith.addf %233, %411 : vector<16x128xf32>
    %413 = vector.extract_strided_slice %5 {offsets = [15, 0], sizes = [3, 128], strides = [1, 1]} : vector<26x128xf32> to vector<3x128xf32>
    %414 = vector.extract_strided_slice %5 {offsets = [19, 0], sizes = [1, 128], strides = [1, 1]} : vector<26x128xf32> to vector<1x128xf32>
    %415 = vector.shape_cast %414 : vector<1x128xf32> to vector<128xf32>
    %cst_99 = arith.constant 0.000000e+00 : f32
    %416 = vector.broadcast %cst_99 : f32 to vector<16x128xf32>
    %417 = vector.shape_cast %415 : vector<128xf32> to vector<1x128xf32>
    %418 = vector.broadcast %417 : vector<1x128xf32> to vector<16x128xf32>
    %419 = arith.addf %416, %418 : vector<16x128xf32>
    %c1_i32_100 = arith.constant 1 : i32
    %420 = tpu.dynamic_rotate %376 by %c1_i32_100 dim 0 : vector<16x128xf32>, i32 -> vector<16x128xf32>
    %cst_101 = arith.constant 0.000000e+00 : f32
    %421 = vector.shape_cast %19 : vector<16x1xi1> to vector<16x1xi1>
    %422 = vector.broadcast %421 : vector<16x1xi1> to vector<16x128xi1>
    %423 = vector.broadcast %cst_101 : f32 to vector<16x128xf32>
    %424 = arith.select %422, %420, %423 : vector<16x128xi1>, vector<16x128xf32>
    %425 = vector.extract_strided_slice %413 {offsets = [0, 0], sizes = [1, 128], strides = [1, 1]} : vector<3x128xf32> to vector<1x128xf32>
    %426 = vector.shape_cast %425 : vector<1x128xf32> to vector<128xf32>
    %427 = vector.shape_cast %426 : vector<128xf32> to vector<1x128xf32>
    %428 = vector.broadcast %427 : vector<1x128xf32> to vector<16x128xf32>
    %429 = arith.mulf %424, %428 : vector<16x128xf32>
    %430 = arith.addf %419, %429 : vector<16x128xf32>
    %431 = vector.extract_strided_slice %413 {offsets = [1, 0], sizes = [1, 128], strides = [1, 1]} : vector<3x128xf32> to vector<1x128xf32>
    %432 = vector.shape_cast %431 : vector<1x128xf32> to vector<128xf32>
    %433 = vector.shape_cast %432 : vector<128xf32> to vector<1x128xf32>
    %434 = vector.broadcast %433 : vector<1x128xf32> to vector<16x128xf32>
    %435 = arith.mulf %376, %434 : vector<16x128xf32>
    %436 = arith.addf %430, %435 : vector<16x128xf32>
    %c15_i32_102 = arith.constant 15 : i32
    %437 = tpu.dynamic_rotate %376 by %c15_i32_102 dim 0 : vector<16x128xf32>, i32 -> vector<16x128xf32>
    %cst_103 = arith.constant 0.000000e+00 : f32
    %438 = vector.shape_cast %28 : vector<16x1xi1> to vector<16x1xi1>
    %439 = vector.broadcast %438 : vector<16x1xi1> to vector<16x128xi1>
    %440 = vector.broadcast %cst_103 : f32 to vector<16x128xf32>
    %441 = arith.select %439, %437, %440 : vector<16x128xi1>, vector<16x128xf32>
    %442 = vector.extract_strided_slice %413 {offsets = [2, 0], sizes = [1, 128], strides = [1, 1]} : vector<3x128xf32> to vector<1x128xf32>
    %443 = vector.shape_cast %442 : vector<1x128xf32> to vector<128xf32>
    %444 = vector.shape_cast %443 : vector<128xf32> to vector<1x128xf32>
    %445 = vector.broadcast %444 : vector<1x128xf32> to vector<16x128xf32>
    %446 = arith.mulf %441, %445 : vector<16x128xf32>
    %447 = arith.addf %436, %446 : vector<16x128xf32>
    %448 = arith.addf %376, %447 : vector<16x128xf32>
    %449 = tpu.concatenate %412, %448 in 1 : vector<16x128xf32>, vector<16x128xf32> -> vector<16x256xf32>
    %c0_104 = arith.constant 0 : index
    %c0_105 = arith.constant 0 : index
    %c0_106 = arith.constant 0 : index
    %450 = vector.load %arg13[%c0_104, %c0_105, %c0_106] : memref<1x256x128xbf16, #tpu.memory_space<vmem>>, vector<1x256x128xbf16>
    %451 = vector.shape_cast %450 : vector<1x256x128xbf16> to vector<256x128xbf16>
    %452 = arith.truncf %449 : vector<16x256xf32> to vector<16x256xbf16>
    %cst_107 = arith.constant dense<0.000000e+00> : vector<16x128xf32>
    %453 = tpu.matmul %452, %451, %cst_107 {dimension_numbers = #tpu.dot_dimension_numbers<[1], [0], [0], [1], [0, 0, 1, 1], [], []>} : vector<16x256xbf16>, vector<256x128xbf16>, vector<16x128xf32> -> vector<16x128xf32>
    %454 = vector.extract_strided_slice %5 {offsets = [20, 0], sizes = [1, 128], strides = [1, 1]} : vector<26x128xf32> to vector<1x128xf32>
    %455 = vector.shape_cast %454 : vector<1x128xf32> to vector<128xf32>
    %456 = vector.shape_cast %455 : vector<128xf32> to vector<1x128xf32>
    %457 = vector.broadcast %456 : vector<1x128xf32> to vector<16x128xf32>
    %458 = arith.addf %453, %457 : vector<16x128xf32>
    %459 = arith.addf %458, %83 : vector<16x128xf32>
    %460 = vector.extract_strided_slice %5 {offsets = [21, 0], sizes = [1, 128], strides = [1, 1]} : vector<26x128xf32> to vector<1x128xf32>
    %461 = vector.shape_cast %460 : vector<1x128xf32> to vector<128xf32>
    %462 = vector.extract_strided_slice %5 {offsets = [22, 0], sizes = [1, 128], strides = [1, 1]} : vector<26x128xf32> to vector<1x128xf32>
    %463 = vector.shape_cast %462 : vector<1x128xf32> to vector<128xf32>
    %cst_108 = arith.constant dense<0.000000e+00> : vector<16xf32>
    %464 = vector.multi_reduction <add>, %459, %cst_108 [1] : vector<16x128xf32> to vector<16xf32>
    %465 = vector.shape_cast %464 : vector<16xf32> to vector<16x1xf32>
    %cst_109 = arith.constant 1.280000e+02 : f32
    %466 = vector.broadcast %cst_109 : f32 to vector<16x1xf32>
    %467 = arith.divf %465, %466 : vector<16x1xf32>
    %468 = vector.broadcast %467 : vector<16x1xf32> to vector<16x128xf32>
    %469 = arith.subf %459, %468 : vector<16x128xf32>
    %470 = arith.mulf %469, %469 : vector<16x128xf32>
    %cst_110 = arith.constant dense<0.000000e+00> : vector<16xf32>
    %471 = vector.multi_reduction <add>, %470, %cst_110 [1] : vector<16x128xf32> to vector<16xf32>
    %472 = vector.shape_cast %471 : vector<16xf32> to vector<16x1xf32>
    %cst_111 = arith.constant 1.280000e+02 : f32
    %473 = vector.broadcast %cst_111 : f32 to vector<16x1xf32>
    %474 = arith.divf %472, %473 : vector<16x1xf32>
    %475 = vector.broadcast %467 : vector<16x1xf32> to vector<16x128xf32>
    %476 = arith.subf %459, %475 : vector<16x128xf32>
    %cst_112 = arith.constant 9.99999974E-6 : f32
    %477 = vector.broadcast %cst_112 : f32 to vector<16x1xf32>
    %478 = arith.addf %474, %477 : vector<16x1xf32>
    %479 = math.rsqrt %478 : vector<16x1xf32>
    %480 = vector.broadcast %479 : vector<16x1xf32> to vector<16x128xf32>
    %481 = arith.mulf %476, %480 : vector<16x128xf32>
    %482 = vector.shape_cast %461 : vector<128xf32> to vector<1x128xf32>
    %483 = vector.broadcast %482 : vector<1x128xf32> to vector<16x128xf32>
    %484 = arith.mulf %481, %483 : vector<16x128xf32>
    %485 = vector.shape_cast %463 : vector<128xf32> to vector<1x128xf32>
    %486 = vector.broadcast %485 : vector<1x128xf32> to vector<16x128xf32>
    %487 = arith.addf %484, %486 : vector<16x128xf32>
    %c0_113 = arith.constant 0 : index
    %c0_114 = arith.constant 0 : index
    %c0_115 = arith.constant 0 : index
    %488 = vector.load %arg14[%c0_113, %c0_114, %c0_115] : memref<1x128x256xbf16, #tpu.memory_space<vmem>>, vector<1x128x256xbf16>
    %489 = vector.shape_cast %488 : vector<1x128x256xbf16> to vector<128x256xbf16>
    %490 = arith.truncf %487 : vector<16x128xf32> to vector<16x128xbf16>
    %cst_116 = arith.constant dense<0.000000e+00> : vector<16x256xf32>
    %491 = tpu.matmul %490, %489, %cst_116 {dimension_numbers = #tpu.dot_dimension_numbers<[1], [0], [0], [1], [0, 0, 1, 1], [], []>} : vector<16x128xbf16>, vector<128x256xbf16>, vector<16x256xf32> -> vector<16x256xf32>
    %492 = vector.extract_strided_slice %9 {offsets = [1, 0], sizes = [1, 256], strides = [1, 1]} : vector<2x256xf32> to vector<1x256xf32>
    %493 = vector.shape_cast %492 : vector<1x256xf32> to vector<256xf32>
    %494 = vector.shape_cast %493 : vector<256xf32> to vector<1x256xf32>
    %495 = vector.broadcast %494 : vector<1x256xf32> to vector<16x256xf32>
    %496 = arith.addf %491, %495 : vector<16x256xf32>
    %497 = arith.negf %496 : vector<16x256xf32>
    %498 = math.exp %497 : vector<16x256xf32>
    %cst_117 = arith.constant 1.000000e+00 : f32
    %499 = vector.broadcast %cst_117 : f32 to vector<16x256xf32>
    %500 = arith.addf %499, %498 : vector<16x256xf32>
    %501 = arith.divf %499, %500 : vector<16x256xf32>
    %502 = arith.mulf %496, %501 : vector<16x256xf32>
    %c0_118 = arith.constant 0 : index
    %c0_119 = arith.constant 0 : index
    %c0_120 = arith.constant 0 : index
    %503 = vector.load %arg15[%c0_118, %c0_119, %c0_120] : memref<1x256x128xbf16, #tpu.memory_space<vmem>>, vector<1x256x128xbf16>
    %504 = vector.shape_cast %503 : vector<1x256x128xbf16> to vector<256x128xbf16>
    %505 = arith.truncf %502 : vector<16x256xf32> to vector<16x256xbf16>
    %cst_121 = arith.constant dense<0.000000e+00> : vector<16x128xf32>
    %506 = tpu.matmul %505, %504, %cst_121 {dimension_numbers = #tpu.dot_dimension_numbers<[1], [0], [0], [1], [0, 0, 1, 1], [], []>} : vector<16x256xbf16>, vector<256x128xbf16>, vector<16x128xf32> -> vector<16x128xf32>
    %507 = vector.extract_strided_slice %5 {offsets = [23, 0], sizes = [1, 128], strides = [1, 1]} : vector<26x128xf32> to vector<1x128xf32>
    %508 = vector.shape_cast %507 : vector<1x128xf32> to vector<128xf32>
    %509 = vector.shape_cast %508 : vector<128xf32> to vector<1x128xf32>
    %510 = vector.broadcast %509 : vector<1x128xf32> to vector<16x128xf32>
    %511 = arith.addf %506, %510 : vector<16x128xf32>
    %cst_122 = arith.constant 5.000000e-01 : f32
    %512 = vector.broadcast %cst_122 : f32 to vector<16x128xf32>
    %513 = arith.mulf %512, %511 : vector<16x128xf32>
    %514 = arith.addf %513, %459 : vector<16x128xf32>
    %515 = vector.extract_strided_slice %5 {offsets = [24, 0], sizes = [1, 128], strides = [1, 1]} : vector<26x128xf32> to vector<1x128xf32>
    %516 = vector.shape_cast %515 : vector<1x128xf32> to vector<128xf32>
    %517 = vector.extract_strided_slice %5 {offsets = [25, 0], sizes = [1, 128], strides = [1, 1]} : vector<26x128xf32> to vector<1x128xf32>
    %518 = vector.shape_cast %517 : vector<1x128xf32> to vector<128xf32>
    %cst_123 = arith.constant dense<0.000000e+00> : vector<16xf32>
    %519 = vector.multi_reduction <add>, %514, %cst_123 [1] : vector<16x128xf32> to vector<16xf32>
    %520 = vector.shape_cast %519 : vector<16xf32> to vector<16x1xf32>
    %cst_124 = arith.constant 1.280000e+02 : f32
    %521 = vector.broadcast %cst_124 : f32 to vector<16x1xf32>
    %522 = arith.divf %520, %521 : vector<16x1xf32>
    %523 = vector.broadcast %522 : vector<16x1xf32> to vector<16x128xf32>
    %524 = arith.subf %514, %523 : vector<16x128xf32>
    %525 = arith.mulf %524, %524 : vector<16x128xf32>
    %cst_125 = arith.constant dense<0.000000e+00> : vector<16xf32>
    %526 = vector.multi_reduction <add>, %525, %cst_125 [1] : vector<16x128xf32> to vector<16xf32>
    %527 = vector.shape_cast %526 : vector<16xf32> to vector<16x1xf32>
    %cst_126 = arith.constant 1.280000e+02 : f32
    %528 = vector.broadcast %cst_126 : f32 to vector<16x1xf32>
    %529 = arith.divf %527, %528 : vector<16x1xf32>
    %530 = vector.broadcast %522 : vector<16x1xf32> to vector<16x128xf32>
    %531 = arith.subf %514, %530 : vector<16x128xf32>
    %cst_127 = arith.constant 9.99999974E-6 : f32
    %532 = vector.broadcast %cst_127 : f32 to vector<16x1xf32>
    %533 = arith.addf %529, %532 : vector<16x1xf32>
    %534 = math.rsqrt %533 : vector<16x1xf32>
    %535 = vector.broadcast %534 : vector<16x1xf32> to vector<16x128xf32>
    %536 = arith.mulf %531, %535 : vector<16x128xf32>
    %537 = vector.shape_cast %516 : vector<128xf32> to vector<1x128xf32>
    %538 = vector.broadcast %537 : vector<1x128xf32> to vector<16x128xf32>
    %539 = arith.mulf %536, %538 : vector<16x128xf32>
    %540 = vector.shape_cast %518 : vector<128xf32> to vector<1x128xf32>
    %541 = vector.broadcast %540 : vector<1x128xf32> to vector<16x128xf32>
    %542 = arith.addf %539, %541 : vector<16x128xf32>
    %c0_128 = arith.constant 0 : index
    %c0_129 = arith.constant 0 : index
    %543 = vector.load %arg17[%c0_128, %c0_129] : memref<16x128xf32, #tpu.memory_space<vmem>>, vector<16x128xf32>
    tpu.vector_store %arg17[%c0_128, %c0_129], %542 {strides = array<i32>} : memref<16x128xf32, #tpu.memory_space<vmem>>, vector<16x128xf32>,
    %c0_130 = arith.constant 0 : index
    %c0_131 = arith.constant 0 : index
    %c0_132 = arith.constant 0 : index
    %544 = vector.load %arg16[%c0_130, %c0_131, %c0_132] : memref<1x16x128xf32, #tpu.memory_space<vmem>>, vector<1x16x128xf32>
    %545 = vector.shape_cast %544 : vector<1x16x128xf32> to vector<16x128xf32>
    %546 = vector.shape_cast %542 : vector<16x128xf32> to vector<1x16x128xf32>
    tpu.vector_store %arg16[%c0_130, %c0_131, %c0_132], %546 {strides = array<i32>} : memref<1x16x128xf32, #tpu.memory_space<vmem>>, vector<1x16x128xf32>,
    return
  }
  func.func @transform_0(%arg0: i32, %arg1: i32) -> (i32, i32, i32) {
    %c0_i32 = arith.constant 0 : i32
    %c0_i32_0 = arith.constant 0 : i32
    %c0_i32_1 = arith.constant 0 : i32
    return %arg0, %c0_i32, %c0_i32_0 : i32, i32, i32
  }
  func.func @transform_1(%arg0: i32, %arg1: i32) -> (i32, i32, i32) {
    %c0_i32 = arith.constant 0 : i32
    %c0_i32_0 = arith.constant 0 : i32
    %c0_i32_1 = arith.constant 0 : i32
    return %arg0, %c0_i32, %c0_i32_0 : i32, i32, i32
  }
  func.func @transform_2(%arg0: i32, %arg1: i32) -> (i32, i32, i32) {
    %c0_i32 = arith.constant 0 : i32
    %c0_i32_0 = arith.constant 0 : i32
    %c0_i32_1 = arith.constant 0 : i32
    return %arg1, %c0_i32, %c0_i32_0 : i32, i32, i32
  }
  func.func @transform_3(%arg0: i32, %arg1: i32) -> (i32, i32, i32) {
    %c0_i32 = arith.constant 0 : i32
    %c0_i32_0 = arith.constant 0 : i32
    %c0_i32_1 = arith.constant 0 : i32
    return %arg1, %c0_i32, %c0_i32_0 : i32, i32, i32
  }
  func.func @transform_4(%arg0: i32, %arg1: i32) -> (i32, i32, i32) {
    %c0_i32 = arith.constant 0 : i32
    %c0_i32_0 = arith.constant 0 : i32
    %c0_i32_1 = arith.constant 0 : i32
    return %arg1, %c0_i32, %c0_i32_0 : i32, i32, i32
  }
  func.func @transform_5(%arg0: i32, %arg1: i32) -> (i32, i32, i32) {
    %c0_i32 = arith.constant 0 : i32
    %c0_i32_0 = arith.constant 0 : i32
    %c0_i32_1 = arith.constant 0 : i32
    return %arg1, %c0_i32, %c0_i32_0 : i32, i32, i32
  }
  func.func @transform_6(%arg0: i32, %arg1: i32) -> (i32, i32, i32) {
    %c0_i32 = arith.constant 0 : i32
    %c0_i32_0 = arith.constant 0 : i32
    %c0_i32_1 = arith.constant 0 : i32
    return %arg1, %c0_i32, %c0_i32_0 : i32, i32, i32
  }
  func.func @transform_7(%arg0: i32, %arg1: i32) -> (i32, i32, i32) {
    %c0_i32 = arith.constant 0 : i32
    %c0_i32_0 = arith.constant 0 : i32
    %c0_i32_1 = arith.constant 0 : i32
    return %arg1, %c0_i32, %c0_i32_0 : i32, i32, i32
  }
  func.func @transform_8(%arg0: i32, %arg1: i32) -> (i32, i32, i32) {
    %c0_i32 = arith.constant 0 : i32
    %c0_i32_0 = arith.constant 0 : i32
    %c0_i32_1 = arith.constant 0 : i32
    return %arg1, %c0_i32, %c0_i32_0 : i32, i32, i32
  }
  func.func @transform_9(%arg0: i32, %arg1: i32) -> (i32, i32, i32) {
    %c0_i32 = arith.constant 0 : i32
    %c0_i32_0 = arith.constant 0 : i32
    %c0_i32_1 = arith.constant 0 : i32
    return %arg1, %c0_i32, %c0_i32_0 : i32, i32, i32
  }
  func.func @transform_10(%arg0: i32, %arg1: i32) -> (i32, i32, i32) {
    %c0_i32 = arith.constant 0 : i32
    %c0_i32_0 = arith.constant 0 : i32
    %c0_i32_1 = arith.constant 0 : i32
    return %arg1, %c0_i32, %c0_i32_0 : i32, i32, i32
  }
  func.func @transform_11(%arg0: i32, %arg1: i32) -> (i32, i32, i32) {
    %c0_i32 = arith.constant 0 : i32
    %c0_i32_0 = arith.constant 0 : i32
    %c0_i32_1 = arith.constant 0 : i32
    return %arg1, %c0_i32, %c0_i32_0 : i32, i32, i32
  }
  func.func @transform_12(%arg0: i32, %arg1: i32) -> (i32, i32, i32) {
    %c0_i32 = arith.constant 0 : i32
    %c0_i32_0 = arith.constant 0 : i32
    %c0_i32_1 = arith.constant 0 : i32
    return %arg1, %c0_i32, %c0_i32_0 : i32, i32, i32
  }
  func.func @transform_13(%arg0: i32, %arg1: i32) -> (i32, i32, i32) {
    %c0_i32 = arith.constant 0 : i32
    %c0_i32_0 = arith.constant 0 : i32
    %c0_i32_1 = arith.constant 0 : i32
    return %arg1, %c0_i32, %c0_i32_0 : i32, i32, i32
  }
  func.func @transform_14(%arg0: i32, %arg1: i32) -> (i32, i32, i32) {
    %c0_i32 = arith.constant 0 : i32
    %c0_i32_0 = arith.constant 0 : i32
    %c0_i32_1 = arith.constant 0 : i32
    return %arg0, %c0_i32, %c0_i32_0 : i32, i32, i32
  }
}

</mosaic_0001>

<llo_original>
// kernel: ebranchformer_encoder_forward.1
$region0: #{ebranchformer_encoder_forward.1}
  #allocation0 [shape = 'u32[]', space=smem, size = 0x4, offset = 0x4, fixed_abs, tag = 'smem constant byte address 0x4 - core index']
  #allocation1 [shape = 'u32[144,128]{1,0:T(1,128)}', space=vmem, size = 0x12000, scoped, tag = 'internal scratch']
  #allocation2 [shape = 'f32[16,128]{1,0:T(8,128)}', space=vmem, size = 0x2000, scoped, tag = 'scratch operand']
  %s0 = inlined_call_operand.vmem [shape: f32[2,16,128], index: 0, kind: input, shape index: {}, may-alias: {0,14}]
  %s1 = inlined_call_operand.vmem [shape: f32[2,1,16], index: 1, kind: input, shape index: {}]
  %s2 = inlined_call_operand.vmem [shape: f32[2,26,128], index: 2, kind: input, shape index: {}]
  %s3 = inlined_call_operand.hbm [shape: f32[2,8,128], index: 3, kind: input, shape index: {}]
  %s4 = inlined_call_operand.hbm [shape: f32[2,2,256], index: 4, kind: input, shape index: {}]
  %s5 = inlined_call_operand.vmem [shape: bf16[2,128,256], index: 5, kind: input, shape index: {}]
  %s6 = inlined_call_operand.hbm [shape: bf16[2,256,128], index: 6, kind: input, shape index: {}]
  %s7 = inlined_call_operand.hbm [shape: bf16[2,128,384], index: 7, kind: input, shape index: {}]
  %s8 = inlined_call_operand.hbm [shape: bf16[2,128,128], index: 8, kind: input, shape index: {}]
  %s9 = inlined_call_operand.hbm [shape: bf16[2,128,256], index: 9, kind: input, shape index: {}]
  %s10 = inlined_call_operand.hbm [shape: bf16[2,128,128], index: 10, kind: input, shape index: {}]
  %s11 = inlined_call_operand.hbm [shape: bf16[2,256,128], index: 11, kind: input, shape index: {}]
  %s12 = inlined_call_operand.hbm [shape: bf16[2,128,256], index: 12, kind: input, shape index: {}]
  %s13 = inlined_call_operand.hbm [shape: bf16[2,256,128], index: 13, kind: input, shape index: {}]
  %s14 = inlined_call_operand.vmem [shape: f32[2,16,128], index: 14, kind: output, shape index: {}, may-alias: {0,14}]
  %s15 = sld [smem:[#allocation0]]
  $region133: #{ebranchformer_encoder_forward.1} parent=0
    _
  %s17 = ssub.s32 1, %s15
  %s18 = scalar_select 0, %s17, %s15
  $region1: #{ebranchformer_encoder_forward.1} parent=0
    #allocation3 [shape = 'u8[8192]{0}', space=vmem, size = 0x2000, scoped, tag = 'input window, operand 3']
    #allocation4 [shape = 's32[2]{0}', space=sflag, size = 0x8, scoped, tag = 'scoped memory for ebranchformer_encoder_forward.1']
    #allocation5 [shape = 'u8[4096]{0}', space=vmem, size = 0x1000, scoped, tag = 'input window, operand 4']
    #allocation6 [shape = 's32[2]{0}', space=sflag, size = 0x8, scoped, tag = 'scoped memory for ebranchformer_encoder_forward.1']
    #allocation7 [shape = 'u8[131072]{0}', space=vmem, size = 0x20000, scoped, tag = 'input window, operand 6']
    #allocation8 [shape = 'u8[196608]{0}', space=vmem, size = 0x30000, scoped, tag = 'input window, operand 7']
    #allocation9 [shape = 's32[2]{0}', space=sflag, size = 0x8, scoped, tag = 'scoped memory for ebranchformer_encoder_forward.1']
    #allocation10 [shape = 'u8[65536]{0}', space=vmem, size = 0x10000, scoped, tag = 'input window, operand 8']
    #allocation11 [shape = 'u8[131072]{0}', space=vmem, size = 0x20000, scoped, tag = 'input window, operand 9']
    #allocation12 [shape = 's32[2]{0}', space=sflag, size = 0x8, scoped, tag = 'scoped memory for ebranchformer_encoder_forward.1']
    #allocation13 [shape = 'u8[65536]{0}', space=vmem, size = 0x10000, scoped, tag = 'input window, operand 10']
    #allocation14 [shape = 'u8[131072]{0}', space=vmem, size = 0x20000, scoped, tag = 'input window, operand 11']
    #allocation15 [shape = 's32[2]{0}', space=sflag, size = 0x8, scoped, tag = 'scoped memory for ebranchformer_encoder_forward.1']
    #allocation16 [shape = 'u8[131072]{0}', space=vmem, size = 0x20000, scoped, tag = 'input window, operand 12']
    #allocation17 [shape = 'u8[131072]{0}', space=vmem, size = 0x20000, scoped, tag = 'input window, operand 13']
    #allocation18 [shape = 's32[2]{0}', space=sflag, size = 0x8, scoped, tag = 'scoped memory for ebranchformer_encoder_forward.1']
    %19 = vsyncpa [#allocation4], 0
    %s20 = scalar_lea.sflag [#allocation4], 1
    %21 = vsyncpa %s20, 0
    %22 = vsyncpa [#allocation6], 0
    %s23 = scalar_lea.sflag [#allocation6], 1
    %24 = vsyncpa %s23, 0
    %25 = vsyncpa [#allocation9], 0
    %s26 = scalar_lea.sflag [#allocation9], 1
    %27 = vsyncpa %s26, 0
    %28 = vsyncpa [#allocation12], 0
    %s29 = scalar_lea.sflag [#allocation12], 1
    %30 = vsyncpa %s29, 0
    %31 = vsyncpa [#allocation15], 0
    %s32 = scalar_lea.sflag [#allocation15], 1
    %33 = vsyncpa %s32, 0
    %34 = vsyncpa [#allocation18], 0
    %s35 = scalar_lea.sflag [#allocation18], 1
    %36 = vsyncpa %s35, 0
    loop: start=0, step=1, limit=6
    $region2: #{ebranchformer_encoder_forward.1} parent=1 // loop_pre_header
      _
    $region3: #{ebranchformer_encoder_forward.1} parent=1 // loop_header
      %s38 = sphi 0, %s42
      %p39 = scmp.ge.s32.totalorder %s38, 6
      %s45 = sphi 0, %s57
      %s46 = sphi 0, %s53
      %s47 = sphi 0, %s45
      %s48 = sphi 0, %s46
      %s49 = sphi 0, %s47
      %s50 = sphi 0, %s48
      %s60 = sphi 0, %s62
      %s63 = sphi 0, %s60
      %s64 = sphi 0, %s63
      %s80 = sphi 0, %s64
      %s86 = sphi 0, %s88
      %s89 = sphi 0, %s86
      %s90 = sphi 0, %s89
      %s106 = sphi 0, %s90
      %s112 = sphi 0, %s114
      %s115 = sphi 0, %s112
      %s116 = sphi 0, %s115
      %s132 = sphi 0, %s116
      %s138 = sphi 0, %s140
      %s141 = sphi 0, %s138
      %s142 = sphi 0, %s141
      %s158 = sphi 0, %s142
      %s164 = sphi 0, %s166
      %s167 = sphi 0, %s164
      %s168 = sphi 0, %s167
      %s184 = sphi 0, %s168
      %s190 = sphi 0, %s192
      %s193 = sphi 0, %s190
      %s194 = sphi 0, %s193
      %s210 = sphi 0, %s194
      %s216 = sphi 0, %s218
      %s219 = sphi 0, %s216
      %s220 = sphi 0, %s219
      %s236 = sphi 0, %s220
      %s242 = sphi 0, %s244
      %s245 = sphi 0, %s242
      %s246 = sphi 0, %s245
      %s262 = sphi 0, %s246
      %s268 = sphi 0, %s270
      %s271 = sphi 0, %s268
      %s272 = sphi 0, %s271
      %s288 = sphi 0, %s272
      %s294 = sphi 0, %s296
      %s297 = sphi 0, %s294
      %s298 = sphi 0, %s297
      %s314 = sphi 0, %s298
      %s320 = sphi 0, %s322
      %s323 = sphi 0, %s320
      %s324 = sphi 0, %s323
      %s340 = sphi 0, %s324
      %s346 = sphi 0, %s348
      %s349 = sphi 0, %s346
      %s350 = sphi 0, %s349
      %s366 = sphi 0, %s350
      %s372 = sphi 0, %s374
      %s375 = sphi 0, %s372
      %s376 = sphi 0, %s375
      %s392 = sphi 0, %s376
      %s398 = sphi 0, %s400
      %s401 = sphi 0, %s398
      %s402 = sphi 0, %s401
      %s418 = sphi 0, %s402
      %s424 = sphi 0, %s426
      %s427 = sphi 0, %s424
      %s428 = sphi 0, %s427
      %s444 = sphi 0, %s428
    $region4: #{ebranchformer_encoder_forward.1} parent=1 // loop_header_branch
      %41 = sbr.rel (%p39) target = $region8
    $region5: #{ebranchformer_encoder_forward.1} parent=1 // loop_body
      %s43 = ssub.s32 %s38, 1
      %s44 = ssub.s32 %s38, 2
      %s51 = sadd.s32 1, %s46
      %p52 = scmp.ge.s32.totalorder %s51, 2
      %s53 = scalar_select %p52, 0, %s51
      %s54 = sadd.s32 1, %s45
      %s55 = scalar_select %p52, %s54, %s45
      %p56 = scmp.ge.s32.totalorder %s55, 2
      %s57 = scalar_select %p56, 0, %s55
      %s58 = ssub.s32 %s45, %s57
      %p59 = scmp.eq.s32.totalorder %s58, 0
      %s61 = sadd.s32 %s60, 1
      %s62 = scalar_select %p59, %s60, %s61
      %p65 = pneg %p59
      %p66 = scmp.eq.s32.totalorder %s38, 3
      %p67 = por %p65, %p66
      %p68 = scmp.ne.s32.totalorder %s60, %s63
      %p69 = scmp.eq.s32.totalorder %s38, 0
      %p70 = por %p68, %p69
      %p71 = scmp.ne.s32.totalorder %s60, %s63
      %p72 = scmp.eq.s32.totalorder %s43, 3
      %p73 = por %p71, %p72
      %p74 = scmp.ne.s32.totalorder %s63, %s64
      %p75 = scmp.eq.s32.totalorder %s43, 0
      %p76 = por %p74, %p75
      %p77 = scmp.ne.s32.totalorder %s63, %s64
      %p78 = scmp.eq.s32.totalorder %s44, 3
      %p79 = por %p77, %p78
      %p81 = scmp.ne.s32.totalorder %s64, %s80
      %p82 = scmp.eq.s32.totalorder %s44, 0
      %p83 = por %p81, %p82
      %s84 = ssub.s32 %s45, %s57
      %p85 = scmp.eq.s32.totalorder %s84, 0
      %s87 = sadd.s32 %s86, 1
      %s88 = scalar_select %p85, %s86, %s87
      %p91 = pneg %p85
      %p92 = scmp.eq.s32.totalorder %s38, 3
      %p93 = por %p91, %p92
      %p94 = scmp.ne.s32.totalorder %s86, %s89
      %p95 = scmp.eq.s32.totalorder %s38, 0
      %p96 = por %p94, %p95
      %p97 = scmp.ne.s32.totalorder %s86, %s89
      %p98 = scmp.eq.s32.totalorder %s43, 3
      %p99 = por %p97, %p98
      %p100 = scmp.ne.s32.totalorder %s89, %s90
      %p101 = scmp.eq.s32.totalorder %s43, 0
      %p102 = por %p100, %p101
      %p103 = scmp.ne.s32.totalorder %s89, %s90
      %p104 = scmp.eq.s32.totalorder %s44, 3
      %p105 = por %p103, %p104
      %p107 = scmp.ne.s32.totalorder %s90, %s106
      %p108 = scmp.eq.s32.totalorder %s44, 0
      %p109 = por %p107, %p108
      %s110 = ssub.s32 %s46, %s53
      %p111 = scmp.eq.s32.totalorder %s110, 0
      %s113 = sadd.s32 %s112, 1
      %s114 = scalar_select %p111, %s112, %s113
      %p117 = pneg %p111
      %p118 = scmp.eq.s32.totalorder %s38, 3
      %p119 = por %p117, %p118
      %p120 = scmp.ne.s32.totalorder %s112, %s115
      %p121 = scmp.eq.s32.totalorder %s38, 0
      %p122 = por %p120, %p121
      %p123 = scmp.ne.s32.totalorder %s112, %s115
      %p124 = scmp.eq.s32.totalorder %s43, 3
      %p125 = por %p123, %p124
      %p126 = scmp.ne.s32.totalorder %s115, %s116
      %p127 = scmp.eq.s32.totalorder %s43, 0
      %p128 = por %p126, %p127
      %p129 = scmp.ne.s32.totalorder %s115, %s116
      %p130 = scmp.eq.s32.totalorder %s44, 3
      %p131 = por %p129, %p130
      %p133 = scmp.ne.s32.totalorder %s116, %s132
      %p134 = scmp.eq.s32.totalorder %s44, 0
      %p135 = por %p133, %p134
      %s136 = ssub.s32 %s46, %s53
      %p137 = scmp.eq.s32.totalorder %s136, 0
      %s139 = sadd.s32 %s138, 1
      %s140 = scalar_select %p137, %s138, %s139
      %p143 = pneg %p137
      %p144 = scmp.eq.s32.totalorder %s38, 3
      %p145 = por %p143, %p144
      %p146 = scmp.ne.s32.totalorder %s138, %s141
      %p147 = scmp.eq.s32.totalorder %s38, 0
      %p148 = por %p146, %p147
      %p149 = scmp.ne.s32.totalorder %s138, %s141
      %p150 = scmp.eq.s32.totalorder %s43, 3
      %p151 = por %p149, %p150
      %p152 = scmp.ne.s32.totalorder %s141, %s142
      %p153 = scmp.eq.s32.totalorder %s43, 0
      %p154 = por %p152, %p153
      %p155 = scmp.ne.s32.totalorder %s141, %s142
      %p156 = scmp.eq.s32.totalorder %s44, 3
      %p157 = por %p155, %p156
      %p159 = scmp.ne.s32.totalorder %s142, %s158
      %p160 = scmp.eq.s32.totalorder %s44, 0
      %p161 = por %p159, %p160
      %s162 = ssub.s32 %s46, %s53
      %p163 = scmp.eq.s32.totalorder %s162, 0
      %s165 = sadd.s32 %s164, 1
      %s166 = scalar_select %p163, %s164, %s165
      %p169 = pneg %p163
      %p170 = scmp.eq.s32.totalorder %s38, 3
      %p171 = por %p169, %p170
      %p172 = scmp.ne.s32.totalorder %s164, %s167
      %p173 = scmp.eq.s32.totalorder %s38, 0
      %p174 = por %p172, %p173
      %p175 = scmp.ne.s32.totalorder %s164, %s167
      %p176 = scmp.eq.s32.totalorder %s43, 3
      %p177 = por %p175, %p176
      %p178 = scmp.ne.s32.totalorder %s167, %s168
      %p179 = scmp.eq.s32.totalorder %s43, 0
      %p180 = por %p178, %p179
      %p181 = scmp.ne.s32.totalorder %s167, %s168
      %p182 = scmp.eq.s32.totalorder %s44, 3
      %p183 = por %p181, %p182
      %p185 = scmp.ne.s32.totalorder %s168, %s184
      %p186 = scmp.eq.s32.totalorder %s44, 0
      %p187 = por %p185, %p186
      %s188 = ssub.s32 %s46, %s53
      %p189 = scmp.eq.s32.totalorder %s188, 0
      %s191 = sadd.s32 %s190, 1
      %s192 = scalar_select %p189, %s190, %s191
      %p195 = pneg %p189
      %p196 = scmp.eq.s32.totalorder %s38, 3
      %p197 = por %p195, %p196
      %p198 = scmp.ne.s32.totalorder %s190, %s193
      %p199 = scmp.eq.s32.totalorder %s38, 0
      %p200 = por %p198, %p199
      %p201 = scmp.ne.s32.totalorder %s190, %s193
      %p202 = scmp.eq.s32.totalorder %s43, 3
      %p203 = por %p201, %p202
      %p204 = scmp.ne.s32.totalorder %s193, %s194
      %p205 = scmp.eq.s32.totalorder %s43, 0
      %p206 = por %p204, %p205
      %p207 = scmp.ne.s32.totalorder %s193, %s194
      %p208 = scmp.eq.s32.totalorder %s44, 3
      %p209 = por %p207, %p208
      %p211 = scmp.ne.s32.totalorder %s194, %s210
      %p212 = scmp.eq.s32.totalorder %s44, 0
      %p213 = por %p211, %p212
      %s214 = ssub.s32 %s46, %s53
      %p215 = scmp.eq.s32.totalorder %s214, 0
      %s217 = sadd.s32 %s216, 1
      %s218 = scalar_select %p215, %s216, %s217
      %p221 = pneg %p215
      %p222 = scmp.eq.s32.totalorder %s38, 3
      %p223 = por %p221, %p222
      %p224 = scmp.ne.s32.totalorder %s216, %s219
      %p225 = scmp.eq.s32.totalorder %s38, 0
      %p226 = por %p224, %p225
      %p227 = scmp.ne.s32.totalorder %s216, %s219
      %p228 = scmp.eq.s32.totalorder %s43, 3
      %p229 = por %p227, %p228
      %p230 = scmp.ne.s32.totalorder %s219, %s220
      %p231 = scmp.eq.s32.totalorder %s43, 0
      %p232 = por %p230, %p231
      %p233 = scmp.ne.s32.totalorder %s219, %s220
      %p234 = scmp.eq.s32.totalorder %s44, 3
      %p235 = por %p233, %p234
      %p237 = scmp.ne.s32.totalorder %s220, %s236
      %p238 = scmp.eq.s32.totalorder %s44, 0
      %p239 = por %p237, %p238
      %s240 = ssub.s32 %s46, %s53
      %p241 = scmp.eq.s32.totalorder %s240, 0
      %s243 = sadd.s32 %s242, 1
      %s244 = scalar_select %p241, %s242, %s243
      %p247 = pneg %p241
      %p248 = scmp.eq.s32.totalorder %s38, 3
      %p249 = por %p247, %p248
      %p250 = scmp.ne.s32.totalorder %s242, %s245
      %p251 = scmp.eq.s32.totalorder %s38, 0
      %p252 = por %p250, %p251
      %p253 = scmp.ne.s32.totalorder %s242, %s245
      %p254 = scmp.eq.s32.totalorder %s43, 3
      %p255 = por %p253, %p254
      %p256 = scmp.ne.s32.totalorder %s245, %s246
      %p257 = scmp.eq.s32.totalorder %s43, 0
      %p258 = por %p256, %p257
      %p259 = scmp.ne.s32.totalorder %s245, %s246
      %p260 = scmp.eq.s32.totalorder %s44, 3
      %p261 = por %p259, %p260
      %p263 = scmp.ne.s32.totalorder %s246, %s262
      %p264 = scmp.eq.s32.totalorder %s44, 0
      %p265 = por %p263, %p264
      %s266 = ssub.s32 %s46, %s53
      %p267 = scmp.eq.s32.totalorder %s266, 0
      %s269 = sadd.s32 %s268, 1
      %s270 = scalar_select %p267, %s268, %s269
      %p273 = pneg %p267
      %p274 = scmp.eq.s32.totalorder %s38, 3
      %p275 = por %p273, %p274
      %p276 = scmp.ne.s32.totalorder %s268, %s271
      %p277 = scmp.eq.s32.totalorder %s38, 0
      %p278 = por %p276, %p277
      %p279 = scmp.ne.s32.totalorder %s268, %s271
      %p280 = scmp.eq.s32.totalorder %s43, 3
      %p281 = por %p279, %p280
      %p282 = scmp.ne.s32.totalorder %s271, %s272
      %p283 = scmp.eq.s32.totalorder %s43, 0
      %p284 = por %p282, %p283
      %p285 = scmp.ne.s32.totalorder %s271, %s272
      %p286 = scmp.eq.s32.totalorder %s44, 3
      %p287 = por %p285, %p286
      %p289 = scmp.ne.s32.totalorder %s272, %s288
      %p290 = scmp.eq.s32.totalorder %s44, 0
      %p291 = por %p289, %p290
      %s292 = ssub.s32 %s46, %s53
      %p293 = scmp.eq.s32.totalorder %s292, 0
      %s295 = sadd.s32 %s294, 1
      %s296 = scalar_select %p293, %s294, %s295
      %p299 = pneg %p293
      %p300 = scmp.eq.s32.totalorder %s38, 3
      %p301 = por %p299, %p300
      %p302 = scmp.ne.s32.totalorder %s294, %s297
      %p303 = scmp.eq.s32.totalorder %s38, 0
      %p304 = por %p302, %p303
      %p305 = scmp.ne.s32.totalorder %s294, %s297
      %p306 = scmp.eq.s32.totalorder %s43, 3
      %p307 = por %p305, %p306
      %p308 = scmp.ne.s32.totalorder %s297, %s298
      %p309 = scmp.eq.s32.totalorder %s43, 0
      %p310 = por %p308, %p309
      %p311 = scmp.ne.s32.totalorder %s297, %s298
      %p312 = scmp.eq.s32.totalorder %s44, 3
      %p313 = por %p311, %p312
      %p315 = scmp.ne.s32.totalorder %s298, %s314
      %p316 = scmp.eq.s32.totalorder %s44, 0
      %p317 = por %p315, %p316
      %s318 = ssub.s32 %s46, %s53
      %p319 = scmp.eq.s32.totalorder %s318, 0
      %s321 = sadd.s32 %s320, 1
      %s322 = scalar_select %p319, %s320, %s321
      %p325 = pneg %p319
      %p326 = scmp.eq.s32.totalorder %s38, 3
      %p327 = por %p325, %p326
      %p328 = scmp.ne.s32.totalorder %s320, %s323
      %p329 = scmp.eq.s32.totalorder %s38, 0
      %p330 = por %p328, %p329
      %p331 = scmp.ne.s32.totalorder %s320, %s323
      %p332 = scmp.eq.s32.totalorder %s43, 3
      %p333 = por %p331, %p332
      %p334 = scmp.ne.s32.totalorder %s323, %s324
      %p335 = scmp.eq.s32.totalorder %s43, 0
      %p336 = por %p334, %p335
      %p337 = scmp.ne.s32.totalorder %s323, %s324
      %p338 = scmp.eq.s32.totalorder %s44, 3
      %p339 = por %p337, %p338
      %p341 = scmp.ne.s32.totalorder %s324, %s340
      %p342 = scmp.eq.s32.totalorder %s44, 0
      %p343 = por %p341, %p342
      %s344 = ssub.s32 %s46, %s53
      %p345 = scmp.eq.s32.totalorder %s344, 0
      %s347 = sadd.s32 %s346, 1
      %s348 = scalar_select %p345, %s346, %s347
      %p351 = pneg %p345
      %p352 = scmp.eq.s32.totalorder %s38, 3
      %p353 = por %p351, %p352
      %p354 = scmp.ne.s32.totalorder %s346, %s349
      %p355 = scmp.eq.s32.totalorder %s38, 0
      %p356 = por %p354, %p355
      %p357 = scmp.ne.s32.totalorder %s346, %s349
      %p358 = scmp.eq.s32.totalorder %s43, 3
      %p359 = por %p357, %p358
      %p360 = scmp.ne.s32.totalorder %s349, %s350
      %p361 = scmp.eq.s32.totalorder %s43, 0
      %p362 = por %p360, %p361
      %p363 = scmp.ne.s32.totalorder %s349, %s350
      %p364 = scmp.eq.s32.totalorder %s44, 3
      %p365 = por %p363, %p364
      %p367 = scmp.ne.s32.totalorder %s350, %s366
      %p368 = scmp.eq.s32.totalorder %s44, 0
      %p369 = por %p367, %p368
      %s370 = ssub.s32 %s46, %s53
      %p371 = scmp.eq.s32.totalorder %s370, 0
      %s373 = sadd.s32 %s372, 1
      %s374 = scalar_select %p371, %s372, %s373
      %p377 = pneg %p371
      %p378 = scmp.eq.s32.totalorder %s38, 3
      %p379 = por %p377, %p378
      %p380 = scmp.ne.s32.totalorder %s372, %s375
      %p381 = scmp.eq.s32.totalorder %s38, 0
      %p382 = por %p380, %p381
      %p383 = scmp.ne.s32.totalorder %s372, %s375
      %p384 = scmp.eq.s32.totalorder %s43, 3
      %p385 = por %p383, %p384
      %p386 = scmp.ne.s32.totalorder %s375, %s376
      %p387 = scmp.eq.s32.totalorder %s43, 0
      %p388 = por %p386, %p387
      %p389 = scmp.ne.s32.totalorder %s375, %s376
      %p390 = scmp.eq.s32.totalorder %s44, 3
      %p391 = por %p389, %p390
      %p393 = scmp.ne.s32.totalorder %s376, %s392
      %p394 = scmp.eq.s32.totalorder %s44, 0
      %p395 = por %p393, %p394
      %s396 = ssub.s32 %s46, %s53
      %p397 = scmp.eq.s32.totalorder %s396, 0
      %s399 = sadd.s32 %s398, 1
      %s400 = scalar_select %p397, %s398, %s399
      %p403 = pneg %p397
      %p404 = scmp.eq.s32.totalorder %s38, 3
      %p405 = por %p403, %p404
      %p406 = scmp.ne.s32.totalorder %s398, %s401
      %p407 = scmp.eq.s32.totalorder %s38, 0
      %p408 = por %p406, %p407
      %p409 = scmp.ne.s32.totalorder %s398, %s401
      %p410 = scmp.eq.s32.totalorder %s43, 3
      %p411 = por %p409, %p410
      %p412 = scmp.ne.s32.totalorder %s401, %s402
      %p413 = scmp.eq.s32.totalorder %s43, 0
      %p414 = por %p412, %p413
      %p415 = scmp.ne.s32.totalorder %s401, %s402
      %p416 = scmp.eq.s32.totalorder %s44, 3
      %p417 = por %p415, %p416
      %p419 = scmp.ne.s32.totalorder %s402, %s418
      %p420 = scmp.eq.s32.totalorder %s44, 0
      %p421 = por %p419, %p420
      %s422 = ssub.s32 %s45, %s57
      %p423 = scmp.eq.s32.totalorder %s422, 0
      %s425 = sadd.s32 %s424, 1
      %s426 = scalar_select %p423, %s424, %s425
      %p429 = pneg %p423
      %p430 = scmp.eq.s32.totalorder %s38, 3
      %p431 = por %p429, %p430
      %p432 = scmp.ne.s32.totalorder %s424, %s427
      %p433 = scmp.eq.s32.totalorder %s38, 0
      %p434 = por %p432, %p433
      %p435 = scmp.ne.s32.totalorder %s424, %s427
      %p436 = scmp.eq.s32.totalorder %s43, 3
      %p437 = por %p435, %p436
      %p438 = scmp.ne.s32.totalorder %s427, %s428
      %p439 = scmp.eq.s32.totalorder %s43, 0
      %p440 = por %p438, %p439
      %p441 = scmp.ne.s32.totalorder %s427, %s428
      %p442 = scmp.eq.s32.totalorder %s44, 3
      %p443 = por %p441, %p442
      %p445 = scmp.ne.s32.totalorder %s428, %s444
      %p446 = scmp.eq.s32.totalorder %s44, 0
      %p447 = por %p445, %p446
      %p448 = scmp.le.s32.totalorder 1, %s38
      %p449 = scmp.lt.s32.totalorder %s38, 5
      %p450 = pnand %p448, %p449
      %p451 = pneg %p450
      // Predicated region
      $region9: #{ebranchformer_encoder_forward.1} parent=5 // pred_check
        _
      $region10: #{ebranchformer_encoder_forward.1} parent=5 // pred_check_branch
        %453 = sbr.rel (%p450) target = $region12
      $region11: #{ebranchformer_encoder_forward.1} parent=5 // pred_region
        %s454 = ssub.s32 %s38, 1
      $region12: #{ebranchformer_encoder_forward.1} parent=5 // pred_fallthru
        _
      %p455 = scmp.lt.s32.totalorder %s38, 4
      // Predicated region
      $region13: #{ebranchformer_encoder_forward.1} parent=5 // pred_check
        %p456 = pneg %p455
      $region14: #{ebranchformer_encoder_forward.1} parent=5 // pred_check_branch
        %458 = sbr.rel (%p456) target = $region16
      $region15: #{ebranchformer_encoder_forward.1} parent=5 // pred_region
        // Predicated region
        $region17: #{ebranchformer_encoder_forward.1} parent=15 // pred_check
          %p459 = pneg %p70
        $region18: #{ebranchformer_encoder_forward.1} parent=15 // pred_check_branch
          %461 = sbr.rel (%p459) target = $region20
        $region19: #{ebranchformer_encoder_forward.1} parent=15 // pred_region
          %p462 = scmp.lt.s32.totalorder %s45, 1
          %s463 = scalar_select %p462, %s45, 1
          %s464 = smul.addr %s463, 2
          %s465 = smul.addr %s464, 8
          %s466 = scalar_lea.vmem %s0, %s465
        $region20: #{ebranchformer_encoder_forward.1} parent=15 // pred_fallthru
          _
        // Predicated region
        $region21: #{ebranchformer_encoder_forward.1} parent=15 // pred_check
          %p467 = pneg %p96
        $region22: #{ebranchformer_encoder_forward.1} parent=15 // pred_check_branch
          %469 = sbr.rel (%p467) target = $region24
        $region23: #{ebranchformer_encoder_forward.1} parent=15 // pred_region
          %p470 = scmp.lt.s32.totalorder %s45, 1
          %s471 = scalar_select %p470, %s45, 1
          %s472 = scalar_lea.vmem %s1, %s471
        $region24: #{ebranchformer_encoder_forward.1} parent=15 // pred_fallthru
          _
        // Predicated region
        $region25: #{ebranchformer_encoder_forward.1} parent=15 // pred_check
          %p473 = pneg %p122
        $region26: #{ebranchformer_encoder_forward.1} parent=15 // pred_check_branch
          %475 = sbr.rel (%p473) target = $region28
        $region27: #{ebranchformer_encoder_forward.1} parent=15 // pred_region
          %p476 = scmp.lt.s32.totalorder %s46, 1
          %s477 = scalar_select %p476, %s46, 1
          %s478 = smul.addr %s477, 4
          %s479 = smul.addr %s478, 8
          %s480 = scalar_lea.vmem %s2, %s479
        $region28: #{ebranchformer_encoder_forward.1} parent=15 // pred_fallthru
          _
        // Predicated region
        $region29: #{ebranchformer_encoder_forward.1} parent=15 // pred_check
          %p481 = pneg %p148
        $region30: #{ebranchformer_encoder_forward.1} parent=15 // pred_check_branch
          %483 = sbr.rel (%p481) target = $region32
        $region31: #{ebranchformer_encoder_forward.1} parent=15 // pred_region
          %s484 = sand.u32 %s138, 1
          %s485 = scalar_lea.sflag [#allocation4], %s484
          %s486 = sand.u32 %s138, 1
          %s487 = smul.addr %s486, 8
          %s488 = scalar_lea.vmem [#allocation3], %s487
          %s490 = ssub.s32 128, 128
          %491 = vsyncadd %s485, %s490
          %s492 = smul.addr %s46, 128
          %s493 = scalar_lea.hbm %s3, %s492
          %s495 = sshll.u32 %s488, 4
          %s496 = int_to_ptr.vmem [resolvable:$true] %s495
          %498 = dma.hbm_to_vmem [thread:$0]  %s493, 128, %s496, %s485
        $region32: #{ebranchformer_encoder_forward.1} parent=15 // pred_fallthru
          _
        // Predicated region
        $region33: #{ebranchformer_encoder_forward.1} parent=15 // pred_check
          %p499 = pneg %p174
        $region34: #{ebranchformer_encoder_forward.1} parent=15 // pred_check_branch
          %501 = sbr.rel (%p499) target = $region36
        $region35: #{ebranchformer_encoder_forward.1} parent=15 // pred_region
          %s502 = sand.u32 %s38, 1
          %s503 = scalar_lea.sflag [#allocation6], %s502
          %s504 = sand.u32 %s164, 1
          %s505 = smul.addr %s504, 4
          %s506 = scalar_lea.vmem [#allocation5], %s505
          %s508 = ssub.s32 64, 64
          %509 = vsyncadd %s503, %s508
          %s510 = smul.addr %s46, 2
          %s511 = smul.addr %s510, 32
          %s512 = scalar_lea.hbm %s4, %s511
          %s514 = sshll.u32 %s506, 4
          %s515 = int_to_ptr.vmem [resolvable:$true] %s514
          %517 = dma.hbm_to_vmem [thread:$0]  %s512, 64, %s515, %s503
        $region36: #{ebranchformer_encoder_forward.1} parent=15 // pred_fallthru
          _
        // Predicated region
        $region37: #{ebranchformer_encoder_forward.1} parent=15 // pred_check
          %p518 = pneg %p200
        $region38: #{ebranchformer_encoder_forward.1} parent=15 // pred_check_branch
          %520 = sbr.rel (%p518) target = $region40
        $region39: #{ebranchformer_encoder_forward.1} parent=15 // pred_region
          %p521 = scmp.lt.s32.totalorder %s46, 1
          %s522 = scalar_select %p521, %s46, 1
          %s523 = smul.addr %s522, 32
          %s524 = smul.addr %s523, 4
          %s525 = scalar_lea.vmem %s5, %s524
        $region40: #{ebranchformer_encoder_forward.1} parent=15 // pred_fallthru
          _
        // Predicated region
        $region41: #{ebranchformer_encoder_forward.1} parent=15 // pred_check
          %p526 = pneg %p226
        $region42: #{ebranchformer_encoder_forward.1} parent=15 // pred_check_branch
          %528 = sbr.rel (%p526) target = $region44
        $region43: #{ebranchformer_encoder_forward.1} parent=15 // pred_region
          %s529 = sand.u32 %s38, 1
          %s530 = scalar_lea.sflag [#allocation6], %s529
          %s531 = sand.u32 %s216, 1
          %s532 = smul.addr %s531, 128
          %s533 = scalar_lea.vmem [#allocation7], %s532
          %s535 = ssub.s32 2048, 2048
          %536 = vsyncadd %s530, %s535
          %s537 = smul.addr %s46, 32
          %s538 = smul.addr %s537, 64
          %s539 = scalar_lea.hbm %s6, %s538
          %s540 = sshll.u32 %s533, 4
          %s541 = int_to_ptr.vmem [resolvable:$true] %s540
          %546 = dma.hbm_to_vmem [thread:$0]  %s539, 2048, %s541, %s530, 64, 64, 4
        $region44: #{ebranchformer_encoder_forward.1} parent=15 // pred_fallthru
          _
        // Predicated region
        $region45: #{ebranchformer_encoder_forward.1} parent=15 // pred_check
          %p547 = pneg %p252
        $region46: #{ebranchformer_encoder_forward.1} parent=15 // pred_check_branch
          %549 = sbr.rel (%p547) target = $region48
        $region47: #{ebranchformer_encoder_forward.1} parent=15 // pred_region
          %s550 = sand.u32 %s38, 1
          %s551 = scalar_lea.sflag [#allocation9], %s550
          %s552 = sand.u32 %s242, 1
          %s553 = smul.addr %s552, 192
          %s554 = scalar_lea.vmem [#allocation8], %s553
          %s556 = ssub.s32 3072, 3072
          %557 = vsyncadd %s551, %s556
          %s558 = smul.addr %s46, 48
          %s559 = smul.addr %s558, 64
          %s560 = scalar_lea.hbm %s7, %s559
          %s561 = sshll.u32 %s554, 4
          %s562 = int_to_ptr.vmem [resolvable:$true] %s561
          %567 = dma.hbm_to_vmem [thread:$0]  %s560, 3072, %s562, %s551, 192, 192, 12
        $region48: #{ebranchformer_encoder_forward.1} parent=15 // pred_fallthru
          _
        // Predicated region
        $region49: #{ebranchformer_encoder_forward.1} parent=15 // pred_check
          %p568 = pneg %p278
        $region50: #{ebranchformer_encoder_forward.1} parent=15 // pred_check_branch
          %570 = sbr.rel (%p568) target = $region52
        $region51: #{ebranchformer_encoder_forward.1} parent=15 // pred_region
          %s571 = sand.u32 %s38, 1
          %s572 = scalar_lea.sflag [#allocation9], %s571
          %s573 = sand.u32 %s268, 1
          %s574 = smul.addr %s573, 64
          %s575 = scalar_lea.vmem [#allocation10], %s574
          %s577 = ssub.s32 1024, 1024
          %578 = vsyncadd %s572, %s577
          %s579 = smul.addr %s46, 16
          %s580 = smul.addr %s579, 64
          %s581 = scalar_lea.hbm %s8, %s580
          %s582 = sshll.u32 %s575, 4
          %s583 = int_to_ptr.vmem [resolvable:$true] %s582
          %588 = dma.hbm_to_vmem [thread:$0]  %s581, 1024, %s583, %s572, 64, 64, 4
        $region52: #{ebranchformer_encoder_forward.1} parent=15 // pred_fallthru
          _
        // Predicated region
        $region53: #{ebranchformer_encoder_forward.1} parent=15 // pred_check
          %p589 = pneg %p304
        $region54: #{ebranchformer_encoder_forward.1} parent=15 // pred_check_branch
          %591 = sbr.rel (%p589) target = $region56
        $region55: #{ebranchformer_encoder_forward.1} parent=15 // pred_region
          %s592 = sand.u32 %s38, 1
          %s593 = scalar_lea.sflag [#allocation12], %s592
          %s594 = sand.u32 %s294, 1
          %s595 = smul.addr %s594, 128
          %s596 = scalar_lea.vmem [#allocation11], %s595
          %s598 = ssub.s32 2048, 2048
          %599 = vsyncadd %s593, %s598
          %s600 = smul.addr %s46, 32
          %s601 = smul.addr %s600, 64
          %s602 = scalar_lea.hbm %s9, %s601
          %s603 = sshll.u32 %s596, 4
          %s604 = int_to_ptr.vmem [resolvable:$true] %s603
          %609 = dma.hbm_to_vmem [thread:$0]  %s602, 2048, %s604, %s593, 128, 128, 8
        $region56: #{ebranchformer_encoder_forward.1} parent=15 // pred_fallthru
          _
        // Predicated region
        $region57: #{ebranchformer_encoder_forward.1} parent=15 // pred_check
          %p610 = pneg %p330
        $region58: #{ebranchformer_encoder_forward.1} parent=15 // pred_check_branch
          %612 = sbr.rel (%p610) target = $region60
        $region59: #{ebranchformer_encoder_forward.1} parent=15 // pred_region
          %s613 = sand.u32 %s38, 1
          %s614 = scalar_lea.sflag [#allocation12], %s613
          %s615 = sand.u32 %s320, 1
          %s616 = smul.addr %s615, 64
          %s617 = scalar_lea.vmem [#allocation13], %s616
          %s619 = ssub.s32 1024, 1024
          %620 = vsyncadd %s614, %s619
          %s621 = smul.addr %s46, 16
          %s622 = smul.addr %s621, 64
          %s623 = scalar_lea.hbm %s10, %s622
          %s624 = sshll.u32 %s617, 4
          %s625 = int_to_ptr.vmem [resolvable:$true] %s624
          %630 = dma.hbm_to_vmem [thread:$0]  %s623, 1024, %s625, %s614, 64, 64, 4
        $region60: #{ebranchformer_encoder_forward.1} parent=15 // pred_fallthru
          _
        // Predicated region
        $region61: #{ebranchformer_encoder_forward.1} parent=15 // pred_check
          %p631 = pneg %p356
        $region62: #{ebranchformer_encoder_forward.1} parent=15 // pred_check_branch
          %633 = sbr.rel (%p631) target = $region64
        $region63: #{ebranchformer_encoder_forward.1} parent=15 // pred_region
          %s634 = sand.u32 %s38, 1
          %s635 = scalar_lea.sflag [#allocation15], %s634
          %s636 = sand.u32 %s346, 1
          %s637 = smul.addr %s636, 128
          %s638 = scalar_lea.vmem [#allocation14], %s637
          %s640 = ssub.s32 2048, 2048
          %641 = vsyncadd %s635, %s640
          %s642 = smul.addr %s46, 32
          %s643 = smul.addr %s642, 64
          %s644 = scalar_lea.hbm %s11, %s643
          %s645 = sshll.u32 %s638, 4
          %s646 = int_to_ptr.vmem [resolvable:$true] %s645
          %651 = dma.hbm_to_vmem [thread:$0]  %s644, 2048, %s646, %s635, 64, 64, 4
        $region64: #{ebranchformer_encoder_forward.1} parent=15 // pred_fallthru
          _
        // Predicated region
        $region65: #{ebranchformer_encoder_forward.1} parent=15 // pred_check
          %p652 = pneg %p382
        $region66: #{ebranchformer_encoder_forward.1} parent=15 // pred_check_branch
          %654 = sbr.rel (%p652) target = $region68
        $region67: #{ebranchformer_encoder_forward.1} parent=15 // pred_region
          %s655 = sand.u32 %s38, 1
          %s656 = scalar_lea.sflag [#allocation15], %s655
          %s657 = sand.u32 %s372, 1
          %s658 = smul.addr %s657, 128
          %s659 = scalar_lea.vmem [#allocation16], %s658
          %s661 = ssub.s32 2048, 2048
          %662 = vsyncadd %s656, %s661
          %s663 = smul.addr %s46, 32
          %s664 = smul.addr %s663, 64
          %s665 = scalar_lea.hbm %s12, %s664
          %s666 = sshll.u32 %s659, 4
          %s667 = int_to_ptr.vmem [resolvable:$true] %s666
          %672 = dma.hbm_to_vmem [thread:$0]  %s665, 2048, %s667, %s656, 128, 128, 8
        $region68: #{ebranchformer_encoder_forward.1} parent=15 // pred_fallthru
          _
        // Predicated region
        $region69: #{ebranchformer_encoder_forward.1} parent=15 // pred_check
          %p673 = pneg %p408
        $region70: #{ebranchformer_encoder_forward.1} parent=15 // pred_check_branch
          %675 = sbr.rel (%p673) target = $region72
        $region71: #{ebranchformer_encoder_forward.1} parent=15 // pred_region
          %s676 = sand.u32 %s398, 1
          %s677 = scalar_lea.sflag [#allocation18], %s676
          %s678 = sand.u32 %s398, 1
          %s679 = smul.addr %s678, 128
          %s680 = scalar_lea.vmem [#allocation17], %s679
          %s682 = ssub.s32 2048, 2048
          %683 = vsyncadd %s677, %s682
          %s684 = smul.addr %s46, 32
          %s685 = smul.addr %s684, 64
          %s686 = scalar_lea.hbm %s13, %s685
          %s687 = sshll.u32 %s680, 4
          %s688 = int_to_ptr.vmem [resolvable:$true] %s687
          %693 = dma.hbm_to_vmem [thread:$0]  %s686, 2048, %s688, %s677, 64, 64, 4
        $region72: #{ebranchformer_encoder_forward.1} parent=15 // pred_fallthru
          _
      $region16: #{ebranchformer_encoder_forward.1} parent=5 // pred_fallthru
        _
      %p694 = scmp.le.s32.totalorder 1, %s38
      %p695 = scmp.lt.s32.totalorder %s38, 5
      %p696 = pnand %p694, %p695
      %p697 = pneg %p696
      // Predicated region
      $region73: #{ebranchformer_encoder_forward.1} parent=5 // pred_check
        _
      $region74: #{ebranchformer_encoder_forward.1} parent=5 // pred_check_branch
        %699 = sbr.rel (%p696) target = $region76
      $region75: #{ebranchformer_encoder_forward.1} parent=5 // pred_region
        %s700 = ssub.s32 %s38, 1
        %s701 = sand.u32 %s141, 1
        %s702 = scalar_lea.sflag [#allocation4], %s701
        %s703 = sand.u32 %s141, 1
        %s704 = smul.addr %s703, 8
        %s705 = scalar_lea.vmem [#allocation3], %s704
        // Predicated region
        $region77: #{ebranchformer_encoder_forward.1} parent=75 // pred_check
          %p706 = pneg %p154
        $region78: #{ebranchformer_encoder_forward.1} parent=75 // pred_check_branch
          %708 = sbr.rel (%p706) target = $region80
        $region79: #{ebranchformer_encoder_forward.1} parent=75 // pred_region
          %709 = dma.done %s702, 128
        $region80: #{ebranchformer_encoder_forward.1} parent=75 // pred_fallthru
          _
        %s710 = sand.u32 %s43, 1
        %s711 = scalar_lea.sflag [#allocation6], %s710
        %s712 = sand.u32 %s167, 1
        %s713 = smul.addr %s712, 4
        %s714 = scalar_lea.vmem [#allocation5], %s713
        // Predicated region
        $region81: #{ebranchformer_encoder_forward.1} parent=75 // pred_check
          %p715 = pneg %p180
        $region82: #{ebranchformer_encoder_forward.1} parent=75 // pred_check_branch
          %717 = sbr.rel (%p715) target = $region84
        $region83: #{ebranchformer_encoder_forward.1} parent=75 // pred_region
          %718 = dma.done %s711, 64
        $region84: #{ebranchformer_encoder_forward.1} parent=75 // pred_fallthru
          _
        %s719 = sand.u32 %s43, 1
        %s720 = scalar_lea.sflag [#allocation6], %s719
        %s721 = sand.u32 %s219, 1
        %s722 = smul.addr %s721, 128
        %s723 = scalar_lea.vmem [#allocation7], %s722
        // Predicated region
        $region85: #{ebranchformer_encoder_forward.1} parent=75 // pred_check
          %p724 = pneg %p232
        $region86: #{ebranchformer_encoder_forward.1} parent=75 // pred_check_branch
          %726 = sbr.rel (%p724) target = $region88
        $region87: #{ebranchformer_encoder_forward.1} parent=75 // pred_region
          %727 = dma.done %s720, 2048
        $region88: #{ebranchformer_encoder_forward.1} parent=75 // pred_fallthru
          _
        %s728 = sand.u32 %s43, 1
        %s729 = scalar_lea.sflag [#allocation9], %s728
        %s730 = sand.u32 %s245, 1
        %s731 = smul.addr %s730, 192
        %s732 = scalar_lea.vmem [#allocation8], %s731
        // Predicated region
        $region89: #{ebranchformer_encoder_forward.1} parent=75 // pred_check
          %p733 = pneg %p258
        $region90: #{ebranchformer_encoder_forward.1} parent=75 // pred_check_branch
          %735 = sbr.rel (%p733) target = $region92
        $region91: #{ebranchformer_encoder_forward.1} parent=75 // pred_region
          %736 = dma.done %s729, 3072
        $region92: #{ebranchformer_encoder_forward.1} parent=75 // pred_fallthru
          _
        %s737 = sand.u32 %s43, 1
        %s738 = scalar_lea.sflag [#allocation9], %s737
        %s739 = sand.u32 %s271, 1
        %s740 = smul.addr %s739, 64
        %s741 = scalar_lea.vmem [#allocation10], %s740
        // Predicated region
        $region93: #{ebranchformer_encoder_forward.1} parent=75 // pred_check
          %p742 = pneg %p284
        $region94: #{ebranchformer_encoder_forward.1} parent=75 // pred_check_branch
          %744 = sbr.rel (%p742) target = $region96
        $region95: #{ebranchformer_encoder_forward.1} parent=75 // pred_region
          %745 = dma.done %s738, 1024
        $region96: #{ebranchformer_encoder_forward.1} parent=75 // pred_fallthru
          _
        %s746 = sand.u32 %s43, 1
        %s747 = scalar_lea.sflag [#allocation12], %s746
        %s748 = sand.u32 %s297, 1
        %s749 = smul.addr %s748, 128
        %s750 = scalar_lea.vmem [#allocation11], %s749
        // Predicated region
        $region97: #{ebranchformer_encoder_forward.1} parent=75 // pred_check
          %p751 = pneg %p310
        $region98: #{ebranchformer_encoder_forward.1} parent=75 // pred_check_branch
          %753 = sbr.rel (%p751) target = $region100
        $region99: #{ebranchformer_encoder_forward.1} parent=75 // pred_region
          %754 = dma.done %s747, 2048
        $region100: #{ebranchformer_encoder_forward.1} parent=75 // pred_fallthru
          _
        %s755 = sand.u32 %s43, 1
        %s756 = scalar_lea.sflag [#allocation12], %s755
        %s757 = sand.u32 %s323, 1
        %s758 = smul.addr %s757, 64
        %s759 = scalar_lea.vmem [#allocation13], %s758
        // Predicated region
        $region101: #{ebranchformer_encoder_forward.1} parent=75 // pred_check
          %p760 = pneg %p336
        $region102: #{ebranchformer_encoder_forward.1} parent=75 // pred_check_branch
          %762 = sbr.rel (%p760) target = $region104
        $region103: #{ebranchformer_encoder_forward.1} parent=75 // pred_region
          %763 = dma.done %s756, 1024
        $region104: #{ebranchformer_encoder_forward.1} parent=75 // pred_fallthru
          _
        %s764 = sand.u32 %s43, 1
        %s765 = scalar_lea.sflag [#allocation15], %s764
        %s766 = sand.u32 %s349, 1
        %s767 = smul.addr %s766, 128
        %s768 = scalar_lea.vmem [#allocation14], %s767
        // Predicated region
        $region105: #{ebranchformer_encoder_forward.1} parent=75 // pred_check
          %p769 = pneg %p362
        $region106: #{ebranchformer_encoder_forward.1} parent=75 // pred_check_branch
          %771 = sbr.rel (%p769) target = $region108
        $region107: #{ebranchformer_encoder_forward.1} parent=75 // pred_region
          %772 = dma.done %s765, 2048
        $region108: #{ebranchformer_encoder_forward.1} parent=75 // pred_fallthru
          _
        %s773 = sand.u32 %s43, 1
        %s774 = scalar_lea.sflag [#allocation15], %s773
        %s775 = sand.u32 %s375, 1
        %s776 = smul.addr %s775, 128
        %s777 = scalar_lea.vmem [#allocation16], %s776
        // Predicated region
        $region109: #{ebranchformer_encoder_forward.1} parent=75 // pred_check
          %p778 = pneg %p388
        $region110: #{ebranchformer_encoder_forward.1} parent=75 // pred_check_branch
          %780 = sbr.rel (%p778) target = $region112
        $region111: #{ebranchformer_encoder_forward.1} parent=75 // pred_region
          %781 = dma.done %s774, 2048
        $region112: #{ebranchformer_encoder_forward.1} parent=75 // pred_fallthru
          _
        %s782 = sand.u32 %s401, 1
        %s783 = scalar_lea.sflag [#allocation18], %s782
        %s784 = sand.u32 %s401, 1
        %s785 = smul.addr %s784, 128
        %s786 = scalar_lea.vmem [#allocation17], %s785
        // Predicated region
        $region113: #{ebranchformer_encoder_forward.1} parent=75 // pred_check
          %p787 = pneg %p414
        $region114: #{ebranchformer_encoder_forward.1} parent=75 // pred_check_branch
          %789 = sbr.rel (%p787) target = $region116
        $region115: #{ebranchformer_encoder_forward.1} parent=75 // pred_region
          %790 = dma.done %s783, 2048
        $region116: #{ebranchformer_encoder_forward.1} parent=75 // pred_fallthru
          _
        %p791 = scmp.lt.s32.totalorder %s47, 1
        %s792 = scalar_select %p791, %s47, 1
        %s793 = smul.addr %s792, 2
        %s794 = smul.addr %s793, 8
        %s795 = scalar_lea.vmem %s0, %s794
        %p796 = pneg %p76
        %p797 = pneg %p73
        %p798 = scmp.lt.s32.totalorder %s47, 1
        %s799 = scalar_select %p798, %s47, 1
        %s800 = scalar_lea.vmem %s1, %s799
        %p801 = pneg %p102
        %p802 = pneg %p99
        %p803 = scmp.lt.s32.totalorder %s48, 1
        %s804 = scalar_select %p803, %s48, 1
        %s805 = smul.addr %s804, 4
        %s806 = smul.addr %s805, 8
        %s807 = scalar_lea.vmem %s2, %s806
        %p808 = pneg %p128
        %p809 = pneg %p125
        %s810 = sand.u32 %s141, 1
        %s811 = scalar_lea.sflag [#allocation4], %s810
        %s812 = sand.u32 %s141, 1
        %s813 = smul.addr %s812, 8
        %s814 = scalar_lea.vmem [#allocation3], %s813
        %p815 = pneg %p154
        %p816 = pneg %p151
        %s817 = sand.u32 %s43, 1
        %s818 = scalar_lea.sflag [#allocation6], %s817
        %s819 = sand.u32 %s167, 1
        %s820 = smul.addr %s819, 4
        %s821 = scalar_lea.vmem [#allocation5], %s820
        %p822 = pneg %p180
        %p823 = pneg %p177
        %p824 = scmp.lt.s32.totalorder %s48, 1
        %s825 = scalar_select %p824, %s48, 1
        %s826 = smul.addr %s825, 32
        %s827 = smul.addr %s826, 4
        %s828 = scalar_lea.vmem %s5, %s827
        %p829 = pneg %p206
        %p830 = pneg %p203
        %s831 = sand.u32 %s43, 1
        %s832 = scalar_lea.sflag [#allocation6], %s831
        %s833 = sand.u32 %s219, 1
        %s834 = smul.addr %s833, 128
        %s835 = scalar_lea.vmem [#allocation7], %s834
        %p836 = pneg %p232
        %p837 = pneg %p229
        %s838 = sand.u32 %s43, 1
        %s839 = scalar_lea.sflag [#allocation9], %s838
        %s840 = sand.u32 %s245, 1
        %s841 = smul.addr %s840, 192
        %s842 = scalar_lea.vmem [#allocation8], %s841
        %p843 = pneg %p258
        %p844 = pneg %p255
        %s845 = sand.u32 %s43, 1
        %s846 = scalar_lea.sflag [#allocation9], %s845
        %s847 = sand.u32 %s271, 1
        %s848 = smul.addr %s847, 64
        %s849 = scalar_lea.vmem [#allocation10], %s848
        %p850 = pneg %p284
        %p851 = pneg %p281
        %s852 = sand.u32 %s43, 1
        %s853 = scalar_lea.sflag [#allocation12], %s852
        %s854 = sand.u32 %s297, 1
        %s855 = smul.addr %s854, 128
        %s856 = scalar_lea.vmem [#allocation11], %s855
        %p857 = pneg %p310
        %p858 = pneg %p307
        %s859 = sand.u32 %s43, 1
        %s860 = scalar_lea.sflag [#allocation12], %s859
        %s861 = sand.u32 %s323, 1
        %s862 = smul.addr %s861, 64
        %s863 = scalar_lea.vmem [#allocation13], %s862
        %p864 = pneg %p336
        %p865 = pneg %p333
        %s866 = sand.u32 %s43, 1
        %s867 = scalar_lea.sflag [#allocation15], %s866
        %s868 = sand.u32 %s349, 1
        %s869 = smul.addr %s868, 128
        %s870 = scalar_lea.vmem [#allocation14], %s869
        %p871 = pneg %p362
        %p872 = pneg %p359
        %s873 = sand.u32 %s43, 1
        %s874 = scalar_lea.sflag [#allocation15], %s873
        %s875 = sand.u32 %s375, 1
        %s876 = smul.addr %s875, 128
        %s877 = scalar_lea.vmem [#allocation16], %s876
        %p878 = pneg %p388
        %p879 = pneg %p385
        %s880 = sand.u32 %s401, 1
        %s881 = scalar_lea.sflag [#allocation18], %s880
        %s882 = sand.u32 %s401, 1
        %s883 = smul.addr %s882, 128
        %s884 = scalar_lea.vmem [#allocation17], %s883
        %p885 = pneg %p414
        %p886 = pneg %p411
        %p887 = pneg %p440
        %p888 = pneg %p437
        %p889 = scmp.lt.s32.totalorder %s47, 1
        %s890 = scalar_select %p889, %s47, 1
        %s891 = smul.addr %s890, 2
        %s892 = smul.addr %s891, 8
        %s893 = scalar_lea.vmem %s14, %s892
        %p894 = scmp.lt.s32.totalorder %s47, 1
        %s895 = scalar_select %p894, %s47, 1
        %s896 = smul.addr %s895, 2
        %s897 = smul.addr %s896, 8
        %s898 = scalar_lea.vmem %s0, %s897
        %p899 = scmp.lt.s32.totalorder %s47, 1
        %s900 = scalar_select %p899, %s47, 1
        %s901 = scalar_lea.vmem %s1, %s900
        %p902 = scmp.lt.s32.totalorder %s48, 1
        %s903 = scalar_select %p902, %s48, 1
        %s904 = smul.addr %s903, 4
        %s905 = smul.addr %s904, 8
        %s906 = scalar_lea.vmem %s2, %s905
        %p907 = scmp.lt.s32.totalorder %s48, 1
        %s908 = scalar_select %p907, %s48, 1
        %s909 = smul.addr %s908, 32
        %s910 = smul.addr %s909, 4
        %s911 = scalar_lea.vmem %s5, %s910
        %p912 = scmp.lt.s32.totalorder %s47, 1
        %s913 = scalar_select %p912, %s47, 1
        %s914 = smul.addr %s913, 2
        %s915 = smul.addr %s914, 8
        %s916 = scalar_lea.vmem %s14, %s915
        %p918 = scmp.eq.s32.totalorder %s48, 0
        // Predicated region
        $region117: #{ebranchformer_encoder_forward.1} parent=75 // pred_check
          %p919 = pneg %p918
        $region118: #{ebranchformer_encoder_forward.1} parent=75 // pred_check_branch
          %921 = sbr.rel (%p919) target = $region120
        $region119: #{ebranchformer_encoder_forward.1} parent=75 // pred_region
          %v922 = vld [vmem:[%s898] sm:$0xff]
          %v923 = vld [vmem:[%s898 + $0x8] sm:$0xff]
          %924 = vst [vmem:[#allocation2] sm:$0xff] %v922
          %925 = vst [vmem:[#allocation2 + $0x8] sm:$0xff] %v923
        $region120: #{ebranchformer_encoder_forward.1} parent=75 // pred_fallthru
          _
        %v926 = vld [vmem:[#allocation2] sm:$0xff]
        %v927 = vld [vmem:[#allocation2 + $0x8] sm:$0xff]
        %v928 = vld [vmem:[%s906] sm:$0xff]
        %v929 = vld [vmem:[%s906 + $0x8] sm:$0xff]
        %v930 = vld [vmem:[%s906 + $0x10] sm:$0xff]
        %v931 = vld [vmem:[%s906 + $0x18] sm:$0x3]
        %v932 = vld [vmem:[%s705] sm:$0xff]
        %v933 = vld [vmem:[%s714] sm:$0xf]
        %v934 = vlaneseq
        %v935 = vshrl.u32 %v934, 7
        %v936 = vadd.s32 %v935, 8
        %v937 = vadd.s32 %v935, 4294967295
        %v938 = vadd.s32 %v936, 4294967295
        %vm939 = vcmp.ge.s32.totalorder %v937, 0
        %vm940 = vcmp.ge.s32.totalorder %v938, 0
        %vm941 = vcmp.lt.s32.totalorder %v937, 16
        %vm942 = vcmp.lt.s32.totalorder %v938, 16
        %vm943 = vmand %vm939, %vm941
        %vm944 = vmand %vm940, %vm942
        %v945 = vadd.s32 %v935, 1
        %v946 = vadd.s32 %v936, 1
        %vm947 = vcmp.ge.s32.totalorder %v945, 0
        %vm948 = vcmp.ge.s32.totalorder %v946, 0
        %vm949 = vcmp.lt.s32.totalorder %v945, 16
        %vm950 = vcmp.lt.s32.totalorder %v946, 16
        %vm951 = vmand %vm947, %vm949
        %vm952 = vmand %vm948, %vm950
        %953 = vadd.xlane.f32.xlu0 %v926
        %v954 = vpop.xlane.xlu0 %953
        %955 = vadd.xlane.f32.xlu0 %v927
        %v956 = vpop.xlane.xlu0 %955
        %v957 = vrcp.pop 128.0
        %v958 = vmul.f32 %v954, %v957
        %v959 = vmul.f32 %v956, %v957
        %v960 = vsub.f32 %v926, %v958
        %v961 = vsub.f32 %v927, %v959
        %v962 = vmul.f32 %v960, %v960
        %v963 = vmul.f32 %v961, %v961
        %964 = vadd.xlane.f32.xlu0 %v962
        %v965 = vpop.xlane.xlu0 %964
        %966 = vadd.xlane.f32.xlu0 %v963
        %v967 = vpop.xlane.xlu0 %966
        %v968 = vmul.f32 %v965, %v957
        %v969 = vmul.f32 %v967, %v957
        %v970 = vadd.f32 %v968, 1e-05
        %v971 = vadd.f32 %v969, 1e-05
        %v972 = vrsqrt.pop %v970
        %v973 = vrsqrt.pop %v971
        %v974 = vmul.f32 %v960, %v972
        %v975 = vmul.f32 %v961, %v973
        %v976 = vlaneseq
        %v977 = vshrl.u32 %v976, 7
        %v978 = vsub.s32 0, %v977
        %v979 = vrot.slane %v928, %v978
        %v980 = vmul.f32 %v974, %v979
        %v981 = vmul.f32 %v975, %v979
        %v982 = vlaneseq
        %v983 = vshrl.u32 %v982, 7
        %v984 = vsub.s32 1, %v983
        %v985 = vrot.slane %v928, %v984
        %v986 = vadd.f32 %v980, %v985
        %v987 = vadd.f32 %v981, %v985
        %v988 = vld [vmem:[%s911] sm:$0xff]
        %v989 = vld [vmem:[%s911 + $0x8] sm:$0xff]
        %v990 = vld [vmem:[%s911 + $0x10] sm:$0xff]
        %v991 = vld [vmem:[%s911 + $0x18] sm:$0xff]
        %v992 = vld [vmem:[%s911 + $0x20] sm:$0xff]
        %v993 = vld [vmem:[%s911 + $0x28] sm:$0xff]
        %v994 = vld [vmem:[%s911 + $0x30] sm:$0xff]
        %v995 = vld [vmem:[%s911 + $0x38] sm:$0xff]
        %v996 = vld [vmem:[%s911 + $0x40] sm:$0xff]
        %v997 = vld [vmem:[%s911 + $0x48] sm:$0xff]
        %v998 = vld [vmem:[%s911 + $0x50] sm:$0xff]
        %v999 = vld [vmem:[%s911 + $0x58] sm:$0xff]
        %v1000 = vld [vmem:[%s911 + $0x60] sm:$0xff]
        %v1001 = vld [vmem:[%s911 + $0x68] sm:$0xff]
        %v1002 = vld [vmem:[%s911 + $0x70] sm:$0xff]
        %v1003 = vld [vmem:[%s911 + $0x78] sm:$0xff]
        %v1004 = vpack.c.bf16 %v987, %v986
        %v1006 = vlaneseq
        %v1007 = vshrl.u32 %v1006, 7
        %v1008 = vsub.s32 0, %v1007
        %v1009 = vrot.slane %v933, %v1008
        %v1010 = vlaneseq
        %v1011 = vshrl.u32 %v1010, 7
        %v1012 = vsub.s32 2, %v1011
        %v1013 = vrot.slane %v933, %v1012
        %v1016 = vlaneseq
        %v1017 = vshrl.u32 %v1016, 7
        %v1018 = vsub.s32 0, %v1017
        %v1019 = vrot.slane %v1009, %v1018
        %v1020 = vlaneseq
        %v1021 = vshrl.u32 %v1020, 7
        %v1022 = vsub.s32 0, %v1021
        %v1023 = vrot.slane %v1013, %v1022
        %v1040 = vunpack.c.l.b16 %v988
        %v1041 = vunpack.c.h.b16 %v988
        %v1042 = vunpack.c.l.b16 %v989
        %v1043 = vunpack.c.h.b16 %v989
        %v1044 = vunpack.c.l.b16 %v990
        %v1045 = vunpack.c.h.b16 %v990
        %v1046 = vunpack.c.l.b16 %v991
        %v1047 = vunpack.c.h.b16 %v991
        %v1048 = vunpack.c.l.b16 %v992
        %v1049 = vunpack.c.h.b16 %v992
        %v1050 = vunpack.c.l.b16 %v993
        %v1051 = vunpack.c.h.b16 %v993
        %v1052 = vunpack.c.l.b16 %v994
        %v1053 = vunpack.c.h.b16 %v994
        %v1054 = vunpack.c.l.b16 %v995
        %v1055 = vunpack.c.h.b16 %v995
        %v1056 = vunpack.c.l.b16 %v996
        %v1057 = vunpack.c.h.b16 %v996
        %v1058 = vunpack.c.l.b16 %v997
        %v1059 = vunpack.c.h.b16 %v997
        %v1060 = vunpack.c.l.b16 %v998
        %v1061 = vunpack.c.h.b16 %v998
        %v1062 = vunpack.c.l.b16 %v999
        %v1063 = vunpack.c.h.b16 %v999
        %v1064 = vunpack.c.l.b16 %v1000
        %v1065 = vunpack.c.h.b16 %v1000
        %v1066 = vunpack.c.l.b16 %v1001
        %v1067 = vunpack.c.h.b16 %v1001
        %v1068 = vunpack.c.l.b16 %v1002
        %v1069 = vunpack.c.h.b16 %v1002
        %v1070 = vunpack.c.l.b16 %v1003
        %v1071 = vunpack.c.h.b16 %v1003
        %v1072 = vpack.c.b16 %v1042, %v1040
        %v1073 = vpack.c.b16 %v1043, %v1041
        %v1074 = vpack.c.b16 %v1046, %v1044
        %v1075 = vpack.c.b16 %v1047, %v1045
        %v1076 = vpack.c.b16 %v1050, %v1048
        %v1077 = vpack.c.b16 %v1051, %v1049
        %v1078 = vpack.c.b16 %v1054, %v1052
        %v1079 = vpack.c.b16 %v1055, %v1053
        %v1080 = vpack.c.b16 %v1058, %v1056
        %v1081 = vpack.c.b16 %v1059, %v1057
        %v1082 = vpack.c.b16 %v1062, %v1060
        %v1083 = vpack.c.b16 %v1063, %v1061
        %v1084 = vpack.c.b16 %v1066, %v1064
        %v1085 = vpack.c.b16 %v1067, %v1065
        %v1086 = vpack.c.b16 %v1070, %v1068
        %v1087 = vpack.c.b16 %v1071, %v1069
        %1104 = vmatprep.subr.bf16.mxu0 %v1087
        %1105 = vmatpush1.bf16.msra.mxu0 %v1086
        %1106 = vmatprep.subr.bf16.mxu0 %v1085
        %1107 = vmatpush1.bf16.msra.mxu0 %v1084
        %1108 = vmatprep.subr.bf16.mxu0 %v1083
        %1109 = vmatpush1.bf16.msra.mxu0 %v1082
        %1110 = vmatprep.subr.bf16.mxu0 %v1081
        %1111 = vmatpush1.bf16.msra.mxu0 %v1080
        %1112 = vmatprep.subr.bf16.mxu0 %v1079
        %1113 = vmatpush1.bf16.msra.mxu0 %v1078
        %1114 = vmatprep.subr.bf16.mxu0 %v1077
        %1115 = vmatpush1.bf16.msra.mxu0 %v1076
        %1116 = vmatprep.subr.bf16.mxu0 %v1075
        %1117 = vmatpush1.bf16.msra.mxu0 %v1074
        %1118 = vmatprep.subr.bf16.mxu0 %v1073
        %1119 = vmatpush1.bf16.msra.mxu0 %v1072
        %1120 = vmatprep.subr.bf16.mxu0 0
        %1121 = vmatpush2.bf16.msra.mxu0 0
        %1122 = vmatprep.subr.bf16.mxu0 0
        %1123 = vmatpush2.bf16.msra.mxu0 0
        %1124 = vmatprep.subr.bf16.mxu0 0
        %1125 = vmatpush2.bf16.msra.mxu0 0
        %1126 = vmatprep.subr.bf16.mxu0 0
        %1127 = vmatpush2.bf16.msra.mxu0 0
        %1128 = vmatprep.subr.bf16.mxu0 0
        %1129 = vmatpush2.bf16.msra.mxu0 0
        %1130 = vmatprep.subr.bf16.mxu0 0
        %1131 = vmatpush2.bf16.msra.mxu0 0
        %1132 = vmatprep.subr.bf16.mxu0 0
        %1133 = vmatpush2.bf16.msra.mxu0 0
        %1134 = vmatprep.subr.bf16.mxu0 0
        %1135 = vmatpush2.bf16.msra.mxu0 0
        %1136 = vmatprep.mubr.bf16.mxu0 0
        %1137 = vmatmul.mubr.bf16.gmra.mxu0 %v1004
        %v1138 = vpop.f32.mrf.mxu0
        %v1139 = vadd.f32 %v1019, %v1138
        %v1140 = vpop.f32.mrf.mxu0
        %v1141 = vadd.f32 %v1023, %v1140
        %v1142 = vpop.f32.mrf.mxu0
        %v1143 = vadd.f32 %v1019, %v1142
        %v1144 = vpop.f32.mrf.mxu0
        %v1145 = vadd.f32 %v1023, %v1144
        %1146 = vdwg.mxu0
        %v1147 = vxor.u32 %v1139, 2147483648
        %v1148 = vxor.u32 %v1141, 2147483648
        %v1149 = vxor.u32 %v1143, 2147483648
        %v1150 = vxor.u32 %v1145, 2147483648
        %v1151 = vmul.f32 %v1147, 1.442695
        %v1152 = vpow.pop %v1151
        %v1153 = vmul.f32 %v1148, 1.442695
        %v1154 = vpow.pop %v1153
        %v1155 = vmul.f32 %v1149, 1.442695
        %v1156 = vpow.pop %v1155
        %v1157 = vmul.f32 %v1150, 1.442695
        %v1158 = vpow.pop %v1157
        %v1159 = vadd.f32 %v1152, 1.0
        %v1160 = vadd.f32 %v1154, 1.0
        %v1161 = vadd.f32 %v1156, 1.0
        %v1162 = vadd.f32 %v1158, 1.0
        %v1163 = vrcp.pop %v1159
        %v1164 = vmul.f32 1.0, %v1163
        %v1165 = vrcp.pop %v1160
        %v1166 = vmul.f32 1.0, %v1165
        %v1167 = vrcp.pop %v1161
        %v1168 = vmul.f32 1.0, %v1167
        %v1169 = vrcp.pop %v1162
        %v1170 = vmul.f32 1.0, %v1169
        %v1171 = vmul.f32 %v1139, %v1164
        %v1172 = vmul.f32 %v1141, %v1166
        %v1173 = vmul.f32 %v1143, %v1168
        %v1174 = vmul.f32 %v1145, %v1170
        %v1175 = vld [vmem:[%s723] sm:$0xf]
        %v1176 = vld [vmem:[%s723 + $0x4] sm:$0xf]
        %v1177 = vld [vmem:[%s723 + $0x8] sm:$0xf]
        %v1178 = vld [vmem:[%s723 + $0xc] sm:$0xf]
        %v1179 = vld [vmem:[%s723 + $0x10] sm:$0xf]
        %v1180 = vld [vmem:[%s723 + $0x14] sm:$0xf]
        %v1181 = vld [vmem:[%s723 + $0x18] sm:$0xf]
        %v1182 = vld [vmem:[%s723 + $0x1c] sm:$0xf]
        %v1183 = vld [vmem:[%s723 + $0x20] sm:$0xf]
        %v1184 = vld [vmem:[%s723 + $0x24] sm:$0xf]
        %v1185 = vld [vmem:[%s723 + $0x28] sm:$0xf]
        %v1186 = vld [vmem:[%s723 + $0x2c] sm:$0xf]
        %v1187 = vld [vmem:[%s723 + $0x30] sm:$0xf]
        %v1188 = vld [vmem:[%s723 + $0x34] sm:$0xf]
        %v1189 = vld [vmem:[%s723 + $0x38] sm:$0xf]
        %v1190 = vld [vmem:[%s723 + $0x3c] sm:$0xf]
        %v1191 = vld [vmem:[%s723 + $0x40] sm:$0xf]
        %v1192 = vld [vmem:[%s723 + $0x44] sm:$0xf]
        %v1193 = vld [vmem:[%s723 + $0x48] sm:$0xf]
        %v1194 = vld [vmem:[%s723 + $0x4c] sm:$0xf]
        %v1195 = vld [vmem:[%s723 + $0x50] sm:$0xf]
        %v1196 = vld [vmem:[%s723 + $0x54] sm:$0xf]
        %v1197 = vld [vmem:[%s723 + $0x58] sm:$0xf]
        %v1198 = vld [vmem:[%s723 + $0x5c] sm:$0xf]
        %v1199 = vld [vmem:[%s723 + $0x60] sm:$0xf]
        %v1200 = vld [vmem:[%s723 + $0x64] sm:$0xf]
        %v1201 = vld [vmem:[%s723 + $0x68] sm:$0xf]
        %v1202 = vld [vmem:[%s723 + $0x6c] sm:$0xf]
        %v1203 = vld [vmem:[%s723 + $0x70] sm:$0xf]
        %v1204 = vld [vmem:[%s723 + $0x74] sm:$0xf]
        %v1205 = vld [vmem:[%s723 + $0x78] sm:$0xf]
        %v1206 = vld [vmem:[%s723 + $0x7c] sm:$0xf]
        %v1207 = vpack.c.bf16 %v1173, %v1171
        %v1208 = vpack.c.bf16 %v1174, %v1172
        %v1209 = vlaneseq
        %v1210 = vshrl.u32 %v1209, 7
        %v1211 = vsub.s32 2, %v1210
        %v1212 = vrot.slane %v928, %v1211
        %v1245 = vunpack.c.l.b16 %v1175
        %v1246 = vunpack.c.l.b16 %v1176
        %v1247 = vunpack.c.l.b16 %v1177
        %v1248 = vunpack.c.l.b16 %v1178
        %v1249 = vunpack.c.l.b16 %v1179
        %v1250 = vunpack.c.l.b16 %v1180
        %v1251 = vunpack.c.l.b16 %v1181
        %v1252 = vunpack.c.l.b16 %v1182
        %v1253 = vunpack.c.l.b16 %v1183
        %v1254 = vunpack.c.l.b16 %v1184
        %v1255 = vunpack.c.l.b16 %v1185
        %v1256 = vunpack.c.l.b16 %v1186
        %v1257 = vunpack.c.l.b16 %v1187
        %v1258 = vunpack.c.l.b16 %v1188
        %v1259 = vunpack.c.l.b16 %v1189
        %v1260 = vunpack.c.l.b16 %v1190
        %v1261 = vunpack.c.l.b16 %v1191
        %v1262 = vunpack.c.l.b16 %v1192
        %v1263 = vunpack.c.l.b16 %v1193
        %v1264 = vunpack.c.l.b16 %v1194
        %v1265 = vunpack.c.l.b16 %v1195
        %v1266 = vunpack.c.l.b16 %v1196
        %v1267 = vunpack.c.l.b16 %v1197
        %v1268 = vunpack.c.l.b16 %v1198
        %v1269 = vunpack.c.l.b16 %v1199
        %v1270 = vunpack.c.l.b16 %v1200
        %v1271 = vunpack.c.l.b16 %v1201
        %v1272 = vunpack.c.l.b16 %v1202
        %v1273 = vunpack.c.l.b16 %v1203
        %v1274 = vunpack.c.l.b16 %v1204
        %v1275 = vunpack.c.l.b16 %v1205
        %v1276 = vunpack.c.l.b16 %v1206
        %v1277 = vpack.c.b16 %v1246, %v1245
        %v1278 = vpack.c.b16 %v1248, %v1247
        %v1279 = vpack.c.b16 %v1250, %v1249
        %v1280 = vpack.c.b16 %v1252, %v1251
        %v1281 = vpack.c.b16 %v1254, %v1253
        %v1282 = vpack.c.b16 %v1256, %v1255
        %v1283 = vpack.c.b16 %v1258, %v1257
        %v1284 = vpack.c.b16 %v1260, %v1259
        %v1285 = vpack.c.b16 %v1262, %v1261
        %v1286 = vpack.c.b16 %v1264, %v1263
        %v1287 = vpack.c.b16 %v1266, %v1265
        %v1288 = vpack.c.b16 %v1268, %v1267
        %v1289 = vpack.c.b16 %v1270, %v1269
        %v1290 = vpack.c.b16 %v1272, %v1271
        %v1291 = vpack.c.b16 %v1274, %v1273
        %v1292 = vpack.c.b16 %v1276, %v1275
        %1309 = vmatprep.subr.bf16.mxu0 0
        %1310 = vmatpush1.bf16.msra.mxu0 %v1284
        %1311 = vmatprep.subr.bf16.mxu0 0
        %1312 = vmatpush1.bf16.msra.mxu0 %v1283
        %1313 = vmatprep.subr.bf16.mxu0 0
        %1314 = vmatpush1.bf16.msra.mxu0 %v1282
        %1315 = vmatprep.subr.bf16.mxu0 0
        %1316 = vmatpush1.bf16.msra.mxu0 %v1281
        %1317 = vmatprep.subr.bf16.mxu0 0
        %1318 = vmatpush1.bf16.msra.mxu0 %v1280
        %1319 = vmatprep.subr.bf16.mxu0 0
        %1320 = vmatpush1.bf16.msra.mxu0 %v1279
        %1321 = vmatprep.subr.bf16.mxu0 0
        %1322 = vmatpush1.bf16.msra.mxu0 %v1278
        %1323 = vmatprep.subr.bf16.mxu0 0
        %1324 = vmatpush1.bf16.msra.mxu0 %v1277
        %1325 = vmatprep.subr.bf16.mxu0 0
        %1326 = vmatpush2.bf16.msra.mxu0 %v1292
        %1327 = vmatprep.subr.bf16.mxu0 0
        %1328 = vmatpush2.bf16.msra.mxu0 %v1291
        %1329 = vmatprep.subr.bf16.mxu0 0
        %1330 = vmatpush2.bf16.msra.mxu0 %v1290
        %1331 = vmatprep.subr.bf16.mxu0 0
        %1332 = vmatpush2.bf16.msra.mxu0 %v1289
        %1333 = vmatprep.subr.bf16.mxu0 0
        %1334 = vmatpush2.bf16.msra.mxu0 %v1288
        %1335 = vmatprep.subr.bf16.mxu0 0
        %1336 = vmatpush2.bf16.msra.mxu0 %v1287
        %1337 = vmatprep.subr.bf16.mxu0 0
        %1338 = vmatpush2.bf16.msra.mxu0 %v1286
        %1339 = vmatprep.subr.bf16.mxu0 0
        %1340 = vmatpush2.bf16.msra.mxu0 %v1285
        %1341 = vmatprep.mubr.bf16.mxu0 %v1208
        %1342 = vmatmul.mubr.bf16.gmra.mxu0 %v1207
        %v1343 = vpop.f32.mrf.mxu0
        %v1344 = vadd.f32 %v1212, %v1343
        %v1345 = vpop.f32.mrf.mxu0
        %v1346 = vpop.f32.mrf.mxu0
        %v1347 = vadd.f32 %v1212, %v1346
        %v1348 = vpop.f32.mrf.mxu0
        %1349 = vdwg.mxu0
        %v1350 = vmul.f32 %v1344, 0.5
        %v1351 = vmul.f32 %v1347, 0.5
        %v1352 = vadd.f32 %v1350, %v926
        %v1353 = vadd.f32 %v1351, %v927
        %1354 = vadd.xlane.f32.xlu0 %v1352
        %v1355 = vpop.xlane.xlu0 %1354
        %1356 = vadd.xlane.f32.xlu0 %v1353
        %v1357 = vpop.xlane.xlu0 %1356
        %v1358 = vmul.f32 %v1355, %v957
        %v1359 = vmul.f32 %v1357, %v957
        %v1360 = vsub.f32 %v1352, %v1358
        %v1361 = vsub.f32 %v1353, %v1359
        %v1362 = vmul.f32 %v1360, %v1360
        %v1363 = vmul.f32 %v1361, %v1361
        %1364 = vadd.xlane.f32.xlu0 %v1362
        %v1365 = vpop.xlane.xlu0 %1364
        %1366 = vadd.xlane.f32.xlu0 %v1363
        %v1367 = vpop.xlane.xlu0 %1366
        %v1368 = vmul.f32 %v1365, %v957
        %v1369 = vmul.f32 %v1367, %v957
        %v1370 = vadd.f32 %v1368, 1e-05
        %v1371 = vadd.f32 %v1369, 1e-05
        %v1372 = vrsqrt.pop %v1370
        %v1373 = vrsqrt.pop %v1371
        %v1374 = vmul.f32 %v1360, %v1372
        %v1375 = vmul.f32 %v1361, %v1373
        %v1376 = vlaneseq
        %v1377 = vshrl.u32 %v1376, 7
        %v1378 = vsub.s32 3, %v1377
        %v1379 = vrot.slane %v928, %v1378
        %v1380 = vmul.f32 %v1374, %v1379
        %v1381 = vmul.f32 %v1375, %v1379
        %v1382 = vlaneseq
        %v1383 = vshrl.u32 %v1382, 7
        %v1384 = vsub.s32 4, %v1383
        %v1385 = vrot.slane %v928, %v1384
        %v1386 = vadd.f32 %v1380, %v1385
        %v1387 = vadd.f32 %v1381, %v1385
        %v1388 = vld [vmem:[%s732] sm:$0xff]
        %v1389 = vld [vmem:[%s732 + $0x8] sm:$0xf]
        %v1390 = vld [vmem:[%s732 + $0xc] sm:$0xff]
        %v1391 = vld [vmem:[%s732 + $0x14] sm:$0xf]
        %v1392 = vld [vmem:[%s732 + $0x18] sm:$0xff]
        %v1393 = vld [vmem:[%s732 + $0x20] sm:$0xf]
        %v1394 = vld [vmem:[%s732 + $0x24] sm:$0xff]
        %v1395 = vld [vmem:[%s732 + $0x2c] sm:$0xf]
        %v1396 = vld [vmem:[%s732 + $0x30] sm:$0xff]
        %v1397 = vld [vmem:[%s732 + $0x38] sm:$0xf]
        %v1398 = vld [vmem:[%s732 + $0x3c] sm:$0xff]
        %v1399 = vld [vmem:[%s732 + $0x44] sm:$0xf]
        %v1400 = vld [vmem:[%s732 + $0x48] sm:$0xff]
        %v1401 = vld [vmem:[%s732 + $0x50] sm:$0xf]
        %v1402 = vld [vmem:[%s732 + $0x54] sm:$0xff]
        %v1403 = vld [vmem:[%s732 + $0x5c] sm:$0xf]
        %v1404 = vld [vmem:[%s732 + $0x60] sm:$0xff]
        %v1405 = vld [vmem:[%s732 + $0x68] sm:$0xf]
        %v1406 = vld [vmem:[%s732 + $0x6c] sm:$0xff]
        %v1407 = vld [vmem:[%s732 + $0x74] sm:$0xf]
        %v1408 = vld [vmem:[%s732 + $0x78] sm:$0xff]
        %v1409 = vld [vmem:[%s732 + $0x80] sm:$0xf]
        %v1410 = vld [vmem:[%s732 + $0x84] sm:$0xff]
        %v1411 = vld [vmem:[%s732 + $0x8c] sm:$0xf]
        %v1412 = vld [vmem:[%s732 + $0x90] sm:$0xff]
        %v1413 = vld [vmem:[%s732 + $0x98] sm:$0xf]
        %v1414 = vld [vmem:[%s732 + $0x9c] sm:$0xff]
        %v1415 = vld [vmem:[%s732 + $0xa4] sm:$0xf]
        %v1416 = vld [vmem:[%s732 + $0xa8] sm:$0xff]
        %v1417 = vld [vmem:[%s732 + $0xb0] sm:$0xf]
        %v1418 = vld [vmem:[%s732 + $0xb4] sm:$0xff]
        %v1419 = vld [vmem:[%s732 + $0xbc] sm:$0xf]
        %v1420 = vpack.c.bf16 %v1387, %v1386
        %v1453 = vunpack.c.l.b16 %v1388
        %v1454 = vunpack.c.h.b16 %v1388
        %v1455 = vunpack.c.l.b16 %v1389
        %v1456 = vunpack.c.l.b16 %v1390
        %v1457 = vunpack.c.h.b16 %v1390
        %v1458 = vunpack.c.l.b16 %v1391
        %v1459 = vunpack.c.l.b16 %v1392
        %v1460 = vunpack.c.h.b16 %v1392
        %v1461 = vunpack.c.l.b16 %v1393
        %v1462 = vunpack.c.l.b16 %v1394
        %v1463 = vunpack.c.h.b16 %v1394
        %v1464 = vunpack.c.l.b16 %v1395
        %v1465 = vunpack.c.l.b16 %v1396
        %v1466 = vunpack.c.h.b16 %v1396
        %v1467 = vunpack.c.l.b16 %v1397
        %v1468 = vunpack.c.l.b16 %v1398
        %v1469 = vunpack.c.h.b16 %v1398
        %v1470 = vunpack.c.l.b16 %v1399
        %v1471 = vunpack.c.l.b16 %v1400
        %v1472 = vunpack.c.h.b16 %v1400
        %v1473 = vunpack.c.l.b16 %v1401
        %v1474 = vunpack.c.l.b16 %v1402
        %v1475 = vunpack.c.h.b16 %v1402
        %v1476 = vunpack.c.l.b16 %v1403
        %v1477 = vunpack.c.l.b16 %v1404
        %v1478 = vunpack.c.h.b16 %v1404
        %v1479 = vunpack.c.l.b16 %v1405
        %v1480 = vunpack.c.l.b16 %v1406
        %v1481 = vunpack.c.h.b16 %v1406
        %v1482 = vunpack.c.l.b16 %v1407
        %v1483 = vunpack.c.l.b16 %v1408
        %v1484 = vunpack.c.h.b16 %v1408
        %v1485 = vunpack.c.l.b16 %v1409
        %v1486 = vunpack.c.l.b16 %v1410
        %v1487 = vunpack.c.h.b16 %v1410
        %v1488 = vunpack.c.l.b16 %v1411
        %v1489 = vunpack.c.l.b16 %v1412
        %v1490 = vunpack.c.h.b16 %v1412
        %v1491 = vunpack.c.l.b16 %v1413
        %v1492 = vunpack.c.l.b16 %v1414
        %v1493 = vunpack.c.h.b16 %v1414
        %v1494 = vunpack.c.l.b16 %v1415
        %v1495 = vunpack.c.l.b16 %v1416
        %v1496 = vunpack.c.h.b16 %v1416
        %v1497 = vunpack.c.l.b16 %v1417
        %v1498 = vunpack.c.l.b16 %v1418
        %v1499 = vunpack.c.h.b16 %v1418
        %v1500 = vunpack.c.l.b16 %v1419
        %v1501 = vpack.c.b16 %v1456, %v1453
        %v1502 = vpack.c.b16 %v1457, %v1454
        %v1503 = vpack.c.b16 %v1458, %v1455
        %v1504 = vpack.c.b16 %v1462, %v1459
        %v1505 = vpack.c.b16 %v1463, %v1460
        %v1506 = vpack.c.b16 %v1464, %v1461
        %v1507 = vpack.c.b16 %v1468, %v1465
        %v1508 = vpack.c.b16 %v1469, %v1466
        %v1509 = vpack.c.b16 %v1470, %v1467
        %v1510 = vpack.c.b16 %v1474, %v1471
        %v1511 = vpack.c.b16 %v1475, %v1472
        %v1512 = vpack.c.b16 %v1476, %v1473
        %v1513 = vpack.c.b16 %v1480, %v1477
        %v1514 = vpack.c.b16 %v1481, %v1478
        %v1515 = vpack.c.b16 %v1482, %v1479
        %v1516 = vpack.c.b16 %v1486, %v1483
        %v1517 = vpack.c.b16 %v1487, %v1484
        %v1518 = vpack.c.b16 %v1488, %v1485
        %v1519 = vpack.c.b16 %v1492, %v1489
        %v1520 = vpack.c.b16 %v1493, %v1490
        %v1521 = vpack.c.b16 %v1494, %v1491
        %v1522 = vpack.c.b16 %v1498, %v1495
        %v1523 = vpack.c.b16 %v1499, %v1496
        %v1524 = vpack.c.b16 %v1500, %v1497
        %1549 = vmatprep.subr.bf16.mxu0 %v1523
        %1550 = vmatpush1.bf16.msra.mxu0 %v1522
        %1551 = vmatprep.subr.bf16.mxu0 %v1520
        %1552 = vmatpush1.bf16.msra.mxu0 %v1519
        %1553 = vmatprep.subr.bf16.mxu0 %v1517
        %1554 = vmatpush1.bf16.msra.mxu0 %v1516
        %1555 = vmatprep.subr.bf16.mxu0 %v1514
        %1556 = vmatpush1.bf16.msra.mxu0 %v1513
        %1557 = vmatprep.subr.bf16.mxu0 %v1511
        %1558 = vmatpush1.bf16.msra.mxu0 %v1510
        %1559 = vmatprep.subr.bf16.mxu0 %v1508
        %1560 = vmatpush1.bf16.msra.mxu0 %v1507
        %1561 = vmatprep.subr.bf16.mxu0 %v1505
        %1562 = vmatpush1.bf16.msra.mxu0 %v1504
        %1563 = vmatprep.subr.bf16.mxu0 %v1502
        %1564 = vmatpush1.bf16.msra.mxu0 %v1501
        %1565 = vmatprep.subr.bf16.mxu0 0
        %1566 = vmatpush2.bf16.msra.mxu0 0
        %1567 = vmatprep.subr.bf16.mxu0 0
        %1568 = vmatpush2.bf16.msra.mxu0 0
        %1569 = vmatprep.subr.bf16.mxu0 0
        %1570 = vmatpush2.bf16.msra.mxu0 0
        %1571 = vmatprep.subr.bf16.mxu0 0
        %1572 = vmatpush2.bf16.msra.mxu0 0
        %1573 = vmatprep.subr.bf16.mxu0 0
        %1574 = vmatpush2.bf16.msra.mxu0 0
        %1575 = vmatprep.subr.bf16.mxu0 0
        %1576 = vmatpush2.bf16.msra.mxu0 0
        %1577 = vmatprep.subr.bf16.mxu0 0
        %1578 = vmatpush2.bf16.msra.mxu0 0
        %1579 = vmatprep.subr.bf16.mxu0 0
        %1580 = vmatpush2.bf16.msra.mxu0 0
        %1581 = vmatprep.mubr.bf16.mxu0 0
        %1582 = vmatmul.mubr.bf16.gmra.mxu0 %v1420
        %v1583 = vpop.f32.mrf.mxu0
        %v1584 = vadd.f32 0.0, %v1583
        %v1585 = vpop.f32.mrf.mxu0
        %v1586 = vadd.f32 0.0, %v1585
        %v1587 = vpop.f32.mrf.mxu0
        %v1588 = vadd.f32 0.0, %v1587
        %v1589 = vpop.f32.mrf.mxu0
        %v1590 = vadd.f32 0.0, %v1589
        %1591 = vdwg.mxu0
        %1592 = vmatprep.subr.bf16.mxu0 0
        %1593 = vmatpush1.bf16.msra.mxu0 %v1524
        %1594 = vmatprep.subr.bf16.mxu0 0
        %1595 = vmatpush1.bf16.msra.mxu0 %v1521
        %1596 = vmatprep.subr.bf16.mxu0 0
        %1597 = vmatpush1.bf16.msra.mxu0 %v1518
        %1598 = vmatprep.subr.bf16.mxu0 0
        %1599 = vmatpush1.bf16.msra.mxu0 %v1515
        %1600 = vmatprep.subr.bf16.mxu0 0
        %1601 = vmatpush1.bf16.msra.mxu0 %v1512
        %1602 = vmatprep.subr.bf16.mxu0 0
        %1603 = vmatpush1.bf16.msra.mxu0 %v1509
        %1604 = vmatprep.subr.bf16.mxu0 0
        %1605 = vmatpush1.bf16.msra.mxu0 %v1506
        %1606 = vmatprep.subr.bf16.mxu0 0
        %1607 = vmatpush1.bf16.msra.mxu0 %v1503
        %1608 = vmatprep.subr.bf16.mxu0 0
        %1609 = vmatpush2.bf16.msra.mxu0 0
        %1610 = vmatprep.subr.bf16.mxu0 0
        %1611 = vmatpush2.bf16.msra.mxu0 0
        %1612 = vmatprep.subr.bf16.mxu0 0
        %1613 = vmatpush2.bf16.msra.mxu0 0
        %1614 = vmatprep.subr.bf16.mxu0 0
        %1615 = vmatpush2.bf16.msra.mxu0 0
        %1616 = vmatprep.subr.bf16.mxu0 0
        %1617 = vmatpush2.bf16.msra.mxu0 0
        %1618 = vmatprep.subr.bf16.mxu0 0
        %1619 = vmatpush2.bf16.msra.mxu0 0
        %1620 = vmatprep.subr.bf16.mxu0 0
        %1621 = vmatpush2.bf16.msra.mxu0 0
        %1622 = vmatprep.subr.bf16.mxu0 0
        %1623 = vmatpush2.bf16.msra.mxu0 0
        %1624 = vmatprep.mubr.bf16.mxu0 0
        %1625 = vmatmul.mubr.bf16.gmra.mxu0 %v1420
        %v1626 = vpop.f32.mrf.mxu0
        %v1627 = vadd.f32 0.0, %v1626
        %v1628 = vpop.f32.mrf.mxu0
        %v1629 = vpop.f32.mrf.mxu0
        %v1630 = vadd.f32 0.0, %v1629
        %v1631 = vpop.f32.mrf.mxu0
        %1632 = vdwg.mxu0
        %v1633 = vlaneseq
        %v1634 = vshrl.u32 %v1633, 7
        %v1635 = vsub.s32 5, %v1634
        %v1636 = vrot.slane %v928, %v1635
        %v1637 = vadd.f32 %v1584, %v1636
        %v1638 = vadd.f32 %v1588, %v1636
        %v1639 = vlaneseq
        %v1640 = vshrl.u32 %v1639, 7
        %v1641 = vsub.s32 6, %v1640
        %v1642 = vrot.slane %v928, %v1641
        %v1643 = vadd.f32 %v1586, %v1642
        %v1644 = vadd.f32 %v1590, %v1642
        %v1645 = vlaneseq
        %v1646 = vshrl.u32 %v1645, 7
        %v1647 = vsub.s32 7, %v1646
        %v1648 = vrot.slane %v928, %v1647
        %v1649 = vadd.f32 %v1627, %v1648
        %v1650 = vadd.f32 %v1630, %v1648
        %v1651 = vld [vmem:[%s901] sm:$0x1]
        %v1652 = vsub.f32 1.0, %v1651
        %v1653 = vmul.f32 %v1652, -1e+30
        %v1654 = vpack.c.bf16 %v1638, %v1637
        %v1655 = vpack.c.bf16 %v1644, %v1643
        %v1657 = vlaneseq
        %v1658 = vshrl.u32 %v1657, 7
        %v1659 = vsub.s32 0, %v1658
        %v1660 = vrot.slane %v1653, %v1659
        %vm1662 = vcmask 261120
        %v1664 = vsel %vm1662, %v1654, 0
        %v1667 = vsel %vm1662, %v1655, 0
        %1669 = vmatprep.subr.bf16.mxu0 0
        %1670 = vmatpush1.bf16.xpose.msra.mxu0 0
        %1671 = vmatprep.subr.bf16.mxu0 0
        %1672 = vmatpush1.bf16.xpose.msra.mxu0 0
        %1673 = vmatprep.subr.bf16.mxu0 0
        %1674 = vmatpush1.bf16.xpose.msra.mxu0 0
        %1675 = vmatprep.subr.bf16.mxu0 0
        %1676 = vmatpush1.bf16.xpose.msra.mxu0 0
        %1677 = vmatprep.subr.bf16.mxu0 0
        %1678 = vmatpush1.bf16.xpose.msra.mxu0 0
        %1679 = vmatprep.subr.bf16.mxu0 0
        %1680 = vmatpush1.bf16.xpose.msra.mxu0 0
        %1681 = vmatprep.subr.bf16.mxu0 0
        %1682 = vmatpush1.bf16.xpose.msra.mxu0 0
        %1683 = vmatprep.subr.bf16.mxu0 0
        %1684 = vmatpush1.bf16.xpose.msra.mxu0 %v1667
        %1685 = vmatprep.subr.bf16.mxu0 0
        %1686 = vmatpush2.bf16.xpose.msra.mxu0 0
        %1687 = vmatprep.subr.bf16.mxu0 0
        %1688 = vmatpush2.bf16.xpose.msra.mxu0 0
        %1689 = vmatprep.subr.bf16.mxu0 0
        %1690 = vmatpush2.bf16.xpose.msra.mxu0 0
        %1691 = vmatprep.subr.bf16.mxu0 0
        %1692 = vmatpush2.bf16.xpose.msra.mxu0 0
        %1693 = vmatprep.subr.bf16.mxu0 0
        %1694 = vmatpush2.bf16.xpose.msra.mxu0 0
        %1695 = vmatprep.subr.bf16.mxu0 0
        %1696 = vmatpush2.bf16.xpose.msra.mxu0 0
        %1697 = vmatprep.subr.bf16.mxu0 0
        %1698 = vmatpush2.bf16.xpose.msra.mxu0 0
        %1699 = vmatprep.subr.bf16.mxu0 0
        %1700 = vmatpush2.bf16.xpose.msra.mxu0 0
        %1701 = vmatprep.mubr.bf16.mxu0 0
        %1702 = vmatmul.mubr.bf16.gmra.mxu0 %v1664
        %v1703 = vpop.f32.mrf.mxu0
        %v1704 = vadd.f32 %v1660, %v1703
        %v1705 = vpop.f32.mrf.mxu0
        %v1706 = vpop.f32.mrf.mxu0
        %v1707 = vadd.f32 %v1660, %v1706
        %v1708 = vpop.f32.mrf.mxu0
        %1709 = vdwg.mxu0
        %vm1710 = vcmask 130048
        %v1711 = vsel %vm1710, %v1704, -inf
        %1712 = vmax.xlane.f32.xlu0 %v1711
        %v1713 = vpop.xlane.xlu0 %1712
        %v1714 = vsel %vm1710, %v1707, -inf
        %1715 = vmax.xlane.f32.xlu0 %v1714
        %v1716 = vpop.xlane.xlu0 %1715
        %v1717 = vsub.f32 %v1704, %v1713
        %v1718 = vsub.f32 %v1707, %v1716
        %v1719 = vmul.f32 %v1717, 1.442695
        %v1720 = vpow.pop %v1719
        %v1721 = vmul.f32 %v1718, 1.442695
        %v1722 = vpow.pop %v1721
        %v1723 = vsel %vm1710, %v1720, 0.0
        %1724 = vadd.xlane.f32.xlu0 %v1723
        %v1725 = vpop.xlane.xlu0 %1724
        %v1726 = vsel %vm1710, %v1722, 0.0
        %1727 = vadd.xlane.f32.xlu0 %v1726
        %v1728 = vpop.xlane.xlu0 %1727
        %v1729 = vrcp.pop %v1725
        %v1730 = vrcp.pop %v1728
        %v1731 = vmul.f32 %v1720, %v1729
        %v1732 = vmul.f32 %v1722, %v1730
        %v1733 = vpack.c.bf16 %v1732, %v1731
        %v1734 = vpack.c.bf16 %v1650, %v1649
        %v1736 = vsel %vm1710, %v1733, 0
        %1738 = vmatprep.subr.bf16.mxu0 0
        %1739 = vmatpush1.bf16.msra.mxu0 0
        %1740 = vmatprep.subr.bf16.mxu0 0
        %1741 = vmatpush1.bf16.msra.mxu0 0
        %1742 = vmatprep.subr.bf16.mxu0 0
        %1743 = vmatpush1.bf16.msra.mxu0 0
        %1744 = vmatprep.subr.bf16.mxu0 0
        %1745 = vmatpush1.bf16.msra.mxu0 0
        %1746 = vmatprep.subr.bf16.mxu0 0
        %1747 = vmatpush1.bf16.msra.mxu0 0
        %1748 = vmatprep.subr.bf16.mxu0 0
        %1749 = vmatpush1.bf16.msra.mxu0 0
        %1750 = vmatprep.subr.bf16.mxu0 0
        %1751 = vmatpush1.bf16.msra.mxu0 0
        %1752 = vmatprep.subr.bf16.mxu0 0
        %1753 = vmatpush1.bf16.msra.mxu0 %v1734
        %1754 = vmatprep.subr.bf16.mxu0 0
        %1755 = vmatpush2.bf16.msra.mxu0 0
        %1756 = vmatprep.subr.bf16.mxu0 0
        %1757 = vmatpush2.bf16.msra.mxu0 0
        %1758 = vmatprep.subr.bf16.mxu0 0
        %1759 = vmatpush2.bf16.msra.mxu0 0
        %1760 = vmatprep.subr.bf16.mxu0 0
        %1761 = vmatpush2.bf16.msra.mxu0 0
        %1762 = vmatprep.subr.bf16.mxu0 0
        %1763 = vmatpush2.bf16.msra.mxu0 0
        %1764 = vmatprep.subr.bf16.mxu0 0
        %1765 = vmatpush2.bf16.msra.mxu0 0
        %1766 = vmatprep.subr.bf16.mxu0 0
        %1767 = vmatpush2.bf16.msra.mxu0 0
        %1768 = vmatprep.subr.bf16.mxu0 0
        %1769 = vmatpush2.bf16.msra.mxu0 0
        %1770 = vmatprep.mubr.bf16.mxu0 0
        %1771 = vmatmul.mubr.bf16.gmra.mxu0 %v1736
        %v1772 = vpop.f32.mrf.mxu0
        %v1773 = vadd.f32 0.0, %v1772
        %v1774 = vpop.f32.mrf.mxu0
        %v1775 = vpop.f32.mrf.mxu0
        %v1776 = vadd.f32 0.0, %v1775
        %v1777 = vpop.f32.mrf.mxu0
        %1778 = vdwg.mxu0
        %1780 = vrot.lane.b32.xlu0 %v1654, 96
        %v1781 = vpop.permute.xlu0 %1780
        %1783 = vrot.lane.b32.xlu0 %v1655, 96
        %v1784 = vpop.permute.xlu0 %1783
        %v1786 = vsel %vm1662, %v1781, 0
        %v1789 = vsel %vm1662, %v1784, 0
        %1791 = vmatprep.subr.bf16.mxu0 0
        %1792 = vmatpush1.bf16.xpose.msra.mxu0 0
        %1793 = vmatprep.subr.bf16.mxu0 0
        %1794 = vmatpush1.bf16.xpose.msra.mxu0 0
        %1795 = vmatprep.subr.bf16.mxu0 0
        %1796 = vmatpush1.bf16.xpose.msra.mxu0 0
        %1797 = vmatprep.subr.bf16.mxu0 0
        %1798 = vmatpush1.bf16.xpose.msra.mxu0 0
        %1799 = vmatprep.subr.bf16.mxu0 0
        %1800 = vmatpush1.bf16.xpose.msra.mxu0 0
        %1801 = vmatprep.subr.bf16.mxu0 0
        %1802 = vmatpush1.bf16.xpose.msra.mxu0 0
        %1803 = vmatprep.subr.bf16.mxu0 0
        %1804 = vmatpush1.bf16.xpose.msra.mxu0 0
        %1805 = vmatprep.subr.bf16.mxu0 0
        %1806 = vmatpush1.bf16.xpose.msra.mxu0 %v1789
        %1807 = vmatprep.subr.bf16.mxu0 0
        %1808 = vmatpush2.bf16.xpose.msra.mxu0 0
        %1809 = vmatprep.subr.bf16.mxu0 0
        %1810 = vmatpush2.bf16.xpose.msra.mxu0 0
        %1811 = vmatprep.subr.bf16.mxu0 0
        %1812 = vmatpush2.bf16.xpose.msra.mxu0 0
        %1813 = vmatprep.subr.bf16.mxu0 0
        %1814 = vmatpush2.bf16.xpose.msra.mxu0 0
        %1815 = vmatprep.subr.bf16.mxu0 0
        %1816 = vmatpush2.bf16.xpose.msra.mxu0 0
        %1817 = vmatprep.subr.bf16.mxu0 0
        %1818 = vmatpush2.bf16.xpose.msra.mxu0 0
        %1819 = vmatprep.subr.bf16.mxu0 0
        %1820 = vmatpush2.bf16.xpose.msra.mxu0 0
        %1821 = vmatprep.subr.bf16.mxu0 0
        %1822 = vmatpush2.bf16.xpose.msra.mxu0 0
        %1823 = vmatprep.mubr.bf16.mxu0 0
        %1824 = vmatmul.mubr.bf16.gmra.mxu0 %v1786
        %v1825 = vpop.f32.mrf.mxu0
        %v1826 = vadd.f32 %v1660, %v1825
        %v1827 = vpop.f32.mrf.mxu0
        %v1828 = vpop.f32.mrf.mxu0
        %v1829 = vadd.f32 %v1660, %v1828
        %v1830 = vpop.f32.mrf.mxu0
        %1831 = vdwg.mxu0
        %v1832 = vsel %vm1710, %v1826, -inf
        %1833 = vmax.xlane.f32.xlu0 %v1832
        %v1834 = vpop.xlane.xlu0 %1833
        %v1835 = vsel %vm1710, %v1829, -inf
        %1836 = vmax.xlane.f32.xlu0 %v1835
        %v1837 = vpop.xlane.xlu0 %1836
        %v1838 = vsub.f32 %v1826, %v1834
        %v1839 = vsub.f32 %v1829, %v1837
        %v1840 = vmul.f32 %v1838, 1.442695
        %v1841 = vpow.pop %v1840
        %v1842 = vmul.f32 %v1839, 1.442695
        %v1843 = vpow.pop %v1842
        %v1844 = vsel %vm1710, %v1841, 0.0
        %1845 = vadd.xlane.f32.xlu0 %v1844
        %v1846 = vpop.xlane.xlu0 %1845
        %v1847 = vsel %vm1710, %v1843, 0.0
        %1848 = vadd.xlane.f32.xlu0 %v1847
        %v1849 = vpop.xlane.xlu0 %1848
        %v1850 = vrcp.pop %v1846
        %v1851 = vrcp.pop %v1849
        %v1852 = vmul.f32 %v1841, %v1850
        %v1853 = vmul.f32 %v1843, %v1851
        %v1854 = vpack.c.bf16 %v1853, %v1852
        %1856 = vrot.lane.b32.xlu0 %v1734, 96
        %v1857 = vpop.permute.xlu0 %1856
        %v1860 = vsel %vm1710, %v1854, 0
        %1862 = vmatprep.subr.bf16.mxu0 0
        %1863 = vmatpush1.bf16.msra.mxu0 0
        %1864 = vmatprep.subr.bf16.mxu0 0
        %1865 = vmatpush1.bf16.msra.mxu0 0
        %1866 = vmatprep.subr.bf16.mxu0 0
        %1867 = vmatpush1.bf16.msra.mxu0 0
        %1868 = vmatprep.subr.bf16.mxu0 0
        %1869 = vmatpush1.bf16.msra.mxu0 0
        %1870 = vmatprep.subr.bf16.mxu0 0
        %1871 = vmatpush1.bf16.msra.mxu0 0
        %1872 = vmatprep.subr.bf16.mxu0 0
        %1873 = vmatpush1.bf16.msra.mxu0 0
        %1874 = vmatprep.subr.bf16.mxu0 0
        %1875 = vmatpush1.bf16.msra.mxu0 0
        %1876 = vmatprep.subr.bf16.mxu0 0
        %1877 = vmatpush1.bf16.msra.mxu0 %v1857
        %1878 = vmatprep.subr.bf16.mxu0 0
        %1879 = vmatpush2.bf16.msra.mxu0 0
        %1880 = vmatprep.subr.bf16.mxu0 0
        %1881 = vmatpush2.bf16.msra.mxu0 0
        %1882 = vmatprep.subr.bf16.mxu0 0
        %1883 = vmatpush2.bf16.msra.mxu0 0
        %1884 = vmatprep.subr.bf16.mxu0 0
        %1885 = vmatpush2.bf16.msra.mxu0 0
        %1886 = vmatprep.subr.bf16.mxu0 0
        %1887 = vmatpush2.bf16.msra.mxu0 0
        %1888 = vmatprep.subr.bf16.mxu0 0
        %1889 = vmatpush2.bf16.msra.mxu0 0
        %1890 = vmatprep.subr.bf16.mxu0 0
        %1891 = vmatpush2.bf16.msra.mxu0 0
        %1892 = vmatprep.subr.bf16.mxu0 0
        %1893 = vmatpush2.bf16.msra.mxu0 0
        %1894 = vmatprep.mubr.bf16.mxu0 0
        %1895 = vmatmul.mubr.bf16.gmra.mxu0 %v1860
        %v1896 = vpop.f32.mrf.mxu0
        %v1897 = vadd.f32 0.0, %v1896
        %v1898 = vpop.f32.mrf.mxu0
        %v1899 = vpop.f32.mrf.mxu0
        %v1900 = vadd.f32 0.0, %v1899
        %v1901 = vpop.f32.mrf.mxu0
        %1902 = vdwg.mxu0
        %1903 = vrot.lane.b32.xlu0 %v1654, 64
        %v1904 = vpop.permute.xlu0 %1903
        %1905 = vrot.lane.b32.xlu0 %v1655, 64
        %v1906 = vpop.permute.xlu0 %1905
        %v1908 = vsel %vm1662, %v1904, 0
        %v1911 = vsel %vm1662, %v1906, 0
        %1913 = vmatprep.subr.bf16.mxu0 0
        %1914 = vmatpush1.bf16.xpose.msra.mxu0 0
        %1915 = vmatprep.subr.bf16.mxu0 0
        %1916 = vmatpush1.bf16.xpose.msra.mxu0 0
        %1917 = vmatprep.subr.bf16.mxu0 0
        %1918 = vmatpush1.bf16.xpose.msra.mxu0 0
        %1919 = vmatprep.subr.bf16.mxu0 0
        %1920 = vmatpush1.bf16.xpose.msra.mxu0 0
        %1921 = vmatprep.subr.bf16.mxu0 0
        %1922 = vmatpush1.bf16.xpose.msra.mxu0 0
        %1923 = vmatprep.subr.bf16.mxu0 0
        %1924 = vmatpush1.bf16.xpose.msra.mxu0 0
        %1925 = vmatprep.subr.bf16.mxu0 0
        %1926 = vmatpush1.bf16.xpose.msra.mxu0 0
        %1927 = vmatprep.subr.bf16.mxu0 0
        %1928 = vmatpush1.bf16.xpose.msra.mxu0 %v1911
        %1929 = vmatprep.subr.bf16.mxu0 0
        %1930 = vmatpush2.bf16.xpose.msra.mxu0 0
        %1931 = vmatprep.subr.bf16.mxu0 0
        %1932 = vmatpush2.bf16.xpose.msra.mxu0 0
        %1933 = vmatprep.subr.bf16.mxu0 0
        %1934 = vmatpush2.bf16.xpose.msra.mxu0 0
        %1935 = vmatprep.subr.bf16.mxu0 0
        %1936 = vmatpush2.bf16.xpose.msra.mxu0 0
        %1937 = vmatprep.subr.bf16.mxu0 0
        %1938 = vmatpush2.bf16.xpose.msra.mxu0 0
        %1939 = vmatprep.subr.bf16.mxu0 0
        %1940 = vmatpush2.bf16.xpose.msra.mxu0 0
        %1941 = vmatprep.subr.bf16.mxu0 0
        %1942 = vmatpush2.bf16.xpose.msra.mxu0 0
        %1943 = vmatprep.subr.bf16.mxu0 0
        %1944 = vmatpush2.bf16.xpose.msra.mxu0 0
        %1945 = vmatprep.mubr.bf16.mxu0 0
        %1946 = vmatmul.mubr.bf16.gmra.mxu0 %v1908
        %v1947 = vpop.f32.mrf.mxu0
        %v1948 = vadd.f32 %v1660, %v1947
        %v1949 = vpop.f32.mrf.mxu0
        %v1950 = vpop.f32.mrf.mxu0
        %v1951 = vadd.f32 %v1660, %v1950
        %v1952 = vpop.f32.mrf.mxu0
        %1953 = vdwg.mxu0
        %v1954 = vsel %vm1710, %v1948, -inf
        %1955 = vmax.xlane.f32.xlu0 %v1954
        %v1956 = vpop.xlane.xlu0 %1955
        %v1957 = vsel %vm1710, %v1951, -inf
        %1958 = vmax.xlane.f32.xlu0 %v1957
        %v1959 = vpop.xlane.xlu0 %1958
        %v1960 = vsub.f32 %v1948, %v1956
        %v1961 = vsub.f32 %v1951, %v1959
        %v1962 = vmul.f32 %v1960, 1.442695
        %v1963 = vpow.pop %v1962
        %v1964 = vmul.f32 %v1961, 1.442695
        %v1965 = vpow.pop %v1964
        %v1966 = vsel %vm1710, %v1963, 0.0
        %1967 = vadd.xlane.f32.xlu0 %v1966
        %v1968 = vpop.xlane.xlu0 %1967
        %v1969 = vsel %vm1710, %v1965, 0.0
        %1970 = vadd.xlane.f32.xlu0 %v1969
        %v1971 = vpop.xlane.xlu0 %1970
        %v1972 = vrcp.pop %v1968
        %v1973 = vrcp.pop %v1971
        %v1974 = vmul.f32 %v1963, %v1972
        %v1975 = vmul.f32 %v1965, %v1973
        %v1976 = vpack.c.bf16 %v1975, %v1974
        %1977 = vrot.lane.b32.xlu0 %v1734, 64
        %v1978 = vpop.permute.xlu0 %1977
        %v1981 = vsel %vm1710, %v1976, 0
        %1983 = vmatprep.subr.bf16.mxu0 0
        %1984 = vmatpush1.bf16.msra.mxu0 0
        %1985 = vmatprep.subr.bf16.mxu0 0
        %1986 = vmatpush1.bf16.msra.mxu0 0
        %1987 = vmatprep.subr.bf16.mxu0 0
        %1988 = vmatpush1.bf16.msra.mxu0 0
        %1989 = vmatprep.subr.bf16.mxu0 0
        %1990 = vmatpush1.bf16.msra.mxu0 0
        %1991 = vmatprep.subr.bf16.mxu0 0
        %1992 = vmatpush1.bf16.msra.mxu0 0
        %1993 = vmatprep.subr.bf16.mxu0 0
        %1994 = vmatpush1.bf16.msra.mxu0 0
        %1995 = vmatprep.subr.bf16.mxu0 0
        %1996 = vmatpush1.bf16.msra.mxu0 0
        %1997 = vmatprep.subr.bf16.mxu0 0
        %1998 = vmatpush1.bf16.msra.mxu0 %v1978
        %1999 = vmatprep.subr.bf16.mxu0 0
        %2000 = vmatpush2.bf16.msra.mxu0 0
        %2001 = vmatprep.subr.bf16.mxu0 0
        %2002 = vmatpush2.bf16.msra.mxu0 0
        %2003 = vmatprep.subr.bf16.mxu0 0
        %2004 = vmatpush2.bf16.msra.mxu0 0
        %2005 = vmatprep.subr.bf16.mxu0 0
        %2006 = vmatpush2.bf16.msra.mxu0 0
        %2007 = vmatprep.subr.bf16.mxu0 0
        %2008 = vmatpush2.bf16.msra.mxu0 0
        %2009 = vmatprep.subr.bf16.mxu0 0
        %2010 = vmatpush2.bf16.msra.mxu0 0
        %2011 = vmatprep.subr.bf16.mxu0 0
        %2012 = vmatpush2.bf16.msra.mxu0 0
        %2013 = vmatprep.subr.bf16.mxu0 0
        %2014 = vmatpush2.bf16.msra.mxu0 0
        %2015 = vmatprep.mubr.bf16.mxu0 0
        %2016 = vmatmul.mubr.bf16.gmra.mxu0 %v1981
        %v2017 = vpop.f32.mrf.mxu0
        %v2018 = vadd.f32 0.0, %v2017
        %v2019 = vpop.f32.mrf.mxu0
        %v2020 = vpop.f32.mrf.mxu0
        %v2021 = vadd.f32 0.0, %v2020
        %v2022 = vpop.f32.mrf.mxu0
        %2023 = vdwg.mxu0
        %2024 = vrot.lane.b32.xlu0 %v1654, 32
        %v2025 = vpop.permute.xlu0 %2024
        %2026 = vrot.lane.b32.xlu0 %v1655, 32
        %v2027 = vpop.permute.xlu0 %2026
        %v2029 = vsel %vm1662, %v2025, 0
        %v2032 = vsel %vm1662, %v2027, 0
        %2034 = vmatprep.subr.bf16.mxu0 0
        %2035 = vmatpush1.bf16.xpose.msra.mxu0 0
        %2036 = vmatprep.subr.bf16.mxu0 0
        %2037 = vmatpush1.bf16.xpose.msra.mxu0 0
        %2038 = vmatprep.subr.bf16.mxu0 0
        %2039 = vmatpush1.bf16.xpose.msra.mxu0 0
        %2040 = vmatprep.subr.bf16.mxu0 0
        %2041 = vmatpush1.bf16.xpose.msra.mxu0 0
        %2042 = vmatprep.subr.bf16.mxu0 0
        %2043 = vmatpush1.bf16.xpose.msra.mxu0 0
        %2044 = vmatprep.subr.bf16.mxu0 0
        %2045 = vmatpush1.bf16.xpose.msra.mxu0 0
        %2046 = vmatprep.subr.bf16.mxu0 0
        %2047 = vmatpush1.bf16.xpose.msra.mxu0 0
        %2048 = vmatprep.subr.bf16.mxu0 0
        %2049 = vmatpush1.bf16.xpose.msra.mxu0 %v2032
        %2050 = vmatprep.subr.bf16.mxu0 0
        %2051 = vmatpush2.bf16.xpose.msra.mxu0 0
        %2052 = vmatprep.subr.bf16.mxu0 0
        %2053 = vmatpush2.bf16.xpose.msra.mxu0 0
        %2054 = vmatprep.subr.bf16.mxu0 0
        %2055 = vmatpush2.bf16.xpose.msra.mxu0 0
        %2056 = vmatprep.subr.bf16.mxu0 0
        %2057 = vmatpush2.bf16.xpose.msra.mxu0 0
        %2058 = vmatprep.subr.bf16.mxu0 0
        %2059 = vmatpush2.bf16.xpose.msra.mxu0 0
        %2060 = vmatprep.subr.bf16.mxu0 0
        %2061 = vmatpush2.bf16.xpose.msra.mxu0 0
        %2062 = vmatprep.subr.bf16.mxu0 0
        %2063 = vmatpush2.bf16.xpose.msra.mxu0 0
        %2064 = vmatprep.subr.bf16.mxu0 0
        %2065 = vmatpush2.bf16.xpose.msra.mxu0 0
        %2066 = vmatprep.mubr.bf16.mxu0 0
        %2067 = vmatmul.mubr.bf16.gmra.mxu0 %v2029
        %v2068 = vpop.f32.mrf.mxu0
        %v2069 = vadd.f32 %v1660, %v2068
        %v2070 = vpop.f32.mrf.mxu0
        %v2071 = vpop.f32.mrf.mxu0
        %v2072 = vadd.f32 %v1660, %v2071
        %v2073 = vpop.f32.mrf.mxu0
        %2074 = vdwg.mxu0
        %v2075 = vsel %vm1710, %v2069, -inf
        %2076 = vmax.xlane.f32.xlu0 %v2075
        %v2077 = vpop.xlane.xlu0 %2076
        %v2078 = vsel %vm1710, %v2072, -inf
        %2079 = vmax.xlane.f32.xlu0 %v2078
        %v2080 = vpop.xlane.xlu0 %2079
        %v2081 = vsub.f32 %v2069, %v2077
        %v2082 = vsub.f32 %v2072, %v2080
        %v2083 = vmul.f32 %v2081, 1.442695
        %v2084 = vpow.pop %v2083
        %v2085 = vmul.f32 %v2082, 1.442695
        %v2086 = vpow.pop %v2085
        %v2087 = vsel %vm1710, %v2084, 0.0
        %2088 = vadd.xlane.f32.xlu0 %v2087
        %v2089 = vpop.xlane.xlu0 %2088
        %v2090 = vsel %vm1710, %v2086, 0.0
        %2091 = vadd.xlane.f32.xlu0 %v2090
        %v2092 = vpop.xlane.xlu0 %2091
        %v2093 = vrcp.pop %v2089
        %v2094 = vrcp.pop %v2092
        %v2095 = vmul.f32 %v2084, %v2093
        %v2096 = vmul.f32 %v2086, %v2094
        %v2097 = vpack.c.bf16 %v2096, %v2095
        %2098 = vrot.lane.b32.xlu0 %v1734, 32
        %v2099 = vpop.permute.xlu0 %2098
        %v2102 = vsel %vm1710, %v2097, 0
        %2104 = vmatprep.subr.bf16.mxu0 0
        %2105 = vmatpush1.bf16.msra.mxu0 0
        %2106 = vmatprep.subr.bf16.mxu0 0
        %2107 = vmatpush1.bf16.msra.mxu0 0
        %2108 = vmatprep.subr.bf16.mxu0 0
        %2109 = vmatpush1.bf16.msra.mxu0 0
        %2110 = vmatprep.subr.bf16.mxu0 0
        %2111 = vmatpush1.bf16.msra.mxu0 0
        %2112 = vmatprep.subr.bf16.mxu0 0
        %2113 = vmatpush1.bf16.msra.mxu0 0
        %2114 = vmatprep.subr.bf16.mxu0 0
        %2115 = vmatpush1.bf16.msra.mxu0 0
        %2116 = vmatprep.subr.bf16.mxu0 0
        %2117 = vmatpush1.bf16.msra.mxu0 0
        %2118 = vmatprep.subr.bf16.mxu0 0
        %2119 = vmatpush1.bf16.msra.mxu0 %v2099
        %2120 = vmatprep.subr.bf16.mxu0 0
        %2121 = vmatpush2.bf16.msra.mxu0 0
        %2122 = vmatprep.subr.bf16.mxu0 0
        %2123 = vmatpush2.bf16.msra.mxu0 0
        %2124 = vmatprep.subr.bf16.mxu0 0
        %2125 = vmatpush2.bf16.msra.mxu0 0
        %2126 = vmatprep.subr.bf16.mxu0 0
        %2127 = vmatpush2.bf16.msra.mxu0 0
        %2128 = vmatprep.subr.bf16.mxu0 0
        %2129 = vmatpush2.bf16.msra.mxu0 0
        %2130 = vmatprep.subr.bf16.mxu0 0
        %2131 = vmatpush2.bf16.msra.mxu0 0
        %2132 = vmatprep.subr.bf16.mxu0 0
        %2133 = vmatpush2.bf16.msra.mxu0 0
        %2134 = vmatprep.subr.bf16.mxu0 0
        %2135 = vmatpush2.bf16.msra.mxu0 0
        %2136 = vmatprep.mubr.bf16.mxu0 0
        %2137 = vmatmul.mubr.bf16.gmra.mxu0 %v2102
        %v2138 = vpop.f32.mrf.mxu0
        %v2139 = vadd.f32 0.0, %v2138
        %v2140 = vpop.f32.mrf.mxu0
        %v2141 = vpop.f32.mrf.mxu0
        %v2142 = vadd.f32 0.0, %v2141
        %v2143 = vpop.f32.mrf.mxu0
        %2144 = vdwg.mxu0
        %2147 = vrot.lane.b32.xlu0 %v1897, 32
        %v2148 = vpop.permute.xlu0 %2147
        %2149 = vrot.lane.b32.xlu0 %v1900, 32
        %v2150 = vpop.permute.xlu0 %2149
        %2155 = vrot.lane.b32.xlu0 %v2018, 64
        %v2156 = vpop.permute.xlu0 %2155
        %2157 = vrot.lane.b32.xlu0 %v2021, 64
        %v2158 = vpop.permute.xlu0 %2157
        %2163 = vrot.lane.b32.xlu0 %v2139, 96
        %v2164 = vpop.permute.xlu0 %2163
        %2165 = vrot.lane.b32.xlu0 %v2142, 96
        %v2166 = vpop.permute.xlu0 %2165
        %v2169 = vsel %vm1662, %v1773, %v2148
        %v2170 = vsel %vm1662, %v1776, %v2150
        %vm2171 = vcmask 523264
        %v2172 = vsel %vm2171, %v2169, %v2156
        %v2173 = vsel %vm2171, %v2170, %v2158
        %vm2174 = vcmask 785408
        %v2175 = vsel %vm2174, %v2172, %v2164
        %v2176 = vsel %vm2174, %v2173, %v2166
        %v2177 = vld [vmem:[%s741] sm:$0xf]
        %v2178 = vld [vmem:[%s741 + $0x4] sm:$0xf]
        %v2179 = vld [vmem:[%s741 + $0x8] sm:$0xf]
        %v2180 = vld [vmem:[%s741 + $0xc] sm:$0xf]
        %v2181 = vld [vmem:[%s741 + $0x10] sm:$0xf]
        %v2182 = vld [vmem:[%s741 + $0x14] sm:$0xf]
        %v2183 = vld [vmem:[%s741 + $0x18] sm:$0xf]
        %v2184 = vld [vmem:[%s741 + $0x1c] sm:$0xf]
        %v2185 = vld [vmem:[%s741 + $0x20] sm:$0xf]
        %v2186 = vld [vmem:[%s741 + $0x24] sm:$0xf]
        %v2187 = vld [vmem:[%s741 + $0x28] sm:$0xf]
        %v2188 = vld [vmem:[%s741 + $0x2c] sm:$0xf]
        %v2189 = vld [vmem:[%s741 + $0x30] sm:$0xf]
        %v2190 = vld [vmem:[%s741 + $0x34] sm:$0xf]
        %v2191 = vld [vmem:[%s741 + $0x38] sm:$0xf]
        %v2192 = vld [vmem:[%s741 + $0x3c] sm:$0xf]
        %v2193 = vpack.c.bf16 %v2176, %v2175
        %v2194 = vlaneseq
        %v2195 = vshrl.u32 %v2194, 7
        %v2196 = vsub.s32 0, %v2195
        %v2197 = vrot.slane %v929, %v2196
        %v2214 = vunpack.c.l.b16 %v2177
        %v2215 = vunpack.c.l.b16 %v2178
        %v2216 = vunpack.c.l.b16 %v2179
        %v2217 = vunpack.c.l.b16 %v2180
        %v2218 = vunpack.c.l.b16 %v2181
        %v2219 = vunpack.c.l.b16 %v2182
        %v2220 = vunpack.c.l.b16 %v2183
        %v2221 = vunpack.c.l.b16 %v2184
        %v2222 = vunpack.c.l.b16 %v2185
        %v2223 = vunpack.c.l.b16 %v2186
        %v2224 = vunpack.c.l.b16 %v2187
        %v2225 = vunpack.c.l.b16 %v2188
        %v2226 = vunpack.c.l.b16 %v2189
        %v2227 = vunpack.c.l.b16 %v2190
        %v2228 = vunpack.c.l.b16 %v2191
        %v2229 = vunpack.c.l.b16 %v2192
        %v2230 = vpack.c.b16 %v2215, %v2214
        %v2231 = vpack.c.b16 %v2217, %v2216
        %v2232 = vpack.c.b16 %v2219, %v2218
        %v2233 = vpack.c.b16 %v2221, %v2220
        %v2234 = vpack.c.b16 %v2223, %v2222
        %v2235 = vpack.c.b16 %v2225, %v2224
        %v2236 = vpack.c.b16 %v2227, %v2226
        %v2237 = vpack.c.b16 %v2229, %v2228
        %2246 = vmatprep.subr.bf16.mxu0 0
        %2247 = vmatpush1.bf16.msra.mxu0 %v2237
        %2248 = vmatprep.subr.bf16.mxu0 0
        %2249 = vmatpush1.bf16.msra.mxu0 %v2236
        %2250 = vmatprep.subr.bf16.mxu0 0
        %2251 = vmatpush1.bf16.msra.mxu0 %v2235
        %2252 = vmatprep.subr.bf16.mxu0 0
        %2253 = vmatpush1.bf16.msra.mxu0 %v2234
        %2254 = vmatprep.subr.bf16.mxu0 0
        %2255 = vmatpush1.bf16.msra.mxu0 %v2233
        %2256 = vmatprep.subr.bf16.mxu0 0
        %2257 = vmatpush1.bf16.msra.mxu0 %v2232
        %2258 = vmatprep.subr.bf16.mxu0 0
        %2259 = vmatpush1.bf16.msra.mxu0 %v2231
        %2260 = vmatprep.subr.bf16.mxu0 0
        %2261 = vmatpush1.bf16.msra.mxu0 %v2230
        %2262 = vmatprep.subr.bf16.mxu0 0
        %2263 = vmatpush2.bf16.msra.mxu0 0
        %2264 = vmatprep.subr.bf16.mxu0 0
        %2265 = vmatpush2.bf16.msra.mxu0 0
        %2266 = vmatprep.subr.bf16.mxu0 0
        %2267 = vmatpush2.bf16.msra.mxu0 0
        %2268 = vmatprep.subr.bf16.mxu0 0
        %2269 = vmatpush2.bf16.msra.mxu0 0
        %2270 = vmatprep.subr.bf16.mxu0 0
        %2271 = vmatpush2.bf16.msra.mxu0 0
        %2272 = vmatprep.subr.bf16.mxu0 0
        %2273 = vmatpush2.bf16.msra.mxu0 0
        %2274 = vmatprep.subr.bf16.mxu0 0
        %2275 = vmatpush2.bf16.msra.mxu0 0
        %2276 = vmatprep.subr.bf16.mxu0 0
        %2277 = vmatpush2.bf16.msra.mxu0 0
        %2278 = vmatprep.mubr.bf16.mxu0 0
        %2279 = vmatmul.mubr.bf16.gmra.mxu0 %v2193
        %v2280 = vpop.f32.mrf.mxu0
        %v2281 = vadd.f32 %v2197, %v2280
        %v2282 = vpop.f32.mrf.mxu0
        %v2283 = vpop.f32.mrf.mxu0
        %v2284 = vadd.f32 %v2197, %v2283
        %v2285 = vpop.f32.mrf.mxu0
        %2286 = vdwg.mxu0
        %v2287 = vlaneseq
        %v2288 = vshrl.u32 %v2287, 7
        %v2289 = vsub.s32 1, %v2288
        %v2290 = vrot.slane %v929, %v2289
        %v2291 = vmul.f32 %v1374, %v2290
        %v2292 = vmul.f32 %v1375, %v2290
        %v2293 = vlaneseq
        %v2294 = vshrl.u32 %v2293, 7
        %v2295 = vsub.s32 2, %v2294
        %v2296 = vrot.slane %v929, %v2295
        %v2297 = vadd.f32 %v2291, %v2296
        %v2298 = vadd.f32 %v2292, %v2296
        %v2299 = vld [vmem:[%s750] sm:$0xff]
        %v2300 = vld [vmem:[%s750 + $0x8] sm:$0xff]
        %v2301 = vld [vmem:[%s750 + $0x10] sm:$0xff]
        %v2302 = vld [vmem:[%s750 + $0x18] sm:$0xff]
        %v2303 = vld [vmem:[%s750 + $0x20] sm:$0xff]
        %v2304 = vld [vmem:[%s750 + $0x28] sm:$0xff]
        %v2305 = vld [vmem:[%s750 + $0x30] sm:$0xff]
        %v2306 = vld [vmem:[%s750 + $0x38] sm:$0xff]
        %v2307 = vld [vmem:[%s750 + $0x40] sm:$0xff]
        %v2308 = vld [vmem:[%s750 + $0x48] sm:$0xff]
        %v2309 = vld [vmem:[%s750 + $0x50] sm:$0xff]
        %v2310 = vld [vmem:[%s750 + $0x58] sm:$0xff]
        %v2311 = vld [vmem:[%s750 + $0x60] sm:$0xff]
        %v2312 = vld [vmem:[%s750 + $0x68] sm:$0xff]
        %v2313 = vld [vmem:[%s750 + $0x70] sm:$0xff]
        %v2314 = vld [vmem:[%s750 + $0x78] sm:$0xff]
        %v2315 = vpack.c.bf16 %v2298, %v2297
        %v2332 = vunpack.c.l.b16 %v2299
        %v2333 = vunpack.c.h.b16 %v2299
        %v2334 = vunpack.c.l.b16 %v2300
        %v2335 = vunpack.c.h.b16 %v2300
        %v2336 = vunpack.c.l.b16 %v2301
        %v2337 = vunpack.c.h.b16 %v2301
        %v2338 = vunpack.c.l.b16 %v2302
        %v2339 = vunpack.c.h.b16 %v2302
        %v2340 = vunpack.c.l.b16 %v2303
        %v2341 = vunpack.c.h.b16 %v2303
        %v2342 = vunpack.c.l.b16 %v2304
        %v2343 = vunpack.c.h.b16 %v2304
        %v2344 = vunpack.c.l.b16 %v2305
        %v2345 = vunpack.c.h.b16 %v2305
        %v2346 = vunpack.c.l.b16 %v2306
        %v2347 = vunpack.c.h.b16 %v2306
        %v2348 = vunpack.c.l.b16 %v2307
        %v2349 = vunpack.c.h.b16 %v2307
        %v2350 = vunpack.c.l.b16 %v2308
        %v2351 = vunpack.c.h.b16 %v2308
        %v2352 = vunpack.c.l.b16 %v2309
        %v2353 = vunpack.c.h.b16 %v2309
        %v2354 = vunpack.c.l.b16 %v2310
        %v2355 = vunpack.c.h.b16 %v2310
        %v2356 = vunpack.c.l.b16 %v2311
        %v2357 = vunpack.c.h.b16 %v2311
        %v2358 = vunpack.c.l.b16 %v2312
        %v2359 = vunpack.c.h.b16 %v2312
        %v2360 = vunpack.c.l.b16 %v2313
        %v2361 = vunpack.c.h.b16 %v2313
        %v2362 = vunpack.c.l.b16 %v2314
        %v2363 = vunpack.c.h.b16 %v2314
        %v2364 = vpack.c.b16 %v2334, %v2332
        %v2365 = vpack.c.b16 %v2335, %v2333
        %v2366 = vpack.c.b16 %v2338, %v2336
        %v2367 = vpack.c.b16 %v2339, %v2337
        %v2368 = vpack.c.b16 %v2342, %v2340
        %v2369 = vpack.c.b16 %v2343, %v2341
        %v2370 = vpack.c.b16 %v2346, %v2344
        %v2371 = vpack.c.b16 %v2347, %v2345
        %v2372 = vpack.c.b16 %v2350, %v2348
        %v2373 = vpack.c.b16 %v2351, %v2349
        %v2374 = vpack.c.b16 %v2354, %v2352
        %v2375 = vpack.c.b16 %v2355, %v2353
        %v2376 = vpack.c.b16 %v2358, %v2356
        %v2377 = vpack.c.b16 %v2359, %v2357
        %v2378 = vpack.c.b16 %v2362, %v2360
        %v2379 = vpack.c.b16 %v2363, %v2361
        %2396 = vmatprep.subr.bf16.mxu0 %v2379
        %2397 = vmatpush1.bf16.msra.mxu0 %v2378
        %2398 = vmatprep.subr.bf16.mxu0 %v2377
        %2399 = vmatpush1.bf16.msra.mxu0 %v2376
        %2400 = vmatprep.subr.bf16.mxu0 %v2375
        %2401 = vmatpush1.bf16.msra.mxu0 %v2374
        %2402 = vmatprep.subr.bf16.mxu0 %v2373
        %2403 = vmatpush1.bf16.msra.mxu0 %v2372
        %2404 = vmatprep.subr.bf16.mxu0 %v2371
        %2405 = vmatpush1.bf16.msra.mxu0 %v2370
        %2406 = vmatprep.subr.bf16.mxu0 %v2369
        %2407 = vmatpush1.bf16.msra.mxu0 %v2368
        %2408 = vmatprep.subr.bf16.mxu0 %v2367
        %2409 = vmatpush1.bf16.msra.mxu0 %v2366
        %2410 = vmatprep.subr.bf16.mxu0 %v2365
        %2411 = vmatpush1.bf16.msra.mxu0 %v2364
        %2412 = vmatprep.subr.bf16.mxu0 0
        %2413 = vmatpush2.bf16.msra.mxu0 0
        %2414 = vmatprep.subr.bf16.mxu0 0
        %2415 = vmatpush2.bf16.msra.mxu0 0
        %2416 = vmatprep.subr.bf16.mxu0 0
        %2417 = vmatpush2.bf16.msra.mxu0 0
        %2418 = vmatprep.subr.bf16.mxu0 0
        %2419 = vmatpush2.bf16.msra.mxu0 0
        %2420 = vmatprep.subr.bf16.mxu0 0
        %2421 = vmatpush2.bf16.msra.mxu0 0
        %2422 = vmatprep.subr.bf16.mxu0 0
        %2423 = vmatpush2.bf16.msra.mxu0 0
        %2424 = vmatprep.subr.bf16.mxu0 0
        %2425 = vmatpush2.bf16.msra.mxu0 0
        %2426 = vmatprep.subr.bf16.mxu0 0
        %2427 = vmatpush2.bf16.msra.mxu0 0
        %2428 = vmatprep.mubr.bf16.mxu0 0
        %2429 = vmatmul.mubr.bf16.gmra.mxu0 %v2315
        %v2430 = vpop.f32.mrf.mxu0
        %v2431 = vadd.f32 0.0, %v2430
        %v2432 = vpop.f32.mrf.mxu0
        %v2433 = vadd.f32 0.0, %v2432
        %v2434 = vpop.f32.mrf.mxu0
        %v2435 = vadd.f32 0.0, %v2434
        %v2436 = vpop.f32.mrf.mxu0
        %v2437 = vadd.f32 0.0, %v2436
        %2438 = vdwg.mxu0
        %v2439 = vlaneseq
        %v2440 = vshrl.u32 %v2439, 7
        %v2441 = vsub.s32 0, %v2440
        %v2442 = vrot.slane %v932, %v2441
        %v2443 = vadd.f32 %v2431, %v2442
        %v2444 = vadd.f32 %v2435, %v2442
        %v2445 = vmul.f32 %v2443, 0.5
        %v2446 = vmul.f32 %v2444, 0.5
        %v2447 = vmul.f32 %v2443, 0.044715
        %v2448 = vmul.f32 %v2444, 0.044715
        %v2449 = vmul.f32 %v2447, %v2443
        %v2450 = vmul.f32 %v2448, %v2444
        %v2451 = vmul.f32 %v2449, %v2443
        %v2452 = vmul.f32 %v2450, %v2444
        %v2453 = vadd.f32 %v2443, %v2451
        %v2454 = vadd.f32 %v2444, %v2452
        %v2455 = vmul.f32 %v2453, 0.7978846
        %v2456 = vmul.f32 %v2454, 0.7978846
        %v2457 = vtanh.pop %v2455
        %v2458 = vtanh.pop %v2456
        %v2459 = vadd.f32 %v2457, 1.0
        %v2460 = vadd.f32 %v2458, 1.0
        %v2461 = vmul.f32 %v2445, %v2459
        %v2462 = vmul.f32 %v2446, %v2460
        %v2463 = vlaneseq
        %v2464 = vshrl.u32 %v2463, 7
        %v2465 = vsub.s32 1, %v2464
        %v2466 = vrot.slane %v932, %v2465
        %v2467 = vadd.f32 %v2433, %v2466
        %v2468 = vadd.f32 %v2437, %v2466
        %v2469 = vmul.f32 %v2467, 0.5
        %v2470 = vmul.f32 %v2468, 0.5
        %v2471 = vmul.f32 %v2467, 0.044715
        %v2472 = vmul.f32 %v2468, 0.044715
        %v2473 = vmul.f32 %v2471, %v2467
        %v2474 = vmul.f32 %v2472, %v2468
        %v2475 = vmul.f32 %v2473, %v2467
        %v2476 = vmul.f32 %v2474, %v2468
        %v2477 = vadd.f32 %v2467, %v2475
        %v2478 = vadd.f32 %v2468, %v2476
        %v2479 = vmul.f32 %v2477, 0.7978846
        %v2480 = vmul.f32 %v2478, 0.7978846
        %v2481 = vtanh.pop %v2479
        %v2482 = vtanh.pop %v2480
        %v2483 = vadd.f32 %v2481, 1.0
        %v2484 = vadd.f32 %v2482, 1.0
        %v2485 = vmul.f32 %v2469, %v2483
        %v2486 = vmul.f32 %v2470, %v2484
        %2487 = vadd.xlane.f32.xlu0 %v2485
        %v2488 = vpop.xlane.xlu0 %2487
        %2489 = vadd.xlane.f32.xlu0 %v2486
        %v2490 = vpop.xlane.xlu0 %2489
        %v2491 = vmul.f32 %v2488, %v957
        %v2492 = vmul.f32 %v2490, %v957
        %v2493 = vsub.f32 %v2485, %v2491
        %v2494 = vsub.f32 %v2486, %v2492
        %v2495 = vmul.f32 %v2493, %v2493
        %v2496 = vmul.f32 %v2494, %v2494
        %2497 = vadd.xlane.f32.xlu0 %v2495
        %v2498 = vpop.xlane.xlu0 %2497
        %2499 = vadd.xlane.f32.xlu0 %v2496
        %v2500 = vpop.xlane.xlu0 %2499
        %v2501 = vmul.f32 %v2498, %v957
        %v2502 = vmul.f32 %v2500, %v957
        %v2503 = vadd.f32 %v2501, 1e-05
        %v2504 = vadd.f32 %v2502, 1e-05
        %v2505 = vrsqrt.pop %v2503
        %v2506 = vrsqrt.pop %v2504
        %v2507 = vmul.f32 %v2493, %v2505
        %v2508 = vmul.f32 %v2494, %v2506
        %v2509 = vlaneseq
        %v2510 = vshrl.u32 %v2509, 7
        %v2511 = vsub.s32 2, %v2510
        %v2512 = vrot.slane %v932, %v2511
        %v2513 = vmul.f32 %v2507, %v2512
        %v2514 = vmul.f32 %v2508, %v2512
        %v2515 = vlaneseq
        %v2516 = vshrl.u32 %v2515, 7
        %v2517 = vsub.s32 3, %v2516
        %v2518 = vrot.slane %v932, %v2517
        %v2519 = vadd.f32 %v2513, %v2518
        %v2520 = vadd.f32 %v2514, %v2518
        %v2521 = vlaneseq
        %v2522 = vshrl.u32 %v2521, 7
        %v2523 = vsub.s32 7, %v2522
        %v2524 = vrot.slane %v932, %v2523
        %v2525 = vadd.f32 %v2524, 0.0
        %v2526 = vrot.slane %v2519, 7
        %v2527 = vrot.slane %v2520, 7
        %vm2528 = vcmp.lt.s32.totalorder %v935, 1
        %v2529 = vsel %vm2528, %v2526, %v2527
        %v2530 = vsel %vm2528, %v2527, %v2526
        %v2531 = vsel %vm943, 1, 0
        %v2532 = vsel %vm944, 1, 0
        %vm2533 = vcmp.eq.s32.totalorder %v2531, 1
        %vm2534 = vcmp.eq.s32.totalorder %v2532, 1
        %v2535 = vsel %vm2533, %v2530, 0.0
        %v2536 = vsel %vm2534, %v2529, 0.0
        %v2537 = vlaneseq
        %v2538 = vshrl.u32 %v2537, 7
        %v2539 = vsub.s32 4, %v2538
        %v2540 = vrot.slane %v932, %v2539
        %v2541 = vmul.f32 %v2535, %v2540
        %v2542 = vmul.f32 %v2536, %v2540
        %v2543 = vadd.f32 %v2525, %v2541
        %v2544 = vadd.f32 %v2525, %v2542
        %v2545 = vlaneseq
        %v2546 = vshrl.u32 %v2545, 7
        %v2547 = vsub.s32 5, %v2546
        %v2548 = vrot.slane %v932, %v2547
        %v2549 = vmul.f32 %v2519, %v2548
        %v2550 = vmul.f32 %v2520, %v2548
        %v2551 = vadd.f32 %v2543, %v2549
        %v2552 = vadd.f32 %v2544, %v2550
        %v2553 = vrot.slane %v2519, 1
        %v2554 = vrot.slane %v2520, 1
        %vm2555 = vcmp.lt.s32.totalorder %v935, 7
        %v2556 = vsel %vm2555, %v2553, %v2554
        %v2557 = vsel %vm2555, %v2554, %v2553
        %v2558 = vsel %vm951, 1, 0
        %v2559 = vsel %vm952, 1, 0
        %vm2560 = vcmp.eq.s32.totalorder %v2558, 1
        %vm2561 = vcmp.eq.s32.totalorder %v2559, 1
        %v2562 = vsel %vm2560, %v2556, 0.0
        %v2563 = vsel %vm2561, %v2557, 0.0
        %v2564 = vlaneseq
        %v2565 = vshrl.u32 %v2564, 7
        %v2566 = vsub.s32 6, %v2565
        %v2567 = vrot.slane %v932, %v2566
        %v2568 = vmul.f32 %v2562, %v2567
        %v2569 = vmul.f32 %v2563, %v2567
        %v2570 = vadd.f32 %v2551, %v2568
        %v2571 = vadd.f32 %v2552, %v2569
        %v2572 = vmul.f32 %v2461, %v2570
        %v2573 = vmul.f32 %v2462, %v2571
        %v2574 = vld [vmem:[%s759] sm:$0xf]
        %v2575 = vld [vmem:[%s759 + $0x4] sm:$0xf]
        %v2576 = vld [vmem:[%s759 + $0x8] sm:$0xf]
        %v2577 = vld [vmem:[%s759 + $0xc] sm:$0xf]
        %v2578 = vld [vmem:[%s759 + $0x10] sm:$0xf]
        %v2579 = vld [vmem:[%s759 + $0x14] sm:$0xf]
        %v2580 = vld [vmem:[%s759 + $0x18] sm:$0xf]
        %v2581 = vld [vmem:[%s759 + $0x1c] sm:$0xf]
        %v2582 = vld [vmem:[%s759 + $0x20] sm:$0xf]
        %v2583 = vld [vmem:[%s759 + $0x24] sm:$0xf]
        %v2584 = vld [vmem:[%s759 + $0x28] sm:$0xf]
        %v2585 = vld [vmem:[%s759 + $0x2c] sm:$0xf]
        %v2586 = vld [vmem:[%s759 + $0x30] sm:$0xf]
        %v2587 = vld [vmem:[%s759 + $0x34] sm:$0xf]
        %v2588 = vld [vmem:[%s759 + $0x38] sm:$0xf]
        %v2589 = vld [vmem:[%s759 + $0x3c] sm:$0xf]
        %v2590 = vpack.c.bf16 %v2573, %v2572
        %v2591 = vlaneseq
        %v2592 = vshrl.u32 %v2591, 7
        %v2593 = vsub.s32 3, %v2592
        %v2594 = vrot.slane %v929, %v2593
        %v2611 = vunpack.c.l.b16 %v2574
        %v2612 = vunpack.c.l.b16 %v2575
        %v2613 = vunpack.c.l.b16 %v2576
        %v2614 = vunpack.c.l.b16 %v2577
        %v2615 = vunpack.c.l.b16 %v2578
        %v2616 = vunpack.c.l.b16 %v2579
        %v2617 = vunpack.c.l.b16 %v2580
        %v2618 = vunpack.c.l.b16 %v2581
        %v2619 = vunpack.c.l.b16 %v2582
        %v2620 = vunpack.c.l.b16 %v2583
        %v2621 = vunpack.c.l.b16 %v2584
        %v2622 = vunpack.c.l.b16 %v2585
        %v2623 = vunpack.c.l.b16 %v2586
        %v2624 = vunpack.c.l.b16 %v2587
        %v2625 = vunpack.c.l.b16 %v2588
        %v2626 = vunpack.c.l.b16 %v2589
        %v2627 = vpack.c.b16 %v2612, %v2611
        %v2628 = vpack.c.b16 %v2614, %v2613
        %v2629 = vpack.c.b16 %v2616, %v2615
        %v2630 = vpack.c.b16 %v2618, %v2617
        %v2631 = vpack.c.b16 %v2620, %v2619
        %v2632 = vpack.c.b16 %v2622, %v2621
        %v2633 = vpack.c.b16 %v2624, %v2623
        %v2634 = vpack.c.b16 %v2626, %v2625
        %2643 = vmatprep.subr.bf16.mxu0 0
        %2644 = vmatpush1.bf16.msra.mxu0 %v2634
        %2645 = vmatprep.subr.bf16.mxu0 0
        %2646 = vmatpush1.bf16.msra.mxu0 %v2633
        %2647 = vmatprep.subr.bf16.mxu0 0
        %2648 = vmatpush1.bf16.msra.mxu0 %v2632
        %2649 = vmatprep.subr.bf16.mxu0 0
        %2650 = vmatpush1.bf16.msra.mxu0 %v2631
        %2651 = vmatprep.subr.bf16.mxu0 0
        %2652 = vmatpush1.bf16.msra.mxu0 %v2630
        %2653 = vmatprep.subr.bf16.mxu0 0
        %2654 = vmatpush1.bf16.msra.mxu0 %v2629
        %2655 = vmatprep.subr.bf16.mxu0 0
        %2656 = vmatpush1.bf16.msra.mxu0 %v2628
        %2657 = vmatprep.subr.bf16.mxu0 0
        %2658 = vmatpush1.bf16.msra.mxu0 %v2627
        %2659 = vmatprep.subr.bf16.mxu0 0
        %2660 = vmatpush2.bf16.msra.mxu0 0
        %2661 = vmatprep.subr.bf16.mxu0 0
        %2662 = vmatpush2.bf16.msra.mxu0 0
        %2663 = vmatprep.subr.bf16.mxu0 0
        %2664 = vmatpush2.bf16.msra.mxu0 0
        %2665 = vmatprep.subr.bf16.mxu0 0
        %2666 = vmatpush2.bf16.msra.mxu0 0
        %2667 = vmatprep.subr.bf16.mxu0 0
        %2668 = vmatpush2.bf16.msra.mxu0 0
        %2669 = vmatprep.subr.bf16.mxu0 0
        %2670 = vmatpush2.bf16.msra.mxu0 0
        %2671 = vmatprep.subr.bf16.mxu0 0
        %2672 = vmatpush2.bf16.msra.mxu0 0
        %2673 = vmatprep.subr.bf16.mxu0 0
        %2674 = vmatpush2.bf16.msra.mxu0 0
        %2675 = vmatprep.mubr.bf16.mxu0 0
        %2676 = vmatmul.mubr.bf16.gmra.mxu0 %v2590
        %v2677 = vpop.f32.mrf.mxu0
        %v2678 = vadd.f32 %v2594, %v2677
        %v2679 = vpop.f32.mrf.mxu0
        %v2680 = vpop.f32.mrf.mxu0
        %v2681 = vadd.f32 %v2594, %v2680
        %v2682 = vpop.f32.mrf.mxu0
        %2683 = vdwg.mxu0
        %v2684 = vlaneseq
        %v2685 = vshrl.u32 %v2684, 7
        %v2686 = vsub.s32 2, %v2685
        %v2687 = vrot.slane %v930, %v2686
        %v2688 = vadd.f32 %v2687, 0.0
        %v2689 = vrot.slane %v2281, 7
        %v2690 = vrot.slane %v2284, 7
        %v2691 = vsel %vm2528, %v2689, %v2690
        %v2692 = vsel %vm2528, %v2690, %v2689
        %v2693 = vsel %vm2533, %v2692, 0.0
        %v2694 = vsel %vm2534, %v2691, 0.0
        %v2695 = vlaneseq
        %v2696 = vshrl.u32 %v2695, 7
        %v2697 = vsub.s32 4, %v2696
        %v2698 = vrot.slane %v929, %v2697
        %v2699 = vmul.f32 %v2693, %v2698
        %v2700 = vmul.f32 %v2694, %v2698
        %v2701 = vadd.f32 %v2688, %v2699
        %v2702 = vadd.f32 %v2688, %v2700
        %v2703 = vlaneseq
        %v2704 = vshrl.u32 %v2703, 7
        %v2705 = vsub.s32 5, %v2704
        %v2706 = vrot.slane %v929, %v2705
        %v2707 = vmul.f32 %v2281, %v2706
        %v2708 = vmul.f32 %v2284, %v2706
        %v2709 = vadd.f32 %v2701, %v2707
        %v2710 = vadd.f32 %v2702, %v2708
        %v2711 = vrot.slane %v2281, 1
        %v2712 = vrot.slane %v2284, 1
        %v2713 = vsel %vm2555, %v2711, %v2712
        %v2714 = vsel %vm2555, %v2712, %v2711
        %v2715 = vsel %vm2560, %v2713, 0.0
        %v2716 = vsel %vm2561, %v2714, 0.0
        %v2717 = vlaneseq
        %v2718 = vshrl.u32 %v2717, 7
        %v2719 = vsub.s32 6, %v2718
        %v2720 = vrot.slane %v929, %v2719
        %v2721 = vmul.f32 %v2715, %v2720
        %v2722 = vmul.f32 %v2716, %v2720
        %v2723 = vadd.f32 %v2709, %v2721
        %v2724 = vadd.f32 %v2710, %v2722
        %v2725 = vadd.f32 %v2281, %v2723
        %v2726 = vadd.f32 %v2284, %v2724
        %v2727 = vlaneseq
        %v2728 = vshrl.u32 %v2727, 7
        %v2729 = vsub.s32 3, %v2728
        %v2730 = vrot.slane %v930, %v2729
        %v2731 = vadd.f32 %v2730, 0.0
        %v2732 = vrot.slane %v2678, 7
        %v2733 = vrot.slane %v2681, 7
        %v2734 = vsel %vm2528, %v2732, %v2733
        %v2735 = vsel %vm2528, %v2733, %v2732
        %v2736 = vsel %vm2533, %v2735, 0.0
        %v2737 = vsel %vm2534, %v2734, 0.0
        %v2738 = vlaneseq
        %v2739 = vshrl.u32 %v2738, 7
        %v2740 = vsub.s32 7, %v2739
        %v2741 = vrot.slane %v929, %v2740
        %v2742 = vmul.f32 %v2736, %v2741
        %v2743 = vmul.f32 %v2737, %v2741
        %v2744 = vadd.f32 %v2731, %v2742
        %v2745 = vadd.f32 %v2731, %v2743
        %v2746 = vlaneseq
        %v2747 = vshrl.u32 %v2746, 7
        %v2748 = vsub.s32 0, %v2747
        %v2749 = vrot.slane %v930, %v2748
        %v2750 = vmul.f32 %v2678, %v2749
        %v2751 = vmul.f32 %v2681, %v2749
        %v2752 = vadd.f32 %v2744, %v2750
        %v2753 = vadd.f32 %v2745, %v2751
        %v2754 = vrot.slane %v2678, 1
        %v2755 = vrot.slane %v2681, 1
        %v2756 = vsel %vm2555, %v2754, %v2755
        %v2757 = vsel %vm2555, %v2755, %v2754
        %v2758 = vsel %vm2560, %v2756, 0.0
        %v2759 = vsel %vm2561, %v2757, 0.0
        %v2760 = vlaneseq
        %v2761 = vshrl.u32 %v2760, 7
        %v2762 = vsub.s32 1, %v2761
        %v2763 = vrot.slane %v930, %v2762
        %v2764 = vmul.f32 %v2758, %v2763
        %v2765 = vmul.f32 %v2759, %v2763
        %v2766 = vadd.f32 %v2752, %v2764
        %v2767 = vadd.f32 %v2753, %v2765
        %v2768 = vadd.f32 %v2678, %v2766
        %v2769 = vadd.f32 %v2681, %v2767
        %v2770 = vld [vmem:[%s768] sm:$0xf]
        %v2771 = vld [vmem:[%s768 + $0x4] sm:$0xf]
        %v2772 = vld [vmem:[%s768 + $0x8] sm:$0xf]
        %v2773 = vld [vmem:[%s768 + $0xc] sm:$0xf]
        %v2774 = vld [vmem:[%s768 + $0x10] sm:$0xf]
        %v2775 = vld [vmem:[%s768 + $0x14] sm:$0xf]
        %v2776 = vld [vmem:[%s768 + $0x18] sm:$0xf]
        %v2777 = vld [vmem:[%s768 + $0x1c] sm:$0xf]
        %v2778 = vld [vmem:[%s768 + $0x20] sm:$0xf]
        %v2779 = vld [vmem:[%s768 + $0x24] sm:$0xf]
        %v2780 = vld [vmem:[%s768 + $0x28] sm:$0xf]
        %v2781 = vld [vmem:[%s768 + $0x2c] sm:$0xf]
        %v2782 = vld [vmem:[%s768 + $0x30] sm:$0xf]
        %v2783 = vld [vmem:[%s768 + $0x34] sm:$0xf]
        %v2784 = vld [vmem:[%s768 + $0x38] sm:$0xf]
        %v2785 = vld [vmem:[%s768 + $0x3c] sm:$0xf]
        %v2786 = vld [vmem:[%s768 + $0x40] sm:$0xf]
        %v2787 = vld [vmem:[%s768 + $0x44] sm:$0xf]
        %v2788 = vld [vmem:[%s768 + $0x48] sm:$0xf]
        %v2789 = vld [vmem:[%s768 + $0x4c] sm:$0xf]
        %v2790 = vld [vmem:[%s768 + $0x50] sm:$0xf]
        %v2791 = vld [vmem:[%s768 + $0x54] sm:$0xf]
        %v2792 = vld [vmem:[%s768 + $0x58] sm:$0xf]
        %v2793 = vld [vmem:[%s768 + $0x5c] sm:$0xf]
        %v2794 = vld [vmem:[%s768 + $0x60] sm:$0xf]
        %v2795 = vld [vmem:[%s768 + $0x64] sm:$0xf]
        %v2796 = vld [vmem:[%s768 + $0x68] sm:$0xf]
        %v2797 = vld [vmem:[%s768 + $0x6c] sm:$0xf]
        %v2798 = vld [vmem:[%s768 + $0x70] sm:$0xf]
        %v2799 = vld [vmem:[%s768 + $0x74] sm:$0xf]
        %v2800 = vld [vmem:[%s768 + $0x78] sm:$0xf]
        %v2801 = vld [vmem:[%s768 + $0x7c] sm:$0xf]
        %v2802 = vpack.c.bf16 %v2726, %v2725
        %v2803 = vpack.c.bf16 %v2769, %v2768
        %v2804 = vlaneseq
        %v2805 = vshrl.u32 %v2804, 7
        %v2806 = vsub.s32 4, %v2805
        %v2807 = vrot.slane %v930, %v2806
        %v2840 = vunpack.c.l.b16 %v2770
        %v2841 = vunpack.c.l.b16 %v2771
        %v2842 = vunpack.c.l.b16 %v2772
        %v2843 = vunpack.c.l.b16 %v2773
        %v2844 = vunpack.c.l.b16 %v2774
        %v2845 = vunpack.c.l.b16 %v2775
        %v2846 = vunpack.c.l.b16 %v2776
        %v2847 = vunpack.c.l.b16 %v2777
        %v2848 = vunpack.c.l.b16 %v2778
        %v2849 = vunpack.c.l.b16 %v2779
        %v2850 = vunpack.c.l.b16 %v2780
        %v2851 = vunpack.c.l.b16 %v2781
        %v2852 = vunpack.c.l.b16 %v2782
        %v2853 = vunpack.c.l.b16 %v2783
        %v2854 = vunpack.c.l.b16 %v2784
        %v2855 = vunpack.c.l.b16 %v2785
        %v2856 = vunpack.c.l.b16 %v2786
        %v2857 = vunpack.c.l.b16 %v2787
        %v2858 = vunpack.c.l.b16 %v2788
        %v2859 = vunpack.c.l.b16 %v2789
        %v2860 = vunpack.c.l.b16 %v2790
        %v2861 = vunpack.c.l.b16 %v2791
        %v2862 = vunpack.c.l.b16 %v2792
        %v2863 = vunpack.c.l.b16 %v2793
        %v2864 = vunpack.c.l.b16 %v2794
        %v2865 = vunpack.c.l.b16 %v2795
        %v2866 = vunpack.c.l.b16 %v2796
        %v2867 = vunpack.c.l.b16 %v2797
        %v2868 = vunpack.c.l.b16 %v2798
        %v2869 = vunpack.c.l.b16 %v2799
        %v2870 = vunpack.c.l.b16 %v2800
        %v2871 = vunpack.c.l.b16 %v2801
        %v2872 = vpack.c.b16 %v2841, %v2840
        %v2873 = vpack.c.b16 %v2843, %v2842
        %v2874 = vpack.c.b16 %v2845, %v2844
        %v2875 = vpack.c.b16 %v2847, %v2846
        %v2876 = vpack.c.b16 %v2849, %v2848
        %v2877 = vpack.c.b16 %v2851, %v2850
        %v2878 = vpack.c.b16 %v2853, %v2852
        %v2879 = vpack.c.b16 %v2855, %v2854
        %v2880 = vpack.c.b16 %v2857, %v2856
        %v2881 = vpack.c.b16 %v2859, %v2858
        %v2882 = vpack.c.b16 %v2861, %v2860
        %v2883 = vpack.c.b16 %v2863, %v2862
        %v2884 = vpack.c.b16 %v2865, %v2864
        %v2885 = vpack.c.b16 %v2867, %v2866
        %v2886 = vpack.c.b16 %v2869, %v2868
        %v2887 = vpack.c.b16 %v2871, %v2870
        %2904 = vmatprep.subr.bf16.mxu0 0
        %2905 = vmatpush1.bf16.msra.mxu0 %v2879
        %2906 = vmatprep.subr.bf16.mxu0 0
        %2907 = vmatpush1.bf16.msra.mxu0 %v2878
        %2908 = vmatprep.subr.bf16.mxu0 0
        %2909 = vmatpush1.bf16.msra.mxu0 %v2877
        %2910 = vmatprep.subr.bf16.mxu0 0
        %2911 = vmatpush1.bf16.msra.mxu0 %v2876
        %2912 = vmatprep.subr.bf16.mxu0 0
        %2913 = vmatpush1.bf16.msra.mxu0 %v2875
        %2914 = vmatprep.subr.bf16.mxu0 0
        %2915 = vmatpush1.bf16.msra.mxu0 %v2874
        %2916 = vmatprep.subr.bf16.mxu0 0
        %2917 = vmatpush1.bf16.msra.mxu0 %v2873
        %2918 = vmatprep.subr.bf16.mxu0 0
        %2919 = vmatpush1.bf16.msra.mxu0 %v2872
        %2920 = vmatprep.subr.bf16.mxu0 0
        %2921 = vmatpush2.bf16.msra.mxu0 %v2887
        %2922 = vmatprep.subr.bf16.mxu0 0
        %2923 = vmatpush2.bf16.msra.mxu0 %v2886
        %2924 = vmatprep.subr.bf16.mxu0 0
        %2925 = vmatpush2.bf16.msra.mxu0 %v2885
        %2926 = vmatprep.subr.bf16.mxu0 0
        %2927 = vmatpush2.bf16.msra.mxu0 %v2884
        %2928 = vmatprep.subr.bf16.mxu0 0
        %2929 = vmatpush2.bf16.msra.mxu0 %v2883
        %2930 = vmatprep.subr.bf16.mxu0 0
        %2931 = vmatpush2.bf16.msra.mxu0 %v2882
        %2932 = vmatprep.subr.bf16.mxu0 0
        %2933 = vmatpush2.bf16.msra.mxu0 %v2881
        %2934 = vmatprep.subr.bf16.mxu0 0
        %2935 = vmatpush2.bf16.msra.mxu0 %v2880
        %2936 = vmatprep.mubr.bf16.mxu0 %v2803
        %2937 = vmatmul.mubr.bf16.gmra.mxu0 %v2802
        %v2938 = vpop.f32.mrf.mxu0
        %v2939 = vadd.f32 %v2807, %v2938
        %v2940 = vpop.f32.mrf.mxu0
        %v2941 = vpop.f32.mrf.mxu0
        %v2942 = vadd.f32 %v2807, %v2941
        %v2943 = vpop.f32.mrf.mxu0
        %2944 = vdwg.mxu0
        %v2945 = vadd.f32 %v2939, %v1352
        %v2946 = vadd.f32 %v2942, %v1353
        %2947 = vadd.xlane.f32.xlu0 %v2945
        %v2948 = vpop.xlane.xlu0 %2947
        %2949 = vadd.xlane.f32.xlu0 %v2946
        %v2950 = vpop.xlane.xlu0 %2949
        %v2951 = vmul.f32 %v2948, %v957
        %v2952 = vmul.f32 %v2950, %v957
        %v2953 = vsub.f32 %v2945, %v2951
        %v2954 = vsub.f32 %v2946, %v2952
        %v2955 = vmul.f32 %v2953, %v2953
        %v2956 = vmul.f32 %v2954, %v2954
        %2957 = vadd.xlane.f32.xlu0 %v2955
        %v2958 = vpop.xlane.xlu0 %2957
        %2959 = vadd.xlane.f32.xlu0 %v2956
        %v2960 = vpop.xlane.xlu0 %2959
        %v2961 = vmul.f32 %v2958, %v957
        %v2962 = vmul.f32 %v2960, %v957
        %v2963 = vadd.f32 %v2961, 1e-05
        %v2964 = vadd.f32 %v2962, 1e-05
        %v2965 = vrsqrt.pop %v2963
        %v2966 = vrsqrt.pop %v2964
        %v2967 = vmul.f32 %v2953, %v2965
        %v2968 = vmul.f32 %v2954, %v2966
        %v2969 = vlaneseq
        %v2970 = vshrl.u32 %v2969, 7
        %v2971 = vsub.s32 5, %v2970
        %v2972 = vrot.slane %v930, %v2971
        %v2973 = vmul.f32 %v2967, %v2972
        %v2974 = vmul.f32 %v2968, %v2972
        %v2975 = vlaneseq
        %v2976 = vshrl.u32 %v2975, 7
        %v2977 = vsub.s32 6, %v2976
        %v2978 = vrot.slane %v930, %v2977
        %v2979 = vadd.f32 %v2973, %v2978
        %v2980 = vadd.f32 %v2974, %v2978
        %v2981 = vld [vmem:[%s777] sm:$0xff]
        %v2982 = vld [vmem:[%s777 + $0x8] sm:$0xff]
        %v2983 = vld [vmem:[%s777 + $0x10] sm:$0xff]
        %v2984 = vld [vmem:[%s777 + $0x18] sm:$0xff]
        %v2985 = vld [vmem:[%s777 + $0x20] sm:$0xff]
        %v2986 = vld [vmem:[%s777 + $0x28] sm:$0xff]
        %v2987 = vld [vmem:[%s777 + $0x30] sm:$0xff]
        %v2988 = vld [vmem:[%s777 + $0x38] sm:$0xff]
        %v2989 = vld [vmem:[%s777 + $0x40] sm:$0xff]
        %v2990 = vld [vmem:[%s777 + $0x48] sm:$0xff]
        %v2991 = vld [vmem:[%s777 + $0x50] sm:$0xff]
        %v2992 = vld [vmem:[%s777 + $0x58] sm:$0xff]
        %v2993 = vld [vmem:[%s777 + $0x60] sm:$0xff]
        %v2994 = vld [vmem:[%s777 + $0x68] sm:$0xff]
        %v2995 = vld [vmem:[%s777 + $0x70] sm:$0xff]
        %v2996 = vld [vmem:[%s777 + $0x78] sm:$0xff]
        %v2997 = vpack.c.bf16 %v2980, %v2979
        %v2998 = vlaneseq
        %v2999 = vshrl.u32 %v2998, 7
        %v3000 = vsub.s32 1, %v2999
        %v3001 = vrot.slane %v933, %v3000
        %v3002 = vlaneseq
        %v3003 = vshrl.u32 %v3002, 7
        %v3004 = vsub.s32 3, %v3003
        %v3005 = vrot.slane %v933, %v3004
        %v3008 = vlaneseq
        %v3009 = vshrl.u32 %v3008, 7
        %v3010 = vsub.s32 1, %v3009
        %v3011 = vrot.slane %v3001, %v3010
        %v3012 = vlaneseq
        %v3013 = vshrl.u32 %v3012, 7
        %v3014 = vsub.s32 1, %v3013
        %v3015 = vrot.slane %v3005, %v3014
        %v3032 = vunpack.c.l.b16 %v2981
        %v3033 = vunpack.c.h.b16 %v2981
        %v3034 = vunpack.c.l.b16 %v2982
        %v3035 = vunpack.c.h.b16 %v2982
        %v3036 = vunpack.c.l.b16 %v2983
        %v3037 = vunpack.c.h.b16 %v2983
        %v3038 = vunpack.c.l.b16 %v2984
        %v3039 = vunpack.c.h.b16 %v2984
        %v3040 = vunpack.c.l.b16 %v2985
        %v3041 = vunpack.c.h.b16 %v2985
        %v3042 = vunpack.c.l.b16 %v2986
        %v3043 = vunpack.c.h.b16 %v2986
        %v3044 = vunpack.c.l.b16 %v2987
        %v3045 = vunpack.c.h.b16 %v2987
        %v3046 = vunpack.c.l.b16 %v2988
        %v3047 = vunpack.c.h.b16 %v2988
        %v3048 = vunpack.c.l.b16 %v2989
        %v3049 = vunpack.c.h.b16 %v2989
        %v3050 = vunpack.c.l.b16 %v2990
        %v3051 = vunpack.c.h.b16 %v2990
        %v3052 = vunpack.c.l.b16 %v2991
        %v3053 = vunpack.c.h.b16 %v2991
        %v3054 = vunpack.c.l.b16 %v2992
        %v3055 = vunpack.c.h.b16 %v2992
        %v3056 = vunpack.c.l.b16 %v2993
        %v3057 = vunpack.c.h.b16 %v2993
        %v3058 = vunpack.c.l.b16 %v2994
        %v3059 = vunpack.c.h.b16 %v2994
        %v3060 = vunpack.c.l.b16 %v2995
        %v3061 = vunpack.c.h.b16 %v2995
        %v3062 = vunpack.c.l.b16 %v2996
        %v3063 = vunpack.c.h.b16 %v2996
        %v3064 = vpack.c.b16 %v3034, %v3032
        %v3065 = vpack.c.b16 %v3035, %v3033
        %v3066 = vpack.c.b16 %v3038, %v3036
        %v3067 = vpack.c.b16 %v3039, %v3037
        %v3068 = vpack.c.b16 %v3042, %v3040
        %v3069 = vpack.c.b16 %v3043, %v3041
        %v3070 = vpack.c.b16 %v3046, %v3044
        %v3071 = vpack.c.b16 %v3047, %v3045
        %v3072 = vpack.c.b16 %v3050, %v3048
        %v3073 = vpack.c.b16 %v3051, %v3049
        %v3074 = vpack.c.b16 %v3054, %v3052
        %v3075 = vpack.c.b16 %v3055, %v3053
        %v3076 = vpack.c.b16 %v3058, %v3056
        %v3077 = vpack.c.b16 %v3059, %v3057
        %v3078 = vpack.c.b16 %v3062, %v3060
        %v3079 = vpack.c.b16 %v3063, %v3061
        %3096 = vmatprep.subr.bf16.mxu0 %v3079
        %3097 = vmatpush1.bf16.msra.mxu0 %v3078
        %3098 = vmatprep.subr.bf16.mxu0 %v3077
        %3099 = vmatpush1.bf16.msra.mxu0 %v3076
        %3100 = vmatprep.subr.bf16.mxu0 %v3075
        %3101 = vmatpush1.bf16.msra.mxu0 %v3074
        %3102 = vmatprep.subr.bf16.mxu0 %v3073
        %3103 = vmatpush1.bf16.msra.mxu0 %v3072
        %3104 = vmatprep.subr.bf16.mxu0 %v3071
        %3105 = vmatpush1.bf16.msra.mxu0 %v3070
        %3106 = vmatprep.subr.bf16.mxu0 %v3069
        %3107 = vmatpush1.bf16.msra.mxu0 %v3068
        %3108 = vmatprep.subr.bf16.mxu0 %v3067
        %3109 = vmatpush1.bf16.msra.mxu0 %v3066
        %3110 = vmatprep.subr.bf16.mxu0 %v3065
        %3111 = vmatpush1.bf16.msra.mxu0 %v3064
        %3112 = vmatprep.subr.bf16.mxu0 0
        %3113 = vmatpush2.bf16.msra.mxu0 0
        %3114 = vmatprep.subr.bf16.mxu0 0
        %3115 = vmatpush2.bf16.msra.mxu0 0
        %3116 = vmatprep.subr.bf16.mxu0 0
        %3117 = vmatpush2.bf16.msra.mxu0 0
        %3118 = vmatprep.subr.bf16.mxu0 0
        %3119 = vmatpush2.bf16.msra.mxu0 0
        %3120 = vmatprep.subr.bf16.mxu0 0
        %3121 = vmatpush2.bf16.msra.mxu0 0
        %3122 = vmatprep.subr.bf16.mxu0 0
        %3123 = vmatpush2.bf16.msra.mxu0 0
        %3124 = vmatprep.subr.bf16.mxu0 0
        %3125 = vmatpush2.bf16.msra.mxu0 0
        %3126 = vmatprep.subr.bf16.mxu0 0
        %3127 = vmatpush2.bf16.msra.mxu0 0
        %3128 = vmatprep.mubr.bf16.mxu0 0
        %3129 = vmatmul.mubr.bf16.gmra.mxu0 %v2997
        %v3130 = vpop.f32.mrf.mxu0
        %v3131 = vadd.f32 %v3011, %v3130
        %v3132 = vpop.f32.mrf.mxu0
        %v3133 = vadd.f32 %v3015, %v3132
        %v3134 = vpop.f32.mrf.mxu0
        %v3135 = vadd.f32 %v3011, %v3134
        %v3136 = vpop.f32.mrf.mxu0
        %v3137 = vadd.f32 %v3015, %v3136
        %3138 = vdwg.mxu0
        %v3139 = vxor.u32 %v3131, 2147483648
        %v3140 = vxor.u32 %v3133, 2147483648
        %v3141 = vxor.u32 %v3135, 2147483648
        %v3142 = vxor.u32 %v3137, 2147483648
        %v3143 = vmul.f32 %v3139, 1.442695
        %v3144 = vpow.pop %v3143
        %v3145 = vmul.f32 %v3140, 1.442695
        %v3146 = vpow.pop %v3145
        %v3147 = vmul.f32 %v3141, 1.442695
        %v3148 = vpow.pop %v3147
        %v3149 = vmul.f32 %v3142, 1.442695
        %v3150 = vpow.pop %v3149
        %v3151 = vadd.f32 %v3144, 1.0
        %v3152 = vadd.f32 %v3146, 1.0
        %v3153 = vadd.f32 %v3148, 1.0
        %v3154 = vadd.f32 %v3150, 1.0
        %v3155 = vrcp.pop %v3151
        %v3156 = vmul.f32 1.0, %v3155
        %v3157 = vrcp.pop %v3152
        %v3158 = vmul.f32 1.0, %v3157
        %v3159 = vrcp.pop %v3153
        %v3160 = vmul.f32 1.0, %v3159
        %v3161 = vrcp.pop %v3154
        %v3162 = vmul.f32 1.0, %v3161
        %v3163 = vmul.f32 %v3131, %v3156
        %v3164 = vmul.f32 %v3133, %v3158
        %v3165 = vmul.f32 %v3135, %v3160
        %v3166 = vmul.f32 %v3137, %v3162
        %v3167 = vld [vmem:[%s786] sm:$0xf]
        %v3168 = vld [vmem:[%s786 + $0x4] sm:$0xf]
        %v3169 = vld [vmem:[%s786 + $0x8] sm:$0xf]
        %v3170 = vld [vmem:[%s786 + $0xc] sm:$0xf]
        %v3171 = vld [vmem:[%s786 + $0x10] sm:$0xf]
        %v3172 = vld [vmem:[%s786 + $0x14] sm:$0xf]
        %v3173 = vld [vmem:[%s786 + $0x18] sm:$0xf]
        %v3174 = vld [vmem:[%s786 + $0x1c] sm:$0xf]
        %v3175 = vld [vmem:[%s786 + $0x20] sm:$0xf]
        %v3176 = vld [vmem:[%s786 + $0x24] sm:$0xf]
        %v3177 = vld [vmem:[%s786 + $0x28] sm:$0xf]
        %v3178 = vld [vmem:[%s786 + $0x2c] sm:$0xf]
        %v3179 = vld [vmem:[%s786 + $0x30] sm:$0xf]
        %v3180 = vld [vmem:[%s786 + $0x34] sm:$0xf]
        %v3181 = vld [vmem:[%s786 + $0x38] sm:$0xf]
        %v3182 = vld [vmem:[%s786 + $0x3c] sm:$0xf]
        %v3183 = vld [vmem:[%s786 + $0x40] sm:$0xf]
        %v3184 = vld [vmem:[%s786 + $0x44] sm:$0xf]
        %v3185 = vld [vmem:[%s786 + $0x48] sm:$0xf]
        %v3186 = vld [vmem:[%s786 + $0x4c] sm:$0xf]
        %v3187 = vld [vmem:[%s786 + $0x50] sm:$0xf]
        %v3188 = vld [vmem:[%s786 + $0x54] sm:$0xf]
        %v3189 = vld [vmem:[%s786 + $0x58] sm:$0xf]
        %v3190 = vld [vmem:[%s786 + $0x5c] sm:$0xf]
        %v3191 = vld [vmem:[%s786 + $0x60] sm:$0xf]
        %v3192 = vld [vmem:[%s786 + $0x64] sm:$0xf]
        %v3193 = vld [vmem:[%s786 + $0x68] sm:$0xf]
        %v3194 = vld [vmem:[%s786 + $0x6c] sm:$0xf]
        %v3195 = vld [vmem:[%s786 + $0x70] sm:$0xf]
        %v3196 = vld [vmem:[%s786 + $0x74] sm:$0xf]
        %v3197 = vld [vmem:[%s786 + $0x78] sm:$0xf]
        %v3198 = vld [vmem:[%s786 + $0x7c] sm:$0xf]
        %v3199 = vpack.c.bf16 %v3165, %v3163
        %v3200 = vpack.c.bf16 %v3166, %v3164
        %v3201 = vlaneseq
        %v3202 = vshrl.u32 %v3201, 7
        %v3203 = vsub.s32 7, %v3202
        %v3204 = vrot.slane %v930, %v3203
        %v3237 = vunpack.c.l.b16 %v3167
        %v3238 = vunpack.c.l.b16 %v3168
        %v3239 = vunpack.c.l.b16 %v3169
        %v3240 = vunpack.c.l.b16 %v3170
        %v3241 = vunpack.c.l.b16 %v3171
        %v3242 = vunpack.c.l.b16 %v3172
        %v3243 = vunpack.c.l.b16 %v3173
        %v3244 = vunpack.c.l.b16 %v3174
        %v3245 = vunpack.c.l.b16 %v3175
        %v3246 = vunpack.c.l.b16 %v3176
        %v3247 = vunpack.c.l.b16 %v3177
        %v3248 = vunpack.c.l.b16 %v3178
        %v3249 = vunpack.c.l.b16 %v3179
        %v3250 = vunpack.c.l.b16 %v3180
        %v3251 = vunpack.c.l.b16 %v3181
        %v3252 = vunpack.c.l.b16 %v3182
        %v3253 = vunpack.c.l.b16 %v3183
        %v3254 = vunpack.c.l.b16 %v3184
        %v3255 = vunpack.c.l.b16 %v3185
        %v3256 = vunpack.c.l.b16 %v3186
        %v3257 = vunpack.c.l.b16 %v3187
        %v3258 = vunpack.c.l.b16 %v3188
        %v3259 = vunpack.c.l.b16 %v3189
        %v3260 = vunpack.c.l.b16 %v3190
        %v3261 = vunpack.c.l.b16 %v3191
        %v3262 = vunpack.c.l.b16 %v3192
        %v3263 = vunpack.c.l.b16 %v3193
        %v3264 = vunpack.c.l.b16 %v3194
        %v3265 = vunpack.c.l.b16 %v3195
        %v3266 = vunpack.c.l.b16 %v3196
        %v3267 = vunpack.c.l.b16 %v3197
        %v3268 = vunpack.c.l.b16 %v3198
        %v3269 = vpack.c.b16 %v3238, %v3237
        %v3270 = vpack.c.b16 %v3240, %v3239
        %v3271 = vpack.c.b16 %v3242, %v3241
        %v3272 = vpack.c.b16 %v3244, %v3243
        %v3273 = vpack.c.b16 %v3246, %v3245
        %v3274 = vpack.c.b16 %v3248, %v3247
        %v3275 = vpack.c.b16 %v3250, %v3249
        %v3276 = vpack.c.b16 %v3252, %v3251
        %v3277 = vpack.c.b16 %v3254, %v3253
        %v3278 = vpack.c.b16 %v3256, %v3255
        %v3279 = vpack.c.b16 %v3258, %v3257
        %v3280 = vpack.c.b16 %v3260, %v3259
        %v3281 = vpack.c.b16 %v3262, %v3261
        %v3282 = vpack.c.b16 %v3264, %v3263
        %v3283 = vpack.c.b16 %v3266, %v3265
        %v3284 = vpack.c.b16 %v3268, %v3267
        %3301 = vmatprep.subr.bf16.mxu0 0
        %3302 = vmatpush1.bf16.msra.mxu0 %v3276
        %3303 = vmatprep.subr.bf16.mxu0 0
        %3304 = vmatpush1.bf16.msra.mxu0 %v3275
        %3305 = vmatprep.subr.bf16.mxu0 0
        %3306 = vmatpush1.bf16.msra.mxu0 %v3274
        %3307 = vmatprep.subr.bf16.mxu0 0
        %3308 = vmatpush1.bf16.msra.mxu0 %v3273
        %3309 = vmatprep.subr.bf16.mxu0 0
        %3310 = vmatpush1.bf16.msra.mxu0 %v3272
        %3311 = vmatprep.subr.bf16.mxu0 0
        %3312 = vmatpush1.bf16.msra.mxu0 %v3271
        %3313 = vmatprep.subr.bf16.mxu0 0
        %3314 = vmatpush1.bf16.msra.mxu0 %v3270
        %3315 = vmatprep.subr.bf16.mxu0 0
        %3316 = vmatpush1.bf16.msra.mxu0 %v3269
        %3317 = vmatprep.subr.bf16.mxu0 0
        %3318 = vmatpush2.bf16.msra.mxu0 %v3284
        %3319 = vmatprep.subr.bf16.mxu0 0
        %3320 = vmatpush2.bf16.msra.mxu0 %v3283
        %3321 = vmatprep.subr.bf16.mxu0 0
        %3322 = vmatpush2.bf16.msra.mxu0 %v3282
        %3323 = vmatprep.subr.bf16.mxu0 0
        %3324 = vmatpush2.bf16.msra.mxu0 %v3281
        %3325 = vmatprep.subr.bf16.mxu0 0
        %3326 = vmatpush2.bf16.msra.mxu0 %v3280
        %3327 = vmatprep.subr.bf16.mxu0 0
        %3328 = vmatpush2.bf16.msra.mxu0 %v3279
        %3329 = vmatprep.subr.bf16.mxu0 0
        %3330 = vmatpush2.bf16.msra.mxu0 %v3278
        %3331 = vmatprep.subr.bf16.mxu0 0
        %3332 = vmatpush2.bf16.msra.mxu0 %v3277
        %3333 = vmatprep.mubr.bf16.mxu0 %v3200
        %3334 = vmatmul.mubr.bf16.gmra.mxu0 %v3199
        %v3335 = vpop.f32.mrf.mxu0
        %v3336 = vadd.f32 %v3204, %v3335
        %v3337 = vpop.f32.mrf.mxu0
        %v3338 = vpop.f32.mrf.mxu0
        %v3339 = vadd.f32 %v3204, %v3338
        %v3340 = vpop.f32.mrf.mxu0
        %3341 = vdwg.mxu0
        %v3342 = vmul.f32 %v3336, 0.5
        %v3343 = vmul.f32 %v3339, 0.5
        %v3344 = vadd.f32 %v3342, %v2945
        %v3345 = vadd.f32 %v3343, %v2946
        %3346 = vadd.xlane.f32.xlu0 %v3344
        %v3347 = vpop.xlane.xlu0 %3346
        %3348 = vadd.xlane.f32.xlu0 %v3345
        %v3349 = vpop.xlane.xlu0 %3348
        %v3350 = vmul.f32 %v3347, %v957
        %v3351 = vmul.f32 %v3349, %v957
        %v3352 = vsub.f32 %v3344, %v3350
        %v3353 = vsub.f32 %v3345, %v3351
        %v3354 = vmul.f32 %v3352, %v3352
        %v3355 = vmul.f32 %v3353, %v3353
        %3356 = vadd.xlane.f32.xlu0 %v3354
        %v3357 = vpop.xlane.xlu0 %3356
        %3358 = vadd.xlane.f32.xlu0 %v3355
        %v3359 = vpop.xlane.xlu0 %3358
        %v3360 = vmul.f32 %v3357, %v957
        %v3361 = vmul.f32 %v3359, %v957
        %v3362 = vadd.f32 %v3360, 1e-05
        %v3363 = vadd.f32 %v3361, 1e-05
        %v3364 = vrsqrt.pop %v3362
        %v3365 = vrsqrt.pop %v3363
        %v3366 = vmul.f32 %v3352, %v3364
        %v3367 = vmul.f32 %v3353, %v3365
        %v3368 = vlaneseq
        %v3369 = vshrl.u32 %v3368, 7
        %v3370 = vsub.s32 0, %v3369
        %v3371 = vrot.slane %v931, %v3370
        %v3372 = vmul.f32 %v3366, %v3371
        %v3373 = vmul.f32 %v3367, %v3371
        %v3374 = vlaneseq
        %v3375 = vshrl.u32 %v3374, 7
        %v3376 = vsub.s32 1, %v3375
        %v3377 = vrot.slane %v931, %v3376
        %v3378 = vadd.f32 %v3372, %v3377
        %v3379 = vadd.f32 %v3373, %v3377
        %3380 = vst [vmem:[#allocation2] sm:$0xff] %v3378
        %3381 = vst [vmem:[#allocation2 + $0x8] sm:$0xff] %v3379
        %3382 = vst [vmem:[%s916] sm:$0xff] %v3378
        %3383 = vst [vmem:[%s916 + $0x8] sm:$0xff] %v3379
        %p3384 = scmp.lt.s32.totalorder %s47, 1
        %s3385 = scalar_select %p3384, %s47, 1
        %s3386 = smul.addr %s3385, 2
        %s3387 = smul.addr %s3386, 8
        %s3388 = scalar_lea.vmem %s14, %s3387
        // Predicated region
        $region121: #{ebranchformer_encoder_forward.1} parent=75 // pred_check
          %p3389 = pneg %p437
        $region122: #{ebranchformer_encoder_forward.1} parent=75 // pred_check_branch
          %3391 = sbr.rel (%p3389) target = $region124
        $region123: #{ebranchformer_encoder_forward.1} parent=75 // pred_region
          _
        $region124: #{ebranchformer_encoder_forward.1} parent=75 // pred_fallthru
          _
      $region76: #{ebranchformer_encoder_forward.1} parent=5 // pred_fallthru
        _
      %p3392 = scmp.le.s32.totalorder 2, %s38
      // Predicated region
      $region125: #{ebranchformer_encoder_forward.1} parent=5 // pred_check
        %p3393 = pneg %p3392
      $region126: #{ebranchformer_encoder_forward.1} parent=5 // pred_check_branch
        %3395 = sbr.rel (%p3393) target = $region128
      $region127: #{ebranchformer_encoder_forward.1} parent=5 // pred_region
        %s3396 = ssub.s32 %s38, 2
        // Predicated region
        $region129: #{ebranchformer_encoder_forward.1} parent=127 // pred_check
          %p3397 = pneg %p443
        $region130: #{ebranchformer_encoder_forward.1} parent=127 // pred_check_branch
          %3399 = sbr.rel (%p3397) target = $region132
        $region131: #{ebranchformer_encoder_forward.1} parent=127 // pred_region
          %p3400 = scmp.lt.s32.totalorder %s49, 1
          %s3401 = scalar_select %p3400, %s49, 1
          %s3402 = smul.addr %s3401, 2
          %s3403 = smul.addr %s3402, 8
          %s3404 = scalar_lea.vmem %s14, %s3403
        $region132: #{ebranchformer_encoder_forward.1} parent=127 // pred_fallthru
          _
      $region128: #{ebranchformer_encoder_forward.1} parent=5 // pred_fallthru
        _
    $region6: #{ebranchformer_encoder_forward.1} parent=1 // loop_footer
      %s42 = sadd.s32 1, %s38
    $region7: #{ebranchformer_encoder_forward.1} parent=1 // loop_footer_branch
      %37 = sbr.rel target = $region3
    $region8: #{ebranchformer_encoder_forward.1} parent=1 // loop_exit
      _
    %3405 = vsyncpa [#allocation4], 1
    %s3406 = scalar_lea.sflag [#allocation4], 1
    %3407 = vsyncpa %s3406, 1
    %3408 = vsyncpa [#allocation6], 1
    %s3409 = scalar_lea.sflag [#allocation6], 1
    %3410 = vsyncpa %s3409, 1
    %3411 = vsyncpa [#allocation9], 1
    %s3412 = scalar_lea.sflag [#allocation9], 1
    %3413 = vsyncpa %s3412, 1
    %3414 = vsyncpa [#allocation12], 1
    %s3415 = scalar_lea.sflag [#allocation12], 1
    %3416 = vsyncpa %s3415, 1
    %3417 = vsyncpa [#allocation15], 1
    %s3418 = scalar_lea.sflag [#allocation15], 1
    %3419 = vsyncpa %s3418, 1
    %3420 = vsyncpa [#allocation18], 1
    %s3421 = scalar_lea.sflag [#allocation18], 1
    %3422 = vsyncpa %s3421, 1

</llo_original>
